<compile_context>
chip_gen: v5e
topology: v5e:2x2
jax: 0.10.0
libtpu: 0.0.40
codegen_flags: <defaults>
</compile_context>

<pallas_src>
import functools

import jax
import jax.numpy as jnp
from jax.experimental import pallas as pl
from jax.experimental.pallas import tpu as pltpu

LANES = 128  # pad Cout up to a multiple of this so output stores are lane-dense


# ----------------------------------------------------------------------------
# Pallas kernel: fused 3x3 conv (ACNet-fused asyConv) with in-kernel tap accumulation
# ----------------------------------------------------------------------------
def _asyconv_fused_kernel(x_ref, w_ref, b_ref, o_ref, acc_ref, *, H, Wp, KH, KW):
    """One batch element.

    x_ref  : (1, Hp*Wp + KW-1, Cin) f32   flattened zero-padded input (+KW-1 pad rows)
    w_ref  : (KH*KW, Cin, Np)       bf16  per-tap weight matrices (BN scale folded in)
    b_ref  : (1, Np)                f32   fused bias
    o_ref  : (1, H*Wp, Np)          f32   lane-dense output over the padded-width grid
    acc_ref: (H*Wp, Np)             f32   VMEM accumulator scratch
    """
    M = H * Wp
    acc_ref[...] = jnp.zeros_like(acc_ref)
    x = x_ref[0]  # load the whole padded slab once; taps are cheap value slices
    for kh in range(KH):          # unrolled 3x3 tap loop: 9 MXU matmuls, f32 accumulate
        for kw in range(KW):
            off = kh * Wp + kw    # shifted flat window == tap (kh, kw) of the conv
            lhs = x[off:off + M, :].astype(jnp.bfloat16)   # bf16 operand for the MXU
            acc_ref[...] += jnp.dot(lhs, w_ref[kh * KW + kw],
                                    preferred_element_type=jnp.float32)
    # epilogue in f32 (v5e has no bf16 VPU); only a bias add (scale already in weights)
    o_ref[0] = acc_ref[...] + b_ref[...]


def asyconv_forward(params, x_nhwc):
    """asyConv forward (inference-mode BN).  x_nhwc: [B, H, W, Cin] float32 NHWC."""
    B, H, W, Cin = x_nhwc.shape
    Cout = params["sq_w"].shape[0]
    KH = KW = 3

    # ---- ACNet inference fusion: (square + vertical + horizontal) conv+BN -> one 3x3 conv
    w = params["sq_s"][:, None, None, None] * params["sq_w"]                   # (Cout,Cin,3,3)
    w = w.at[:, :, :, 1:2].add(params["ver_s"][:, None, None, None] * params["ver_w"])
    w = w.at[:, :, 1:2, :].add(params["hor_s"][:, None, None, None] * params["hor_w"])
    bias = params["sq_b"] + params["ver_b"] + params["hor_b"]                  # (Cout,)

    # Per-tap weight matrices; Cout zero-padded to a lane-dense width; bf16 for the MXU.
    Np = ((Cout + LANES - 1) // LANES) * LANES
    w_taps = jnp.transpose(w, (2, 3, 1, 0)).reshape(KH * KW, Cin, Cout)
    w_taps = jnp.pad(w_taps, ((0, 0), (0, 0), (0, Np - Cout))).astype(jnp.bfloat16)
    bias_p = jnp.pad(bias, (0, Np - Cout)).reshape(1, Np).astype(jnp.float32)

    # Spatial zero padding ("same", stride 1), then flatten (H,W) -> rows.  This is the
    # ONLY data-side prep: no KH*KW im2col blow-up in HBM (taps are sliced in-kernel).
    Hp, Wp = H + KH - 1, W + KW - 1
    xp = jnp.pad(x_nhwc, ((0, 0), (1, 1), (1, 1), (0, 0))).astype(jnp.float32)
    x_flat = xp.reshape(B, Hp * Wp, Cin)
    x_flat = jnp.pad(x_flat, ((0, 0), (0, KW - 1), (0, 0)))   # tail pad so last tap stays in-bounds

    out = pl.pallas_call(
        functools.partial(_asyconv_fused_kernel, H=H, Wp=Wp, KH=KH, KW=KW),
        out_shape=jax.ShapeDtypeStruct((B, H * Wp, Np), jnp.float32),
        grid=(B,),
        in_specs=[
            pl.BlockSpec((1, Hp * Wp + KW - 1, Cin), lambda b: (b, 0, 0)),
            pl.BlockSpec((KH * KW, Cin, Np), lambda b: (0, 0, 0)),
            pl.BlockSpec((1, Np), lambda b: (0, 0)),
        ],
        out_specs=pl.BlockSpec((1, H * Wp, Np), lambda b: (b, 0, 0)),
        scratch_shapes=[pltpu.VMEM((H * Wp, Np), jnp.float32)],
        compiler_params=pltpu.CompilerParams(
            dimension_semantics=("parallel",)),
    )(x_flat, w_taps, bias_p)

    # Drop the padded-width garbage columns and the lane padding; restore NHWC.
    return out.reshape(B, H, Wp, Np)[:, :, :W, :Cout]


# ----------------------------------------------------------------------------
# Deterministic parameter construction (conv weights + folded inference-mode BN)
# ----------------------------------------------------------------------------
class KeyGen:
    def __init__(self, key):
        self.key = key

    def __call__(self):
        self.key, sub = jax.random.split(self.key)
        return sub


def _init_bn(kg, c, eps=1e-5):
    gamma = 1.0 + 0.1 * jax.random.normal(kg(), (c,), jnp.float32)
    beta = 0.1 * jax.random.normal(kg(), (c,), jnp.float32)
    mean = 0.1 * jax.random.normal(kg(), (c,), jnp.float32)
    var = 0.5 + jax.random.uniform(kg(), (c,), jnp.float32)
    scale = gamma / jnp.sqrt(var + eps)
    bias = beta - mean * scale
    return scale, bias


def init_asyconv(kg, cin, cout):
    p = {}
    p["sq_w"] = 0.1 * jax.random.normal(kg(), (cout, cin, 3, 3), jnp.float32)
    p["sq_s"], p["sq_b"] = _init_bn(kg, cout)
    p["ver_w"] = 0.1 * jax.random.normal(kg(), (cout, cin, 3, 1), jnp.float32)
    p["ver_s"], p["ver_b"] = _init_bn(kg, cout)
    p["hor_w"] = 0.1 * jax.random.normal(kg(), (cout, cin, 1, 3), jnp.float32)
    p["hor_s"], p["hor_b"] = _init_bn(kg, cout)
    return p   # arrays only -> safe to pass through jax.jit


# ----------------------------------------------------------------------------
# Pure-JAX reference (literal 3-branch asyConv, eval-mode BN) for verification
# ----------------------------------------------------------------------------
def asyconv_reference(params, x_nhwc):
    def conv(x, w_oihw, ph, pw):
        return jax.lax.conv_general_dilated(
            x, jnp.transpose(w_oihw, (2, 3, 1, 0)),   # OIHW -> HWIO
            window_strides=(1, 1),
            padding=((ph, ph), (pw, pw)),
            dimension_numbers=("NHWC", "HWIO", "NHWC"))

    sq = conv(x_nhwc, params["sq_w"], 1, 1) * params["sq_s"] + params["sq_b"]
    ver = conv(x_nhwc, params["ver_w"], 1, 0) * params["ver_s"] + params["ver_b"]
    hor = conv(x_nhwc, params["hor_w"], 0, 1) * params["hor_s"] + params["hor_b"]
    return sq + ver + hor


# ----------------------------------------------------------------------------
if __name__ == "__main__":
    B, CIN, COUT, S = 2, 4, 8, 16
    kg = KeyGen(jax.random.PRNGKey(0))
    params = init_asyconv(kg, CIN, COUT)

    # PyTorch-convention NCHW input, transposed once to the kernel's NHWC layout.
    x_nchw = jax.random.normal(kg(), (B, CIN, S, S), jnp.float32)
    x_nhwc = jnp.transpose(x_nchw, (0, 2, 3, 1))

    fwd = jax.jit(asyconv_forward)
    out = jax.block_until_ready(fwd(params, x_nhwc))

    assert out.shape == (B, S, S, COUT), out.shape
    assert bool(jnp.all(jnp.isfinite(out)))

    ref = asyconv_reference(params, x_nhwc)
    max_err = float(jnp.max(jnp.abs(out - ref)))
    assert max_err < 5e-2, f"max abs error vs reference = {max_err}"

    print("KERNEL_OK")
</pallas_src>

<mosaic_0001>
module attributes {stable_mosaic.version = 11 : i64} {
  func.func @_asyconv_fused_kernel(%arg0: i32, %arg1: memref<1x326x4xf32, #tpu.memory_space<vmem>>, %arg2: memref<9x4x128xbf16, #tpu.memory_space<vmem>>, %arg3: memref<1x128xf32, #tpu.memory_space<vmem>>, %arg4: memref<1x288x128xf32, #tpu.memory_space<vmem>>, %arg5: memref<288x128xf32, #tpu.memory_space<vmem>>) attributes {dimension_semantics = [#tpu.dimension_semantics<parallel>], iteration_bounds = array<i64: 2>, scalar_prefetch = 0 : i64, scratch_operands = 1 : i64, tpu.core_type = #tpu.core_type<tc>, window_params = [{transform_indices = @transform_0, window_bounds = array<i64: 1, 326, 4>}, {pipeline_mode = #tpu.pipeline_mode<synchronous>, transform_indices = @transform_1, window_bounds = array<i64: 9, 4, 128>}, {pipeline_mode = #tpu.pipeline_mode<synchronous>, transform_indices = @transform_2, window_bounds = array<i64: 1, 128>}, {transform_indices = @transform_3, window_bounds = array<i64: 1, 288, 128>}]} {
    %cst = arith.constant 0.000000e+00 : f32
    %0 = vector.broadcast %cst : f32 to vector<288x128xf32>
    %c0 = arith.constant 0 : index
    %c0_0 = arith.constant 0 : index
    %1 = vector.load %arg5[%c0, %c0_0] : memref<288x128xf32, #tpu.memory_space<vmem>>, vector<288x128xf32>
    tpu.vector_store %arg5[%c0, %c0_0], %0 {strides = array<i32>} : memref<288x128xf32, #tpu.memory_space<vmem>>, vector<288x128xf32>,
    %c0_1 = arith.constant 0 : index
    %c0_2 = arith.constant 0 : index
    %c0_3 = arith.constant 0 : index
    %2 = vector.load %arg1[%c0_1, %c0_2, %c0_3] : memref<1x326x4xf32, #tpu.memory_space<vmem>>, vector<1x326x4xf32>
    %3 = vector.shape_cast %2 : vector<1x326x4xf32> to vector<326x4xf32>
    %4 = vector.extract_strided_slice %3 {offsets = [0, 0], sizes = [288, 4], strides = [1, 1]} : vector<326x4xf32> to vector<288x4xf32>
    %5 = arith.truncf %4 : vector<288x4xf32> to vector<288x4xbf16>
    %c0_4 = arith.constant 0 : index
    %c0_5 = arith.constant 0 : index
    %6 = vector.load %arg5[%c0_4, %c0_5] : memref<288x128xf32, #tpu.memory_space<vmem>>, vector<288x128xf32>
    %c0_6 = arith.constant 0 : index
    %c0_7 = arith.constant 0 : index
    %c0_8 = arith.constant 0 : index
    %7 = vector.load %arg2[%c0_6, %c0_7, %c0_8] : memref<9x4x128xbf16, #tpu.memory_space<vmem>>, vector<1x4x128xbf16>
    %8 = vector.shape_cast %7 : vector<1x4x128xbf16> to vector<4x128xbf16>
    %cst_9 = arith.constant dense<0.000000e+00> : vector<288x128xf32>
    %9 = tpu.matmul %5, %8, %cst_9 {dimension_numbers = #tpu.dot_dimension_numbers<[1], [0], [0], [1], [0, 0, 1, 1], [], []>} : vector<288x4xbf16>, vector<4x128xbf16>, vector<288x128xf32> -> vector<288x128xf32>
    %10 = arith.addf %6, %9 : vector<288x128xf32>
    %c0_10 = arith.constant 0 : index
    %c0_11 = arith.constant 0 : index
    %11 = vector.load %arg5[%c0_10, %c0_11] : memref<288x128xf32, #tpu.memory_space<vmem>>, vector<288x128xf32>
    tpu.vector_store %arg5[%c0_10, %c0_11], %10 {strides = array<i32>} : memref<288x128xf32, #tpu.memory_space<vmem>>, vector<288x128xf32>,
    %12 = vector.extract_strided_slice %3 {offsets = [1, 0], sizes = [288, 4], strides = [1, 1]} : vector<326x4xf32> to vector<288x4xf32>
    %13 = arith.truncf %12 : vector<288x4xf32> to vector<288x4xbf16>
    %c0_12 = arith.constant 0 : index
    %c0_13 = arith.constant 0 : index
    %14 = vector.load %arg5[%c0_12, %c0_13] : memref<288x128xf32, #tpu.memory_space<vmem>>, vector<288x128xf32>
    %c1 = arith.constant 1 : index
    %c0_14 = arith.constant 0 : index
    %c0_15 = arith.constant 0 : index
    %15 = vector.load %arg2[%c1, %c0_14, %c0_15] : memref<9x4x128xbf16, #tpu.memory_space<vmem>>, vector<1x4x128xbf16>
    %16 = vector.shape_cast %15 : vector<1x4x128xbf16> to vector<4x128xbf16>
    %cst_16 = arith.constant dense<0.000000e+00> : vector<288x128xf32>
    %17 = tpu.matmul %13, %16, %cst_16 {dimension_numbers = #tpu.dot_dimension_numbers<[1], [0], [0], [1], [0, 0, 1, 1], [], []>} : vector<288x4xbf16>, vector<4x128xbf16>, vector<288x128xf32> -> vector<288x128xf32>
    %18 = arith.addf %14, %17 : vector<288x128xf32>
    %c0_17 = arith.constant 0 : index
    %c0_18 = arith.constant 0 : index
    %19 = vector.load %arg5[%c0_17, %c0_18] : memref<288x128xf32, #tpu.memory_space<vmem>>, vector<288x128xf32>
    tpu.vector_store %arg5[%c0_17, %c0_18], %18 {strides = array<i32>} : memref<288x128xf32, #tpu.memory_space<vmem>>, vector<288x128xf32>,
    %20 = vector.extract_strided_slice %3 {offsets = [2, 0], sizes = [288, 4], strides = [1, 1]} : vector<326x4xf32> to vector<288x4xf32>
    %21 = arith.truncf %20 : vector<288x4xf32> to vector<288x4xbf16>
    %c0_19 = arith.constant 0 : index
    %c0_20 = arith.constant 0 : index
    %22 = vector.load %arg5[%c0_19, %c0_20] : memref<288x128xf32, #tpu.memory_space<vmem>>, vector<288x128xf32>
    %c2 = arith.constant 2 : index
    %c0_21 = arith.constant 0 : index
    %c0_22 = arith.constant 0 : index
    %23 = vector.load %arg2[%c2, %c0_21, %c0_22] : memref<9x4x128xbf16, #tpu.memory_space<vmem>>, vector<1x4x128xbf16>
    %24 = vector.shape_cast %23 : vector<1x4x128xbf16> to vector<4x128xbf16>
    %cst_23 = arith.constant dense<0.000000e+00> : vector<288x128xf32>
    %25 = tpu.matmul %21, %24, %cst_23 {dimension_numbers = #tpu.dot_dimension_numbers<[1], [0], [0], [1], [0, 0, 1, 1], [], []>} : vector<288x4xbf16>, vector<4x128xbf16>, vector<288x128xf32> -> vector<288x128xf32>
    %26 = arith.addf %22, %25 : vector<288x128xf32>
    %c0_24 = arith.constant 0 : index
    %c0_25 = arith.constant 0 : index
    %27 = vector.load %arg5[%c0_24, %c0_25] : memref<288x128xf32, #tpu.memory_space<vmem>>, vector<288x128xf32>
    tpu.vector_store %arg5[%c0_24, %c0_25], %26 {strides = array<i32>} : memref<288x128xf32, #tpu.memory_space<vmem>>, vector<288x128xf32>,
    %28 = vector.extract_strided_slice %3 {offsets = [18, 0], sizes = [288, 4], strides = [1, 1]} : vector<326x4xf32> to vector<288x4xf32>
    %29 = arith.truncf %28 : vector<288x4xf32> to vector<288x4xbf16>
    %c0_26 = arith.constant 0 : index
    %c0_27 = arith.constant 0 : index
    %30 = vector.load %arg5[%c0_26, %c0_27] : memref<288x128xf32, #tpu.memory_space<vmem>>, vector<288x128xf32>
    %c3 = arith.constant 3 : index
    %c0_28 = arith.constant 0 : index
    %c0_29 = arith.constant 0 : index
    %31 = vector.load %arg2[%c3, %c0_28, %c0_29] : memref<9x4x128xbf16, #tpu.memory_space<vmem>>, vector<1x4x128xbf16>
    %32 = vector.shape_cast %31 : vector<1x4x128xbf16> to vector<4x128xbf16>
    %cst_30 = arith.constant dense<0.000000e+00> : vector<288x128xf32>
    %33 = tpu.matmul %29, %32, %cst_30 {dimension_numbers = #tpu.dot_dimension_numbers<[1], [0], [0], [1], [0, 0, 1, 1], [], []>} : vector<288x4xbf16>, vector<4x128xbf16>, vector<288x128xf32> -> vector<288x128xf32>
    %34 = arith.addf %30, %33 : vector<288x128xf32>
    %c0_31 = arith.constant 0 : index
    %c0_32 = arith.constant 0 : index
    %35 = vector.load %arg5[%c0_31, %c0_32] : memref<288x128xf32, #tpu.memory_space<vmem>>, vector<288x128xf32>
    tpu.vector_store %arg5[%c0_31, %c0_32], %34 {strides = array<i32>} : memref<288x128xf32, #tpu.memory_space<vmem>>, vector<288x128xf32>,
    %36 = vector.extract_strided_slice %3 {offsets = [19, 0], sizes = [288, 4], strides = [1, 1]} : vector<326x4xf32> to vector<288x4xf32>
    %37 = arith.truncf %36 : vector<288x4xf32> to vector<288x4xbf16>
    %c0_33 = arith.constant 0 : index
    %c0_34 = arith.constant 0 : index
    %38 = vector.load %arg5[%c0_33, %c0_34] : memref<288x128xf32, #tpu.memory_space<vmem>>, vector<288x128xf32>
    %c4 = arith.constant 4 : index
    %c0_35 = arith.constant 0 : index
    %c0_36 = arith.constant 0 : index
    %39 = vector.load %arg2[%c4, %c0_35, %c0_36] : memref<9x4x128xbf16, #tpu.memory_space<vmem>>, vector<1x4x128xbf16>
    %40 = vector.shape_cast %39 : vector<1x4x128xbf16> to vector<4x128xbf16>
    %cst_37 = arith.constant dense<0.000000e+00> : vector<288x128xf32>
    %41 = tpu.matmul %37, %40, %cst_37 {dimension_numbers = #tpu.dot_dimension_numbers<[1], [0], [0], [1], [0, 0, 1, 1], [], []>} : vector<288x4xbf16>, vector<4x128xbf16>, vector<288x128xf32> -> vector<288x128xf32>
    %42 = arith.addf %38, %41 : vector<288x128xf32>
    %c0_38 = arith.constant 0 : index
    %c0_39 = arith.constant 0 : index
    %43 = vector.load %arg5[%c0_38, %c0_39] : memref<288x128xf32, #tpu.memory_space<vmem>>, vector<288x128xf32>
    tpu.vector_store %arg5[%c0_38, %c0_39], %42 {strides = array<i32>} : memref<288x128xf32, #tpu.memory_space<vmem>>, vector<288x128xf32>,
    %44 = vector.extract_strided_slice %3 {offsets = [20, 0], sizes = [288, 4], strides = [1, 1]} : vector<326x4xf32> to vector<288x4xf32>
    %45 = arith.truncf %44 : vector<288x4xf32> to vector<288x4xbf16>
    %c0_40 = arith.constant 0 : index
    %c0_41 = arith.constant 0 : index
    %46 = vector.load %arg5[%c0_40, %c0_41] : memref<288x128xf32, #tpu.memory_space<vmem>>, vector<288x128xf32>
    %c5 = arith.constant 5 : index
    %c0_42 = arith.constant 0 : index
    %c0_43 = arith.constant 0 : index
    %47 = vector.load %arg2[%c5, %c0_42, %c0_43] : memref<9x4x128xbf16, #tpu.memory_space<vmem>>, vector<1x4x128xbf16>
    %48 = vector.shape_cast %47 : vector<1x4x128xbf16> to vector<4x128xbf16>
    %cst_44 = arith.constant dense<0.000000e+00> : vector<288x128xf32>
    %49 = tpu.matmul %45, %48, %cst_44 {dimension_numbers = #tpu.dot_dimension_numbers<[1], [0], [0], [1], [0, 0, 1, 1], [], []>} : vector<288x4xbf16>, vector<4x128xbf16>, vector<288x128xf32> -> vector<288x128xf32>
    %50 = arith.addf %46, %49 : vector<288x128xf32>
    %c0_45 = arith.constant 0 : index
    %c0_46 = arith.constant 0 : index
    %51 = vector.load %arg5[%c0_45, %c0_46] : memref<288x128xf32, #tpu.memory_space<vmem>>, vector<288x128xf32>
    tpu.vector_store %arg5[%c0_45, %c0_46], %50 {strides = array<i32>} : memref<288x128xf32, #tpu.memory_space<vmem>>, vector<288x128xf32>,
    %52 = vector.extract_strided_slice %3 {offsets = [36, 0], sizes = [288, 4], strides = [1, 1]} : vector<326x4xf32> to vector<288x4xf32>
    %53 = arith.truncf %52 : vector<288x4xf32> to vector<288x4xbf16>
    %c0_47 = arith.constant 0 : index
    %c0_48 = arith.constant 0 : index
    %54 = vector.load %arg5[%c0_47, %c0_48] : memref<288x128xf32, #tpu.memory_space<vmem>>, vector<288x128xf32>
    %c6 = arith.constant 6 : index
    %c0_49 = arith.constant 0 : index
    %c0_50 = arith.constant 0 : index
    %55 = vector.load %arg2[%c6, %c0_49, %c0_50] : memref<9x4x128xbf16, #tpu.memory_space<vmem>>, vector<1x4x128xbf16>
    %56 = vector.shape_cast %55 : vector<1x4x128xbf16> to vector<4x128xbf16>
    %cst_51 = arith.constant dense<0.000000e+00> : vector<288x128xf32>
    %57 = tpu.matmul %53, %56, %cst_51 {dimension_numbers = #tpu.dot_dimension_numbers<[1], [0], [0], [1], [0, 0, 1, 1], [], []>} : vector<288x4xbf16>, vector<4x128xbf16>, vector<288x128xf32> -> vector<288x128xf32>
    %58 = arith.addf %54, %57 : vector<288x128xf32>
    %c0_52 = arith.constant 0 : index
    %c0_53 = arith.constant 0 : index
    %59 = vector.load %arg5[%c0_52, %c0_53] : memref<288x128xf32, #tpu.memory_space<vmem>>, vector<288x128xf32>
    tpu.vector_store %arg5[%c0_52, %c0_53], %58 {strides = array<i32>} : memref<288x128xf32, #tpu.memory_space<vmem>>, vector<288x128xf32>,
    %60 = vector.extract_strided_slice %3 {offsets = [37, 0], sizes = [288, 4], strides = [1, 1]} : vector<326x4xf32> to vector<288x4xf32>
    %61 = arith.truncf %60 : vector<288x4xf32> to vector<288x4xbf16>
    %c0_54 = arith.constant 0 : index
    %c0_55 = arith.constant 0 : index
    %62 = vector.load %arg5[%c0_54, %c0_55] : memref<288x128xf32, #tpu.memory_space<vmem>>, vector<288x128xf32>
    %c7 = arith.constant 7 : index
    %c0_56 = arith.constant 0 : index
    %c0_57 = arith.constant 0 : index
    %63 = vector.load %arg2[%c7, %c0_56, %c0_57] : memref<9x4x128xbf16, #tpu.memory_space<vmem>>, vector<1x4x128xbf16>
    %64 = vector.shape_cast %63 : vector<1x4x128xbf16> to vector<4x128xbf16>
    %cst_58 = arith.constant dense<0.000000e+00> : vector<288x128xf32>
    %65 = tpu.matmul %61, %64, %cst_58 {dimension_numbers = #tpu.dot_dimension_numbers<[1], [0], [0], [1], [0, 0, 1, 1], [], []>} : vector<288x4xbf16>, vector<4x128xbf16>, vector<288x128xf32> -> vector<288x128xf32>
    %66 = arith.addf %62, %65 : vector<288x128xf32>
    %c0_59 = arith.constant 0 : index
    %c0_60 = arith.constant 0 : index
    %67 = vector.load %arg5[%c0_59, %c0_60] : memref<288x128xf32, #tpu.memory_space<vmem>>, vector<288x128xf32>
    tpu.vector_store %arg5[%c0_59, %c0_60], %66 {strides = array<i32>} : memref<288x128xf32, #tpu.memory_space<vmem>>, vector<288x128xf32>,
    %68 = vector.extract_strided_slice %3 {offsets = [38, 0], sizes = [288, 4], strides = [1, 1]} : vector<326x4xf32> to vector<288x4xf32>
    %69 = arith.truncf %68 : vector<288x4xf32> to vector<288x4xbf16>
    %c0_61 = arith.constant 0 : index
    %c0_62 = arith.constant 0 : index
    %70 = vector.load %arg5[%c0_61, %c0_62] : memref<288x128xf32, #tpu.memory_space<vmem>>, vector<288x128xf32>
    %c8 = arith.constant 8 : index
    %c0_63 = arith.constant 0 : index
    %c0_64 = arith.constant 0 : index
    %71 = vector.load %arg2[%c8, %c0_63, %c0_64] : memref<9x4x128xbf16, #tpu.memory_space<vmem>>, vector<1x4x128xbf16>
    %72 = vector.shape_cast %71 : vector<1x4x128xbf16> to vector<4x128xbf16>
    %cst_65 = arith.constant dense<0.000000e+00> : vector<288x128xf32>
    %73 = tpu.matmul %69, %72, %cst_65 {dimension_numbers = #tpu.dot_dimension_numbers<[1], [0], [0], [1], [0, 0, 1, 1], [], []>} : vector<288x4xbf16>, vector<4x128xbf16>, vector<288x128xf32> -> vector<288x128xf32>
    %74 = arith.addf %70, %73 : vector<288x128xf32>
    %c0_66 = arith.constant 0 : index
    %c0_67 = arith.constant 0 : index
    %75 = vector.load %arg5[%c0_66, %c0_67] : memref<288x128xf32, #tpu.memory_space<vmem>>, vector<288x128xf32>
    tpu.vector_store %arg5[%c0_66, %c0_67], %74 {strides = array<i32>} : memref<288x128xf32, #tpu.memory_space<vmem>>, vector<288x128xf32>,
    %c0_68 = arith.constant 0 : index
    %c0_69 = arith.constant 0 : index
    %76 = vector.load %arg5[%c0_68, %c0_69] : memref<288x128xf32, #tpu.memory_space<vmem>>, vector<288x128xf32>
    %c0_70 = arith.constant 0 : index
    %c0_71 = arith.constant 0 : index
    %77 = vector.load %arg3[%c0_70, %c0_71] : memref<1x128xf32, #tpu.memory_space<vmem>>, vector<1x128xf32>
    %78 = vector.broadcast %77 : vector<1x128xf32> to vector<288x128xf32>
    %79 = arith.addf %76, %78 : vector<288x128xf32>
    %c0_72 = arith.constant 0 : index
    %c0_73 = arith.constant 0 : index
    %c0_74 = arith.constant 0 : index
    %80 = vector.load %arg4[%c0_72, %c0_73, %c0_74] : memref<1x288x128xf32, #tpu.memory_space<vmem>>, vector<1x288x128xf32>
    %81 = vector.shape_cast %80 : vector<1x288x128xf32> to vector<288x128xf32>
    %82 = vector.shape_cast %79 : vector<288x128xf32> to vector<1x288x128xf32>
    tpu.vector_store %arg4[%c0_72, %c0_73, %c0_74], %82 {strides = array<i32>} : memref<1x288x128xf32, #tpu.memory_space<vmem>>, vector<1x288x128xf32>,
    return
  }
  func.func @transform_0(%arg0: i32) -> (i32, i32, i32) {
    %c0_i32 = arith.constant 0 : i32
    %c0_i32_0 = arith.constant 0 : i32
    %c0_i32_1 = arith.constant 0 : i32
    return %arg0, %c0_i32, %c0_i32_0 : i32, i32, i32
  }
  func.func @transform_1(%arg0: i32) -> (i32, i32, i32) {
    %c0_i32 = arith.constant 0 : i32
    %c0_i32_0 = arith.constant 0 : i32
    %c0_i32_1 = arith.constant 0 : i32
    %c0_i32_2 = arith.constant 0 : i32
    return %c0_i32, %c0_i32_0, %c0_i32_1 : i32, i32, i32
  }
  func.func @transform_2(%arg0: i32) -> (i32, i32) {
    %c0_i32 = arith.constant 0 : i32
    %c0_i32_0 = arith.constant 0 : i32
    %c0_i32_1 = arith.constant 0 : i32
    return %c0_i32, %c0_i32_0 : i32, i32
  }
  func.func @transform_3(%arg0: i32) -> (i32, i32, i32) {
    %c0_i32 = arith.constant 0 : i32
    %c0_i32_0 = arith.constant 0 : i32
    %c0_i32_1 = arith.constant 0 : i32
    return %arg0, %c0_i32, %c0_i32_0 : i32, i32, i32
  }
}

</mosaic_0001>

<llo_original>
// kernel: asyconv_forward.1
$region0: #{asyconv_forward.1}
  #allocation0 [shape = 'u32[]', space=smem, size = 0x4, offset = 0x4, fixed_abs, tag = 'smem constant byte address 0x4 - core index']
  #allocation1 [shape = 'u32[72,128]{1,0:T(1,128)}', space=vmem, size = 0x9000, scoped, tag = 'internal scratch']
  #allocation2 [shape = 'f32[288,128]{1,0:T(8,128)}', space=vmem, size = 0x24000, scoped, tag = 'scratch operand']
  %s0 = inlined_call_operand.vmem [shape: f32[2,326,4], index: 0, kind: input, shape index: {}]
  %s1 = inlined_call_operand.vmem [shape: bf16[9,4,128], index: 1, kind: input, shape index: {}]
  %s2 = inlined_call_operand.vmem [shape: f32[1,128], index: 2, kind: input, shape index: {}]
  %s3 = inlined_call_operand.vmem [shape: f32[2,288,128], index: 3, kind: output, shape index: {}]
  %s4 = sld [smem:[#allocation0]]
  $region45: #{asyconv_forward.1} parent=0
    _
  %s6 = ssub.s32 1, %s4
  %s7 = scalar_select 0, %s6, %s4
  loop: start=0, step=1, limit=4
  $region2: #{asyconv_forward.1} parent=0 // loop_pre_header
    _
  $region3: #{asyconv_forward.1} parent=0 // loop_header
    %s9 = sphi 0, %s13
    %p10 = scmp.ge.s32.totalorder %s9, 4
    %s19 = sphi 0, %s21
    %s22 = sphi 0, %s19
    %s23 = sphi 0, %s22
    %s39 = sphi 0, %s23
    %s43 = sphi 0, %s43
    %s45 = sphi 0, %s43
    %s46 = sphi 0, %s45
    %s60 = sphi 0, %s46
    %s64 = sphi 0, %s64
    %s66 = sphi 0, %s64
    %s67 = sphi 0, %s66
    %s81 = sphi 0, %s67
    %s87 = sphi 0, %s89
    %s90 = sphi 0, %s87
    %s91 = sphi 0, %s90
    %s107 = sphi 0, %s91
  $region4: #{asyconv_forward.1} parent=0 // loop_header_branch
    %12 = sbr.rel (%p10) target = $region8
  $region5: #{asyconv_forward.1} parent=0 // loop_body
    %s14 = ssub.s32 %s9, 1
    %s15 = ssub.s32 %s9, 2
    %s16 = sadd.s32 %s9, 1
    %s17 = ssub.s32 %s9, %s16
    %p18 = scmp.eq.s32.totalorder %s17, 0
    %s20 = sadd.s32 %s19, 1
    %s21 = scalar_select %p18, %s19, %s20
    %p24 = pneg %p18
    %p25 = scmp.eq.s32.totalorder %s9, 1
    %p26 = por %p24, %p25
    %p27 = scmp.ne.s32.totalorder %s19, %s22
    %p28 = scmp.eq.s32.totalorder %s9, 0
    %p29 = por %p27, %p28
    %p30 = scmp.ne.s32.totalorder %s19, %s22
    %p31 = scmp.eq.s32.totalorder %s14, 1
    %p32 = por %p30, %p31
    %p33 = scmp.ne.s32.totalorder %s22, %s23
    %p34 = scmp.eq.s32.totalorder %s14, 0
    %p35 = por %p33, %p34
    %p36 = scmp.ne.s32.totalorder %s22, %s23
    %p37 = scmp.eq.s32.totalorder %s15, 1
    %p38 = por %p36, %p37
    %p40 = scmp.ne.s32.totalorder %s23, %s39
    %p41 = scmp.eq.s32.totalorder %s15, 0
    %p42 = por %p40, %p41
    %s44 = sadd.s32 %s43, 1
    %p47 = scmp.eq.s32.totalorder %s9, 1
    %p48 = scmp.ne.s32.totalorder %s43, %s45
    %p49 = scmp.eq.s32.totalorder %s9, 0
    %p50 = por %p48, %p49
    %p51 = scmp.ne.s32.totalorder %s43, %s45
    %p52 = scmp.eq.s32.totalorder %s14, 1
    %p53 = por %p51, %p52
    %p54 = scmp.ne.s32.totalorder %s45, %s46
    %p55 = scmp.eq.s32.totalorder %s14, 0
    %p56 = por %p54, %p55
    %p57 = scmp.ne.s32.totalorder %s45, %s46
    %p58 = scmp.eq.s32.totalorder %s15, 1
    %p59 = por %p57, %p58
    %p61 = scmp.ne.s32.totalorder %s46, %s60
    %p62 = scmp.eq.s32.totalorder %s15, 0
    %p63 = por %p61, %p62
    %s65 = sadd.s32 %s64, 1
    %p68 = scmp.eq.s32.totalorder %s9, 1
    %p69 = scmp.ne.s32.totalorder %s64, %s66
    %p70 = scmp.eq.s32.totalorder %s9, 0
    %p71 = por %p69, %p70
    %p72 = scmp.ne.s32.totalorder %s64, %s66
    %p73 = scmp.eq.s32.totalorder %s14, 1
    %p74 = por %p72, %p73
    %p75 = scmp.ne.s32.totalorder %s66, %s67
    %p76 = scmp.eq.s32.totalorder %s14, 0
    %p77 = por %p75, %p76
    %p78 = scmp.ne.s32.totalorder %s66, %s67
    %p79 = scmp.eq.s32.totalorder %s15, 1
    %p80 = por %p78, %p79
    %p82 = scmp.ne.s32.totalorder %s67, %s81
    %p83 = scmp.eq.s32.totalorder %s15, 0
    %p84 = por %p82, %p83
    %s85 = ssub.s32 %s9, %s16
    %p86 = scmp.eq.s32.totalorder %s85, 0
    %s88 = sadd.s32 %s87, 1
    %s89 = scalar_select %p86, %s87, %s88
    %p92 = pneg %p86
    %p93 = scmp.eq.s32.totalorder %s9, 1
    %p94 = por %p92, %p93
    %p95 = scmp.ne.s32.totalorder %s87, %s90
    %p96 = scmp.eq.s32.totalorder %s9, 0
    %p97 = por %p95, %p96
    %p98 = scmp.ne.s32.totalorder %s87, %s90
    %p99 = scmp.eq.s32.totalorder %s14, 1
    %p100 = por %p98, %p99
    %p101 = scmp.ne.s32.totalorder %s90, %s91
    %p102 = scmp.eq.s32.totalorder %s14, 0
    %p103 = por %p101, %p102
    %p104 = scmp.ne.s32.totalorder %s90, %s91
    %p105 = scmp.eq.s32.totalorder %s15, 1
    %p106 = por %p104, %p105
    %p108 = scmp.ne.s32.totalorder %s91, %s107
    %p109 = scmp.eq.s32.totalorder %s15, 0
    %p110 = por %p108, %p109
    %p111 = scmp.le.s32.totalorder 1, %s9
    %p112 = scmp.lt.s32.totalorder %s9, 3
    %p113 = pnand %p111, %p112
    %p114 = pneg %p113
    // Predicated region
    $region9: #{asyconv_forward.1} parent=5 // pred_check
      _
    $region10: #{asyconv_forward.1} parent=5 // pred_check_branch
      %116 = sbr.rel (%p113) target = $region12
    $region11: #{asyconv_forward.1} parent=5 // pred_region
      %s117 = ssub.s32 %s9, 1
      // Predicated region
      $region13: #{asyconv_forward.1} parent=11 // pred_check
        %p118 = pneg %p56
      $region14: #{asyconv_forward.1} parent=11 // pred_check_branch
        %120 = sbr.rel (%p118) target = $region16
      $region15: #{asyconv_forward.1} parent=11 // pred_region
        _
      $region16: #{asyconv_forward.1} parent=11 // pred_fallthru
        _
      // Predicated region
      $region17: #{asyconv_forward.1} parent=11 // pred_check
        %p121 = pneg %p77
      $region18: #{asyconv_forward.1} parent=11 // pred_check_branch
        %123 = sbr.rel (%p121) target = $region20
      $region19: #{asyconv_forward.1} parent=11 // pred_region
        _
      $region20: #{asyconv_forward.1} parent=11 // pred_fallthru
        _
    $region12: #{asyconv_forward.1} parent=5 // pred_fallthru
      _
    %p124 = scmp.lt.s32.totalorder %s9, 2
    // Predicated region
    $region21: #{asyconv_forward.1} parent=5 // pred_check
      %p125 = pneg %p124
    $region22: #{asyconv_forward.1} parent=5 // pred_check_branch
      %127 = sbr.rel (%p125) target = $region24
    $region23: #{asyconv_forward.1} parent=5 // pred_region
      // Predicated region
      $region25: #{asyconv_forward.1} parent=23 // pred_check
        %p128 = pneg %p29
      $region26: #{asyconv_forward.1} parent=23 // pred_check_branch
        %130 = sbr.rel (%p128) target = $region28
      $region27: #{asyconv_forward.1} parent=23 // pred_region
        %p131 = scmp.lt.s32.totalorder %s9, 1
        %s132 = scalar_select %p131, %s9, 1
        %s133 = smul.addr %s132, 41
        %s134 = smul.addr %s133, 8
        %s135 = scalar_lea.vmem %s0, %s134
      $region28: #{asyconv_forward.1} parent=23 // pred_fallthru
        _
    $region24: #{asyconv_forward.1} parent=5 // pred_fallthru
      _
    %p136 = scmp.le.s32.totalorder 1, %s9
    %p137 = scmp.lt.s32.totalorder %s9, 3
    %p138 = pnand %p136, %p137
    %p139 = pneg %p138
    // Predicated region
    $region29: #{asyconv_forward.1} parent=5 // pred_check
      _
    $region30: #{asyconv_forward.1} parent=5 // pred_check_branch
      %141 = sbr.rel (%p138) target = $region32
    $region31: #{asyconv_forward.1} parent=5 // pred_region
      %s142 = ssub.s32 %s9, 1
      %p143 = scmp.lt.s32.totalorder %s14, 1
      %s144 = scalar_select %p143, %s14, 1
      %s145 = smul.addr %s144, 41
      %s146 = smul.addr %s145, 8
      %s147 = scalar_lea.vmem %s0, %s146
      %p148 = pneg %p35
      %p149 = pneg %p32
      %p150 = pneg %p56
      %p151 = pneg %p53
      %p152 = pneg %p77
      %p153 = pneg %p74
      %p154 = pneg %p103
      %p155 = pneg %p100
      %p156 = scmp.lt.s32.totalorder %s14, 1
      %s157 = scalar_select %p156, %s14, 1
      %s158 = smul.addr %s157, 36
      %s159 = smul.addr %s158, 8
      %s160 = scalar_lea.vmem %s3, %s159
      %p161 = scmp.lt.s32.totalorder %s14, 1
      %s162 = scalar_select %p161, %s14, 1
      %s163 = smul.addr %s162, 41
      %s164 = smul.addr %s163, 8
      %s165 = scalar_lea.vmem %s0, %s164
      %p166 = scmp.lt.s32.totalorder %s14, 1
      %s167 = scalar_select %p166, %s14, 1
      %s168 = smul.addr %s167, 36
      %s169 = smul.addr %s168, 8
      %s170 = scalar_lea.vmem %s3, %s169
      %172 = vst [vmem:[#allocation2] sm:$0xff] 0.0
      %173 = vst [vmem:[#allocation2 + $0x8] sm:$0xff] 0.0
      %174 = vst [vmem:[#allocation2 + $0x10] sm:$0xff] 0.0
      %175 = vst [vmem:[#allocation2 + $0x18] sm:$0xff] 0.0
      %176 = vst [vmem:[#allocation2 + $0x20] sm:$0xff] 0.0
      %177 = vst [vmem:[#allocation2 + $0x28] sm:$0xff] 0.0
      %178 = vst [vmem:[#allocation2 + $0x30] sm:$0xff] 0.0
      %179 = vst [vmem:[#allocation2 + $0x38] sm:$0xff] 0.0
      %180 = vst [vmem:[#allocation2 + $0x40] sm:$0xff] 0.0
      %181 = vst [vmem:[#allocation2 + $0x48] sm:$0xff] 0.0
      %182 = vst [vmem:[#allocation2 + $0x50] sm:$0xff] 0.0
      %183 = vst [vmem:[#allocation2 + $0x58] sm:$0xff] 0.0
      %184 = vst [vmem:[#allocation2 + $0x60] sm:$0xff] 0.0
      %185 = vst [vmem:[#allocation2 + $0x68] sm:$0xff] 0.0
      %186 = vst [vmem:[#allocation2 + $0x70] sm:$0xff] 0.0
      %187 = vst [vmem:[#allocation2 + $0x78] sm:$0xff] 0.0
      %188 = vst [vmem:[#allocation2 + $0x80] sm:$0xff] 0.0
      %189 = vst [vmem:[#allocation2 + $0x88] sm:$0xff] 0.0
      %190 = vst [vmem:[#allocation2 + $0x90] sm:$0xff] 0.0
      %191 = vst [vmem:[#allocation2 + $0x98] sm:$0xff] 0.0
      %192 = vst [vmem:[#allocation2 + $0xa0] sm:$0xff] 0.0
      %193 = vst [vmem:[#allocation2 + $0xa8] sm:$0xff] 0.0
      %194 = vst [vmem:[#allocation2 + $0xb0] sm:$0xff] 0.0
      %195 = vst [vmem:[#allocation2 + $0xb8] sm:$0xff] 0.0
      %196 = vst [vmem:[#allocation2 + $0xc0] sm:$0xff] 0.0
      %197 = vst [vmem:[#allocation2 + $0xc8] sm:$0xff] 0.0
      %198 = vst [vmem:[#allocation2 + $0xd0] sm:$0xff] 0.0
      %199 = vst [vmem:[#allocation2 + $0xd8] sm:$0xff] 0.0
      %200 = vst [vmem:[#allocation2 + $0xe0] sm:$0xff] 0.0
      %201 = vst [vmem:[#allocation2 + $0xe8] sm:$0xff] 0.0
      %202 = vst [vmem:[#allocation2 + $0xf0] sm:$0xff] 0.0
      %203 = vst [vmem:[#allocation2 + $0xf8] sm:$0xff] 0.0
      %204 = vst [vmem:[#allocation2 + $0x100] sm:$0xff] 0.0
      %205 = vst [vmem:[#allocation2 + $0x108] sm:$0xff] 0.0
      %206 = vst [vmem:[#allocation2 + $0x110] sm:$0xff] 0.0
      %207 = vst [vmem:[#allocation2 + $0x118] sm:$0xff] 0.0
      %v208 = vld [vmem:[%s165] sm:$0xff]
      %v209 = vld [vmem:[%s165 + $0x8] sm:$0xff]
      %v210 = vld [vmem:[%s165 + $0x10] sm:$0xff]
      %v211 = vld [vmem:[%s165 + $0x18] sm:$0xff]
      %v212 = vld [vmem:[%s165 + $0x20] sm:$0xff]
      %v213 = vld [vmem:[%s165 + $0x28] sm:$0xff]
      %v214 = vld [vmem:[%s165 + $0x30] sm:$0xff]
      %v215 = vld [vmem:[%s165 + $0x38] sm:$0xff]
      %v216 = vld [vmem:[%s165 + $0x40] sm:$0xff]
      %v217 = vld [vmem:[%s165 + $0x48] sm:$0xff]
      %v218 = vld [vmem:[%s165 + $0x50] sm:$0xff]
      %v219 = vld [vmem:[%s165 + $0x58] sm:$0xff]
      %v220 = vld [vmem:[%s165 + $0x60] sm:$0xff]
      %v221 = vld [vmem:[%s165 + $0x68] sm:$0xff]
      %v222 = vld [vmem:[%s165 + $0x70] sm:$0xff]
      %v223 = vld [vmem:[%s165 + $0x78] sm:$0xff]
      %v224 = vld [vmem:[%s165 + $0x80] sm:$0xff]
      %v225 = vld [vmem:[%s165 + $0x88] sm:$0xff]
      %v226 = vld [vmem:[%s165 + $0x90] sm:$0xff]
      %v227 = vld [vmem:[%s165 + $0x98] sm:$0xff]
      %v228 = vld [vmem:[%s165 + $0xa0] sm:$0xff]
      %v229 = vld [vmem:[%s165 + $0xa8] sm:$0xff]
      %v230 = vld [vmem:[%s165 + $0xb0] sm:$0xff]
      %v231 = vld [vmem:[%s165 + $0xb8] sm:$0xff]
      %v232 = vld [vmem:[%s165 + $0xc0] sm:$0xff]
      %v233 = vld [vmem:[%s165 + $0xc8] sm:$0xff]
      %v234 = vld [vmem:[%s165 + $0xd0] sm:$0xff]
      %v235 = vld [vmem:[%s165 + $0xd8] sm:$0xff]
      %v236 = vld [vmem:[%s165 + $0xe0] sm:$0xff]
      %v237 = vld [vmem:[%s165 + $0xe8] sm:$0xff]
      %v238 = vld [vmem:[%s165 + $0xf0] sm:$0xff]
      %v239 = vld [vmem:[%s165 + $0xf8] sm:$0xff]
      %v240 = vld [vmem:[%s165 + $0x100] sm:$0xff]
      %v241 = vld [vmem:[%s165 + $0x108] sm:$0xff]
      %v242 = vld [vmem:[%s165 + $0x110] sm:$0xff]
      %v243 = vld [vmem:[%s165 + $0x118] sm:$0xff]
      %v244 = vld [vmem:[%s165 + $0x120] sm:$0xff]
      %v245 = vld [vmem:[%s165 + $0x128] sm:$0xff]
      %v246 = vld [vmem:[%s165 + $0x130] sm:$0xff]
      %v247 = vld [vmem:[%s165 + $0x138] sm:$0xff]
      %v248 = vld [vmem:[%s165 + $0x140] sm:$0x3f]
      %v249 = vpack.c.bf16 %v209, %v208
      %v250 = vpack.c.bf16 %v211, %v210
      %v251 = vpack.c.bf16 %v213, %v212
      %v252 = vpack.c.bf16 %v215, %v214
      %v253 = vpack.c.bf16 %v217, %v216
      %v254 = vpack.c.bf16 %v219, %v218
      %v255 = vpack.c.bf16 %v221, %v220
      %v256 = vpack.c.bf16 %v223, %v222
      %v257 = vpack.c.bf16 %v225, %v224
      %v258 = vpack.c.bf16 %v227, %v226
      %v259 = vpack.c.bf16 %v229, %v228
      %v260 = vpack.c.bf16 %v231, %v230
      %v261 = vpack.c.bf16 %v233, %v232
      %v262 = vpack.c.bf16 %v235, %v234
      %v263 = vpack.c.bf16 %v237, %v236
      %v264 = vpack.c.bf16 %v239, %v238
      %v265 = vpack.c.bf16 %v241, %v240
      %v266 = vpack.c.bf16 %v243, %v242
      %v267 = vld [vmem:[#allocation2] sm:$0xff]
      %v268 = vld [vmem:[#allocation2 + $0x8] sm:$0xff]
      %v269 = vld [vmem:[#allocation2 + $0x10] sm:$0xff]
      %v270 = vld [vmem:[#allocation2 + $0x18] sm:$0xff]
      %v271 = vld [vmem:[#allocation2 + $0x20] sm:$0xff]
      %v272 = vld [vmem:[#allocation2 + $0x28] sm:$0xff]
      %v273 = vld [vmem:[#allocation2 + $0x30] sm:$0xff]
      %v274 = vld [vmem:[#allocation2 + $0x38] sm:$0xff]
      %v275 = vld [vmem:[#allocation2 + $0x40] sm:$0xff]
      %v276 = vld [vmem:[#allocation2 + $0x48] sm:$0xff]
      %v277 = vld [vmem:[#allocation2 + $0x50] sm:$0xff]
      %v278 = vld [vmem:[#allocation2 + $0x58] sm:$0xff]
      %v279 = vld [vmem:[#allocation2 + $0x60] sm:$0xff]
      %v280 = vld [vmem:[#allocation2 + $0x68] sm:$0xff]
      %v281 = vld [vmem:[#allocation2 + $0x70] sm:$0xff]
      %v282 = vld [vmem:[#allocation2 + $0x78] sm:$0xff]
      %v283 = vld [vmem:[#allocation2 + $0x80] sm:$0xff]
      %v284 = vld [vmem:[#allocation2 + $0x88] sm:$0xff]
      %v285 = vld [vmem:[#allocation2 + $0x90] sm:$0xff]
      %v286 = vld [vmem:[#allocation2 + $0x98] sm:$0xff]
      %v287 = vld [vmem:[#allocation2 + $0xa0] sm:$0xff]
      %v288 = vld [vmem:[#allocation2 + $0xa8] sm:$0xff]
      %v289 = vld [vmem:[#allocation2 + $0xb0] sm:$0xff]
      %v290 = vld [vmem:[#allocation2 + $0xb8] sm:$0xff]
      %v291 = vld [vmem:[#allocation2 + $0xc0] sm:$0xff]
      %v292 = vld [vmem:[#allocation2 + $0xc8] sm:$0xff]
      %v293 = vld [vmem:[#allocation2 + $0xd0] sm:$0xff]
      %v294 = vld [vmem:[#allocation2 + $0xd8] sm:$0xff]
      %v295 = vld [vmem:[#allocation2 + $0xe0] sm:$0xff]
      %v296 = vld [vmem:[#allocation2 + $0xe8] sm:$0xff]
      %v297 = vld [vmem:[#allocation2 + $0xf0] sm:$0xff]
      %v298 = vld [vmem:[#allocation2 + $0xf8] sm:$0xff]
      %v299 = vld [vmem:[#allocation2 + $0x100] sm:$0xff]
      %v300 = vld [vmem:[#allocation2 + $0x108] sm:$0xff]
      %v301 = vld [vmem:[#allocation2 + $0x110] sm:$0xff]
      %v302 = vld [vmem:[#allocation2 + $0x118] sm:$0xff]
      %v303 = vld [vmem:[%s1] sm:$0x3]
      %vm304 = vcmask 31744
      %v306 = vsel %vm304, %v249, 0
      %v309 = vsel %vm304, %v250, 0
      %v312 = vsel %vm304, %v251, 0
      %v315 = vsel %vm304, %v252, 0
      %v318 = vsel %vm304, %v253, 0
      %v321 = vsel %vm304, %v254, 0
      %v324 = vsel %vm304, %v255, 0
      %v327 = vsel %vm304, %v256, 0
      %v330 = vsel %vm304, %v257, 0
      %v333 = vsel %vm304, %v258, 0
      %v336 = vsel %vm304, %v259, 0
      %v339 = vsel %vm304, %v260, 0
      %v342 = vsel %vm304, %v261, 0
      %v345 = vsel %vm304, %v262, 0
      %v348 = vsel %vm304, %v263, 0
      %v351 = vsel %vm304, %v264, 0
      %v354 = vsel %vm304, %v265, 0
      %v357 = vsel %vm304, %v266, 0
      %vm359 = vcmask 1041408
      %v361 = vsel %vm359, %v303, 0
      %363 = vmatpush.bf16.msra.mxu0 0
      %364 = vmatpush.bf16.msra.mxu0 0
      %365 = vmatpush.bf16.msra.mxu0 0
      %366 = vmatpush.bf16.msra.mxu0 0
      %367 = vmatpush.bf16.msra.mxu0 0
      %368 = vmatpush.bf16.msra.mxu0 0
      %369 = vmatpush.bf16.msra.mxu0 0
      %370 = vmatpush.bf16.msra.mxu0 %v361
      %371 = vmatmul.bf16.gmra.mxu0 %v306
      %v372 = vpop.f32.mrf.mxu0
      %v373 = vadd.f32 0.0, %v372
      %v374 = vpop.f32.mrf.mxu0
      %v375 = vadd.f32 0.0, %v374
      %376 = vmatmul.bf16.gmra.mxu0 %v309
      %v377 = vpop.f32.mrf.mxu0
      %v378 = vadd.f32 0.0, %v377
      %v379 = vpop.f32.mrf.mxu0
      %v380 = vadd.f32 0.0, %v379
      %381 = vmatmul.bf16.gmra.mxu0 %v312
      %v382 = vpop.f32.mrf.mxu0
      %v383 = vadd.f32 0.0, %v382
      %v384 = vpop.f32.mrf.mxu0
      %v385 = vadd.f32 0.0, %v384
      %386 = vmatmul.bf16.gmra.mxu0 %v315
      %v387 = vpop.f32.mrf.mxu0
      %v388 = vadd.f32 0.0, %v387
      %v389 = vpop.f32.mrf.mxu0
      %v390 = vadd.f32 0.0, %v389
      %391 = vmatmul.bf16.gmra.mxu0 %v318
      %v392 = vpop.f32.mrf.mxu0
      %v393 = vadd.f32 0.0, %v392
      %v394 = vpop.f32.mrf.mxu0
      %v395 = vadd.f32 0.0, %v394
      %396 = vmatmul.bf16.gmra.mxu0 %v321
      %v397 = vpop.f32.mrf.mxu0
      %v398 = vadd.f32 0.0, %v397
      %v399 = vpop.f32.mrf.mxu0
      %v400 = vadd.f32 0.0, %v399
      %401 = vmatmul.bf16.gmra.mxu0 %v324
      %v402 = vpop.f32.mrf.mxu0
      %v403 = vadd.f32 0.0, %v402
      %v404 = vpop.f32.mrf.mxu0
      %v405 = vadd.f32 0.0, %v404
      %406 = vmatmul.bf16.gmra.mxu0 %v327
      %v407 = vpop.f32.mrf.mxu0
      %v408 = vadd.f32 0.0, %v407
      %v409 = vpop.f32.mrf.mxu0
      %v410 = vadd.f32 0.0, %v409
      %411 = vmatmul.bf16.gmra.mxu0 %v330
      %v412 = vpop.f32.mrf.mxu0
      %v413 = vadd.f32 0.0, %v412
      %v414 = vpop.f32.mrf.mxu0
      %v415 = vadd.f32 0.0, %v414
      %416 = vmatmul.bf16.gmra.mxu0 %v333
      %v417 = vpop.f32.mrf.mxu0
      %v418 = vadd.f32 0.0, %v417
      %v419 = vpop.f32.mrf.mxu0
      %v420 = vadd.f32 0.0, %v419
      %421 = vmatmul.bf16.gmra.mxu0 %v336
      %v422 = vpop.f32.mrf.mxu0
      %v423 = vadd.f32 0.0, %v422
      %v424 = vpop.f32.mrf.mxu0
      %v425 = vadd.f32 0.0, %v424
      %426 = vmatmul.bf16.gmra.mxu0 %v339
      %v427 = vpop.f32.mrf.mxu0
      %v428 = vadd.f32 0.0, %v427
      %v429 = vpop.f32.mrf.mxu0
      %v430 = vadd.f32 0.0, %v429
      %431 = vmatmul.bf16.gmra.mxu0 %v342
      %v432 = vpop.f32.mrf.mxu0
      %v433 = vadd.f32 0.0, %v432
      %v434 = vpop.f32.mrf.mxu0
      %v435 = vadd.f32 0.0, %v434
      %436 = vmatmul.bf16.gmra.mxu0 %v345
      %v437 = vpop.f32.mrf.mxu0
      %v438 = vadd.f32 0.0, %v437
      %v439 = vpop.f32.mrf.mxu0
      %v440 = vadd.f32 0.0, %v439
      %441 = vmatmul.bf16.gmra.mxu0 %v348
      %v442 = vpop.f32.mrf.mxu0
      %v443 = vadd.f32 0.0, %v442
      %v444 = vpop.f32.mrf.mxu0
      %v445 = vadd.f32 0.0, %v444
      %446 = vmatmul.bf16.gmra.mxu0 %v351
      %v447 = vpop.f32.mrf.mxu0
      %v448 = vadd.f32 0.0, %v447
      %v449 = vpop.f32.mrf.mxu0
      %v450 = vadd.f32 0.0, %v449
      %451 = vmatmul.bf16.gmra.mxu0 %v354
      %v452 = vpop.f32.mrf.mxu0
      %v453 = vadd.f32 0.0, %v452
      %v454 = vpop.f32.mrf.mxu0
      %v455 = vadd.f32 0.0, %v454
      %456 = vmatmul.bf16.gmra.mxu0 %v357
      %v457 = vpop.f32.mrf.mxu0
      %v458 = vadd.f32 0.0, %v457
      %v459 = vpop.f32.mrf.mxu0
      %v460 = vadd.f32 0.0, %v459
      %461 = vdwg.mxu0
      %v462 = vadd.f32 %v267, %v373
      %v463 = vadd.f32 %v268, %v375
      %v464 = vadd.f32 %v269, %v378
      %v465 = vadd.f32 %v270, %v380
      %v466 = vadd.f32 %v271, %v383
      %v467 = vadd.f32 %v272, %v385
      %v468 = vadd.f32 %v273, %v388
      %v469 = vadd.f32 %v274, %v390
      %v470 = vadd.f32 %v275, %v393
      %v471 = vadd.f32 %v276, %v395
      %v472 = vadd.f32 %v277, %v398
      %v473 = vadd.f32 %v278, %v400
      %v474 = vadd.f32 %v279, %v403
      %v475 = vadd.f32 %v280, %v405
      %v476 = vadd.f32 %v281, %v408
      %v477 = vadd.f32 %v282, %v410
      %v478 = vadd.f32 %v283, %v413
      %v479 = vadd.f32 %v284, %v415
      %v480 = vadd.f32 %v285, %v418
      %v481 = vadd.f32 %v286, %v420
      %v482 = vadd.f32 %v287, %v423
      %v483 = vadd.f32 %v288, %v425
      %v484 = vadd.f32 %v289, %v428
      %v485 = vadd.f32 %v290, %v430
      %v486 = vadd.f32 %v291, %v433
      %v487 = vadd.f32 %v292, %v435
      %v488 = vadd.f32 %v293, %v438
      %v489 = vadd.f32 %v294, %v440
      %v490 = vadd.f32 %v295, %v443
      %v491 = vadd.f32 %v296, %v445
      %v492 = vadd.f32 %v297, %v448
      %v493 = vadd.f32 %v298, %v450
      %v494 = vadd.f32 %v299, %v453
      %v495 = vadd.f32 %v300, %v455
      %v496 = vadd.f32 %v301, %v458
      %v497 = vadd.f32 %v302, %v460
      %498 = vst [vmem:[#allocation2] sm:$0xff] %v462
      %499 = vst [vmem:[#allocation2 + $0x8] sm:$0xff] %v463
      %500 = vst [vmem:[#allocation2 + $0x10] sm:$0xff] %v464
      %501 = vst [vmem:[#allocation2 + $0x18] sm:$0xff] %v465
      %502 = vst [vmem:[#allocation2 + $0x20] sm:$0xff] %v466
      %503 = vst [vmem:[#allocation2 + $0x28] sm:$0xff] %v467
      %504 = vst [vmem:[#allocation2 + $0x30] sm:$0xff] %v468
      %505 = vst [vmem:[#allocation2 + $0x38] sm:$0xff] %v469
      %506 = vst [vmem:[#allocation2 + $0x40] sm:$0xff] %v470
      %507 = vst [vmem:[#allocation2 + $0x48] sm:$0xff] %v471
      %508 = vst [vmem:[#allocation2 + $0x50] sm:$0xff] %v472
      %509 = vst [vmem:[#allocation2 + $0x58] sm:$0xff] %v473
      %510 = vst [vmem:[#allocation2 + $0x60] sm:$0xff] %v474
      %511 = vst [vmem:[#allocation2 + $0x68] sm:$0xff] %v475
      %512 = vst [vmem:[#allocation2 + $0x70] sm:$0xff] %v476
      %513 = vst [vmem:[#allocation2 + $0x78] sm:$0xff] %v477
      %514 = vst [vmem:[#allocation2 + $0x80] sm:$0xff] %v478
      %515 = vst [vmem:[#allocation2 + $0x88] sm:$0xff] %v479
      %516 = vst [vmem:[#allocation2 + $0x90] sm:$0xff] %v480
      %517 = vst [vmem:[#allocation2 + $0x98] sm:$0xff] %v481
      %518 = vst [vmem:[#allocation2 + $0xa0] sm:$0xff] %v482
      %519 = vst [vmem:[#allocation2 + $0xa8] sm:$0xff] %v483
      %520 = vst [vmem:[#allocation2 + $0xb0] sm:$0xff] %v484
      %521 = vst [vmem:[#allocation2 + $0xb8] sm:$0xff] %v485
      %522 = vst [vmem:[#allocation2 + $0xc0] sm:$0xff] %v486
      %523 = vst [vmem:[#allocation2 + $0xc8] sm:$0xff] %v487
      %524 = vst [vmem:[#allocation2 + $0xd0] sm:$0xff] %v488
      %525 = vst [vmem:[#allocation2 + $0xd8] sm:$0xff] %v489
      %526 = vst [vmem:[#allocation2 + $0xe0] sm:$0xff] %v490
      %527 = vst [vmem:[#allocation2 + $0xe8] sm:$0xff] %v491
      %528 = vst [vmem:[#allocation2 + $0xf0] sm:$0xff] %v492
      %529 = vst [vmem:[#allocation2 + $0xf8] sm:$0xff] %v493
      %530 = vst [vmem:[#allocation2 + $0x100] sm:$0xff] %v494
      %531 = vst [vmem:[#allocation2 + $0x108] sm:$0xff] %v495
      %532 = vst [vmem:[#allocation2 + $0x110] sm:$0xff] %v496
      %533 = vst [vmem:[#allocation2 + $0x118] sm:$0xff] %v497
      %v534 = vpack.c.bf16 %v244, %v244
      %v535 = vld [vmem:[#allocation2] sm:$0xff]
      %v536 = vld [vmem:[#allocation2 + $0x8] sm:$0xff]
      %v537 = vld [vmem:[#allocation2 + $0x10] sm:$0xff]
      %v538 = vld [vmem:[#allocation2 + $0x18] sm:$0xff]
      %v539 = vld [vmem:[#allocation2 + $0x20] sm:$0xff]
      %v540 = vld [vmem:[#allocation2 + $0x28] sm:$0xff]
      %v541 = vld [vmem:[#allocation2 + $0x30] sm:$0xff]
      %v542 = vld [vmem:[#allocation2 + $0x38] sm:$0xff]
      %v543 = vld [vmem:[#allocation2 + $0x40] sm:$0xff]
      %v544 = vld [vmem:[#allocation2 + $0x48] sm:$0xff]
      %v545 = vld [vmem:[#allocation2 + $0x50] sm:$0xff]
      %v546 = vld [vmem:[#allocation2 + $0x58] sm:$0xff]
      %v547 = vld [vmem:[#allocation2 + $0x60] sm:$0xff]
      %v548 = vld [vmem:[#allocation2 + $0x68] sm:$0xff]
      %v549 = vld [vmem:[#allocation2 + $0x70] sm:$0xff]
      %v550 = vld [vmem:[#allocation2 + $0x78] sm:$0xff]
      %v551 = vld [vmem:[#allocation2 + $0x80] sm:$0xff]
      %v552 = vld [vmem:[#allocation2 + $0x88] sm:$0xff]
      %v553 = vld [vmem:[#allocation2 + $0x90] sm:$0xff]
      %v554 = vld [vmem:[#allocation2 + $0x98] sm:$0xff]
      %v555 = vld [vmem:[#allocation2 + $0xa0] sm:$0xff]
      %v556 = vld [vmem:[#allocation2 + $0xa8] sm:$0xff]
      %v557 = vld [vmem:[#allocation2 + $0xb0] sm:$0xff]
      %v558 = vld [vmem:[#allocation2 + $0xb8] sm:$0xff]
      %v559 = vld [vmem:[#allocation2 + $0xc0] sm:$0xff]
      %v560 = vld [vmem:[#allocation2 + $0xc8] sm:$0xff]
      %v561 = vld [vmem:[#allocation2 + $0xd0] sm:$0xff]
      %v562 = vld [vmem:[#allocation2 + $0xd8] sm:$0xff]
      %v563 = vld [vmem:[#allocation2 + $0xe0] sm:$0xff]
      %v564 = vld [vmem:[#allocation2 + $0xe8] sm:$0xff]
      %v565 = vld [vmem:[#allocation2 + $0xf0] sm:$0xff]
      %v566 = vld [vmem:[#allocation2 + $0xf8] sm:$0xff]
      %v567 = vld [vmem:[#allocation2 + $0x100] sm:$0xff]
      %v568 = vld [vmem:[#allocation2 + $0x108] sm:$0xff]
      %v569 = vld [vmem:[#allocation2 + $0x110] sm:$0xff]
      %v570 = vld [vmem:[#allocation2 + $0x118] sm:$0xff]
      %s571 = scalar_lea.vmem %s1, 2
      %v572 = vld [vmem:[%s571] sm:$0x3]
      %vm573 = vsmask.f32 7424
      %v574 = vshrl.u32 %v249, 16
      %v576 = vshll.u32 %v249, 16
      %v578 = vrot.slane %v576, 1
      %v579 = vor.u32 %v574, %v578
      %v580 = vshll.u32 %v250, 16
      %v582 = vrot.slane %v580, 1
      %v583 = vsel %vm573, %v579, %v582
      %v584 = vshrl.u32 %v250, 16
      %v586 = vor.u32 %v584, %v582
      %v587 = vshll.u32 %v251, 16
      %v589 = vrot.slane %v587, 1
      %v590 = vsel %vm573, %v586, %v589
      %v591 = vshrl.u32 %v251, 16
      %v593 = vor.u32 %v591, %v589
      %v594 = vshll.u32 %v252, 16
      %v596 = vrot.slane %v594, 1
      %v597 = vsel %vm573, %v593, %v596
      %v598 = vshrl.u32 %v252, 16
      %v600 = vor.u32 %v598, %v596
      %v601 = vshll.u32 %v253, 16
      %v603 = vrot.slane %v601, 1
      %v604 = vsel %vm573, %v600, %v603
      %v605 = vshrl.u32 %v253, 16
      %v607 = vor.u32 %v605, %v603
      %v608 = vshll.u32 %v254, 16
      %v610 = vrot.slane %v608, 1
      %v611 = vsel %vm573, %v607, %v610
      %v612 = vshrl.u32 %v254, 16
      %v614 = vor.u32 %v612, %v610
      %v615 = vshll.u32 %v255, 16
      %v617 = vrot.slane %v615, 1
      %v618 = vsel %vm573, %v614, %v617
      %v619 = vshrl.u32 %v255, 16
      %v621 = vor.u32 %v619, %v617
      %v622 = vshll.u32 %v256, 16
      %v624 = vrot.slane %v622, 1
      %v625 = vsel %vm573, %v621, %v624
      %v626 = vshrl.u32 %v256, 16
      %v628 = vor.u32 %v626, %v624
      %v629 = vshll.u32 %v257, 16
      %v631 = vrot.slane %v629, 1
      %v632 = vsel %vm573, %v628, %v631
      %v633 = vshrl.u32 %v257, 16
      %v635 = vor.u32 %v633, %v631
      %v636 = vshll.u32 %v258, 16
      %v638 = vrot.slane %v636, 1
      %v639 = vsel %vm573, %v635, %v638
      %v640 = vshrl.u32 %v258, 16
      %v642 = vor.u32 %v640, %v638
      %v643 = vshll.u32 %v259, 16
      %v645 = vrot.slane %v643, 1
      %v646 = vsel %vm573, %v642, %v645
      %v647 = vshrl.u32 %v259, 16
      %v649 = vor.u32 %v647, %v645
      %v650 = vshll.u32 %v260, 16
      %v652 = vrot.slane %v650, 1
      %v653 = vsel %vm573, %v649, %v652
      %v654 = vshrl.u32 %v260, 16
      %v656 = vor.u32 %v654, %v652
      %v657 = vshll.u32 %v261, 16
      %v659 = vrot.slane %v657, 1
      %v660 = vsel %vm573, %v656, %v659
      %v661 = vshrl.u32 %v261, 16
      %v663 = vor.u32 %v661, %v659
      %v664 = vshll.u32 %v262, 16
      %v666 = vrot.slane %v664, 1
      %v667 = vsel %vm573, %v663, %v666
      %v668 = vshrl.u32 %v262, 16
      %v670 = vor.u32 %v668, %v666
      %v671 = vshll.u32 %v263, 16
      %v673 = vrot.slane %v671, 1
      %v674 = vsel %vm573, %v670, %v673
      %v675 = vshrl.u32 %v263, 16
      %v677 = vor.u32 %v675, %v673
      %v678 = vshll.u32 %v264, 16
      %v680 = vrot.slane %v678, 1
      %v681 = vsel %vm573, %v677, %v680
      %v682 = vshrl.u32 %v264, 16
      %v684 = vor.u32 %v682, %v680
      %v685 = vshll.u32 %v265, 16
      %v687 = vrot.slane %v685, 1
      %v688 = vsel %vm573, %v684, %v687
      %v689 = vshrl.u32 %v265, 16
      %v691 = vor.u32 %v689, %v687
      %v692 = vshll.u32 %v266, 16
      %v694 = vrot.slane %v692, 1
      %v695 = vsel %vm573, %v691, %v694
      %v696 = vshrl.u32 %v266, 16
      %v698 = vor.u32 %v696, %v694
      %v700 = vshll.u32 %v534, 16
      %v702 = vrot.slane %v700, 1
      %v703 = vsel %vm573, %v698, %v702
      %v705 = vsel %vm304, %v583, 0
      %v708 = vsel %vm304, %v590, 0
      %v711 = vsel %vm304, %v597, 0
      %v714 = vsel %vm304, %v604, 0
      %v717 = vsel %vm304, %v611, 0
      %v720 = vsel %vm304, %v618, 0
      %v723 = vsel %vm304, %v625, 0
      %v726 = vsel %vm304, %v632, 0
      %v729 = vsel %vm304, %v639, 0
      %v732 = vsel %vm304, %v646, 0
      %v735 = vsel %vm304, %v653, 0
      %v738 = vsel %vm304, %v660, 0
      %v741 = vsel %vm304, %v667, 0
      %v744 = vsel %vm304, %v674, 0
      %v747 = vsel %vm304, %v681, 0
      %v750 = vsel %vm304, %v688, 0
      %v753 = vsel %vm304, %v695, 0
      %v756 = vsel %vm304, %v703, 0
      %v759 = vsel %vm359, %v572, 0
      %761 = vmatpush.bf16.msra.mxu0 0
      %762 = vmatpush.bf16.msra.mxu0 0
      %763 = vmatpush.bf16.msra.mxu0 0
      %764 = vmatpush.bf16.msra.mxu0 0
      %765 = vmatpush.bf16.msra.mxu0 0
      %766 = vmatpush.bf16.msra.mxu0 0
      %767 = vmatpush.bf16.msra.mxu0 0
      %768 = vmatpush.bf16.msra.mxu0 %v759
      %769 = vmatmul.bf16.gmra.mxu0 %v705
      %v770 = vpop.f32.mrf.mxu0
      %v771 = vadd.f32 0.0, %v770
      %v772 = vpop.f32.mrf.mxu0
      %v773 = vadd.f32 0.0, %v772
      %774 = vmatmul.bf16.gmra.mxu0 %v708
      %v775 = vpop.f32.mrf.mxu0
      %v776 = vadd.f32 0.0, %v775
      %v777 = vpop.f32.mrf.mxu0
      %v778 = vadd.f32 0.0, %v777
      %779 = vmatmul.bf16.gmra.mxu0 %v711
      %v780 = vpop.f32.mrf.mxu0
      %v781 = vadd.f32 0.0, %v780
      %v782 = vpop.f32.mrf.mxu0
      %v783 = vadd.f32 0.0, %v782
      %784 = vmatmul.bf16.gmra.mxu0 %v714
      %v785 = vpop.f32.mrf.mxu0
      %v786 = vadd.f32 0.0, %v785
      %v787 = vpop.f32.mrf.mxu0
      %v788 = vadd.f32 0.0, %v787
      %789 = vmatmul.bf16.gmra.mxu0 %v717
      %v790 = vpop.f32.mrf.mxu0
      %v791 = vadd.f32 0.0, %v790
      %v792 = vpop.f32.mrf.mxu0
      %v793 = vadd.f32 0.0, %v792
      %794 = vmatmul.bf16.gmra.mxu0 %v720
      %v795 = vpop.f32.mrf.mxu0
      %v796 = vadd.f32 0.0, %v795
      %v797 = vpop.f32.mrf.mxu0
      %v798 = vadd.f32 0.0, %v797
      %799 = vmatmul.bf16.gmra.mxu0 %v723
      %v800 = vpop.f32.mrf.mxu0
      %v801 = vadd.f32 0.0, %v800
      %v802 = vpop.f32.mrf.mxu0
      %v803 = vadd.f32 0.0, %v802
      %804 = vmatmul.bf16.gmra.mxu0 %v726
      %v805 = vpop.f32.mrf.mxu0
      %v806 = vadd.f32 0.0, %v805
      %v807 = vpop.f32.mrf.mxu0
      %v808 = vadd.f32 0.0, %v807
      %809 = vmatmul.bf16.gmra.mxu0 %v729
      %v810 = vpop.f32.mrf.mxu0
      %v811 = vadd.f32 0.0, %v810
      %v812 = vpop.f32.mrf.mxu0
      %v813 = vadd.f32 0.0, %v812
      %814 = vmatmul.bf16.gmra.mxu0 %v732
      %v815 = vpop.f32.mrf.mxu0
      %v816 = vadd.f32 0.0, %v815
      %v817 = vpop.f32.mrf.mxu0
      %v818 = vadd.f32 0.0, %v817
      %819 = vmatmul.bf16.gmra.mxu0 %v735
      %v820 = vpop.f32.mrf.mxu0
      %v821 = vadd.f32 0.0, %v820
      %v822 = vpop.f32.mrf.mxu0
      %v823 = vadd.f32 0.0, %v822
      %824 = vmatmul.bf16.gmra.mxu0 %v738
      %v825 = vpop.f32.mrf.mxu0
      %v826 = vadd.f32 0.0, %v825
      %v827 = vpop.f32.mrf.mxu0
      %v828 = vadd.f32 0.0, %v827
      %829 = vmatmul.bf16.gmra.mxu0 %v741
      %v830 = vpop.f32.mrf.mxu0
      %v831 = vadd.f32 0.0, %v830
      %v832 = vpop.f32.mrf.mxu0
      %v833 = vadd.f32 0.0, %v832
      %834 = vmatmul.bf16.gmra.mxu0 %v744
      %v835 = vpop.f32.mrf.mxu0
      %v836 = vadd.f32 0.0, %v835
      %v837 = vpop.f32.mrf.mxu0
      %v838 = vadd.f32 0.0, %v837
      %839 = vmatmul.bf16.gmra.mxu0 %v747
      %v840 = vpop.f32.mrf.mxu0
      %v841 = vadd.f32 0.0, %v840
      %v842 = vpop.f32.mrf.mxu0
      %v843 = vadd.f32 0.0, %v842
      %844 = vmatmul.bf16.gmra.mxu0 %v750
      %v845 = vpop.f32.mrf.mxu0
      %v846 = vadd.f32 0.0, %v845
      %v847 = vpop.f32.mrf.mxu0
      %v848 = vadd.f32 0.0, %v847
      %849 = vmatmul.bf16.gmra.mxu0 %v753
      %v850 = vpop.f32.mrf.mxu0
      %v851 = vadd.f32 0.0, %v850
      %v852 = vpop.f32.mrf.mxu0
      %v853 = vadd.f32 0.0, %v852
      %854 = vmatmul.bf16.gmra.mxu0 %v756
      %v855 = vpop.f32.mrf.mxu0
      %v856 = vadd.f32 0.0, %v855
      %v857 = vpop.f32.mrf.mxu0
      %v858 = vadd.f32 0.0, %v857
      %859 = vdwg.mxu0
      %v860 = vadd.f32 %v535, %v771
      %v861 = vadd.f32 %v536, %v773
      %v862 = vadd.f32 %v537, %v776
      %v863 = vadd.f32 %v538, %v778
      %v864 = vadd.f32 %v539, %v781
      %v865 = vadd.f32 %v540, %v783
      %v866 = vadd.f32 %v541, %v786
      %v867 = vadd.f32 %v542, %v788
      %v868 = vadd.f32 %v543, %v791
      %v869 = vadd.f32 %v544, %v793
      %v870 = vadd.f32 %v545, %v796
      %v871 = vadd.f32 %v546, %v798
      %v872 = vadd.f32 %v547, %v801
      %v873 = vadd.f32 %v548, %v803
      %v874 = vadd.f32 %v549, %v806
      %v875 = vadd.f32 %v550, %v808
      %v876 = vadd.f32 %v551, %v811
      %v877 = vadd.f32 %v552, %v813
      %v878 = vadd.f32 %v553, %v816
      %v879 = vadd.f32 %v554, %v818
      %v880 = vadd.f32 %v555, %v821
      %v881 = vadd.f32 %v556, %v823
      %v882 = vadd.f32 %v557, %v826
      %v883 = vadd.f32 %v558, %v828
      %v884 = vadd.f32 %v559, %v831
      %v885 = vadd.f32 %v560, %v833
      %v886 = vadd.f32 %v561, %v836
      %v887 = vadd.f32 %v562, %v838
      %v888 = vadd.f32 %v563, %v841
      %v889 = vadd.f32 %v564, %v843
      %v890 = vadd.f32 %v565, %v846
      %v891 = vadd.f32 %v566, %v848
      %v892 = vadd.f32 %v567, %v851
      %v893 = vadd.f32 %v568, %v853
      %v894 = vadd.f32 %v569, %v856
      %v895 = vadd.f32 %v570, %v858
      %896 = vst [vmem:[#allocation2] sm:$0xff] %v860
      %897 = vst [vmem:[#allocation2 + $0x8] sm:$0xff] %v861
      %898 = vst [vmem:[#allocation2 + $0x10] sm:$0xff] %v862
      %899 = vst [vmem:[#allocation2 + $0x18] sm:$0xff] %v863
      %900 = vst [vmem:[#allocation2 + $0x20] sm:$0xff] %v864
      %901 = vst [vmem:[#allocation2 + $0x28] sm:$0xff] %v865
      %902 = vst [vmem:[#allocation2 + $0x30] sm:$0xff] %v866
      %903 = vst [vmem:[#allocation2 + $0x38] sm:$0xff] %v867
      %904 = vst [vmem:[#allocation2 + $0x40] sm:$0xff] %v868
      %905 = vst [vmem:[#allocation2 + $0x48] sm:$0xff] %v869
      %906 = vst [vmem:[#allocation2 + $0x50] sm:$0xff] %v870
      %907 = vst [vmem:[#allocation2 + $0x58] sm:$0xff] %v871
      %908 = vst [vmem:[#allocation2 + $0x60] sm:$0xff] %v872
      %909 = vst [vmem:[#allocation2 + $0x68] sm:$0xff] %v873
      %910 = vst [vmem:[#allocation2 + $0x70] sm:$0xff] %v874
      %911 = vst [vmem:[#allocation2 + $0x78] sm:$0xff] %v875
      %912 = vst [vmem:[#allocation2 + $0x80] sm:$0xff] %v876
      %913 = vst [vmem:[#allocation2 + $0x88] sm:$0xff] %v877
      %914 = vst [vmem:[#allocation2 + $0x90] sm:$0xff] %v878
      %915 = vst [vmem:[#allocation2 + $0x98] sm:$0xff] %v879
      %916 = vst [vmem:[#allocation2 + $0xa0] sm:$0xff] %v880
      %917 = vst [vmem:[#allocation2 + $0xa8] sm:$0xff] %v881
      %918 = vst [vmem:[#allocation2 + $0xb0] sm:$0xff] %v882
      %919 = vst [vmem:[#allocation2 + $0xb8] sm:$0xff] %v883
      %920 = vst [vmem:[#allocation2 + $0xc0] sm:$0xff] %v884
      %921 = vst [vmem:[#allocation2 + $0xc8] sm:$0xff] %v885
      %922 = vst [vmem:[#allocation2 + $0xd0] sm:$0xff] %v886
      %923 = vst [vmem:[#allocation2 + $0xd8] sm:$0xff] %v887
      %924 = vst [vmem:[#allocation2 + $0xe0] sm:$0xff] %v888
      %925 = vst [vmem:[#allocation2 + $0xe8] sm:$0xff] %v889
      %926 = vst [vmem:[#allocation2 + $0xf0] sm:$0xff] %v890
      %927 = vst [vmem:[#allocation2 + $0xf8] sm:$0xff] %v891
      %928 = vst [vmem:[#allocation2 + $0x100] sm:$0xff] %v892
      %929 = vst [vmem:[#allocation2 + $0x108] sm:$0xff] %v893
      %930 = vst [vmem:[#allocation2 + $0x110] sm:$0xff] %v894
      %931 = vst [vmem:[#allocation2 + $0x118] sm:$0xff] %v895
      %v932 = vld [vmem:[#allocation2] sm:$0xff]
      %v933 = vld [vmem:[#allocation2 + $0x8] sm:$0xff]
      %v934 = vld [vmem:[#allocation2 + $0x10] sm:$0xff]
      %v935 = vld [vmem:[#allocation2 + $0x18] sm:$0xff]
      %v936 = vld [vmem:[#allocation2 + $0x20] sm:$0xff]
      %v937 = vld [vmem:[#allocation2 + $0x28] sm:$0xff]
      %v938 = vld [vmem:[#allocation2 + $0x30] sm:$0xff]
      %v939 = vld [vmem:[#allocation2 + $0x38] sm:$0xff]
      %v940 = vld [vmem:[#allocation2 + $0x40] sm:$0xff]
      %v941 = vld [vmem:[#allocation2 + $0x48] sm:$0xff]
      %v942 = vld [vmem:[#allocation2 + $0x50] sm:$0xff]
      %v943 = vld [vmem:[#allocation2 + $0x58] sm:$0xff]
      %v944 = vld [vmem:[#allocation2 + $0x60] sm:$0xff]
      %v945 = vld [vmem:[#allocation2 + $0x68] sm:$0xff]
      %v946 = vld [vmem:[#allocation2 + $0x70] sm:$0xff]
      %v947 = vld [vmem:[#allocation2 + $0x78] sm:$0xff]
      %v948 = vld [vmem:[#allocation2 + $0x80] sm:$0xff]
      %v949 = vld [vmem:[#allocation2 + $0x88] sm:$0xff]
      %v950 = vld [vmem:[#allocation2 + $0x90] sm:$0xff]
      %v951 = vld [vmem:[#allocation2 + $0x98] sm:$0xff]
      %v952 = vld [vmem:[#allocation2 + $0xa0] sm:$0xff]
      %v953 = vld [vmem:[#allocation2 + $0xa8] sm:$0xff]
      %v954 = vld [vmem:[#allocation2 + $0xb0] sm:$0xff]
      %v955 = vld [vmem:[#allocation2 + $0xb8] sm:$0xff]
      %v956 = vld [vmem:[#allocation2 + $0xc0] sm:$0xff]
      %v957 = vld [vmem:[#allocation2 + $0xc8] sm:$0xff]
      %v958 = vld [vmem:[#allocation2 + $0xd0] sm:$0xff]
      %v959 = vld [vmem:[#allocation2 + $0xd8] sm:$0xff]
      %v960 = vld [vmem:[#allocation2 + $0xe0] sm:$0xff]
      %v961 = vld [vmem:[#allocation2 + $0xe8] sm:$0xff]
      %v962 = vld [vmem:[#allocation2 + $0xf0] sm:$0xff]
      %v963 = vld [vmem:[#allocation2 + $0xf8] sm:$0xff]
      %v964 = vld [vmem:[#allocation2 + $0x100] sm:$0xff]
      %v965 = vld [vmem:[#allocation2 + $0x108] sm:$0xff]
      %v966 = vld [vmem:[#allocation2 + $0x110] sm:$0xff]
      %v967 = vld [vmem:[#allocation2 + $0x118] sm:$0xff]
      %s968 = scalar_lea.vmem %s1, 4
      %v969 = vld [vmem:[%s968] sm:$0x3]
      %vm989 = vcmask 1046528
      %v990 = vrot.slane %v249, 1
      %v991 = vrot.slane %v250, 1
      %v992 = vsel %vm989, %v990, %v991
      %v993 = vrot.slane %v251, 1
      %v994 = vsel %vm989, %v991, %v993
      %v995 = vrot.slane %v252, 1
      %v996 = vsel %vm989, %v993, %v995
      %v997 = vrot.slane %v253, 1
      %v998 = vsel %vm989, %v995, %v997
      %v999 = vrot.slane %v254, 1
      %v1000 = vsel %vm989, %v997, %v999
      %v1001 = vrot.slane %v255, 1
      %v1002 = vsel %vm989, %v999, %v1001
      %v1003 = vrot.slane %v256, 1
      %v1004 = vsel %vm989, %v1001, %v1003
      %v1005 = vrot.slane %v257, 1
      %v1006 = vsel %vm989, %v1003, %v1005
      %v1007 = vrot.slane %v258, 1
      %v1008 = vsel %vm989, %v1005, %v1007
      %v1009 = vrot.slane %v259, 1
      %v1010 = vsel %vm989, %v1007, %v1009
      %v1011 = vrot.slane %v260, 1
      %v1012 = vsel %vm989, %v1009, %v1011
      %v1013 = vrot.slane %v261, 1
      %v1014 = vsel %vm989, %v1011, %v1013
      %v1015 = vrot.slane %v262, 1
      %v1016 = vsel %vm989, %v1013, %v1015
      %v1017 = vrot.slane %v263, 1
      %v1018 = vsel %vm989, %v1015, %v1017
      %v1019 = vrot.slane %v264, 1
      %v1020 = vsel %vm989, %v1017, %v1019
      %v1021 = vrot.slane %v265, 1
      %v1022 = vsel %vm989, %v1019, %v1021
      %v1023 = vrot.slane %v266, 1
      %v1024 = vsel %vm989, %v1021, %v1023
      %v1025 = vrot.slane %v534, 1
      %v1026 = vsel %vm989, %v1023, %v1025
      %v1028 = vsel %vm304, %v992, 0
      %v1031 = vsel %vm304, %v994, 0
      %v1034 = vsel %vm304, %v996, 0
      %v1037 = vsel %vm304, %v998, 0
      %v1040 = vsel %vm304, %v1000, 0
      %v1043 = vsel %vm304, %v1002, 0
      %v1046 = vsel %vm304, %v1004, 0
      %v1049 = vsel %vm304, %v1006, 0
      %v1052 = vsel %vm304, %v1008, 0
      %v1055 = vsel %vm304, %v1010, 0
      %v1058 = vsel %vm304, %v1012, 0
      %v1061 = vsel %vm304, %v1014, 0
      %v1064 = vsel %vm304, %v1016, 0
      %v1067 = vsel %vm304, %v1018, 0
      %v1070 = vsel %vm304, %v1020, 0
      %v1073 = vsel %vm304, %v1022, 0
      %v1076 = vsel %vm304, %v1024, 0
      %v1079 = vsel %vm304, %v1026, 0
      %v1082 = vsel %vm359, %v969, 0
      %1084 = vmatpush.bf16.msra.mxu0 0
      %1085 = vmatpush.bf16.msra.mxu0 0
      %1086 = vmatpush.bf16.msra.mxu0 0
      %1087 = vmatpush.bf16.msra.mxu0 0
      %1088 = vmatpush.bf16.msra.mxu0 0
      %1089 = vmatpush.bf16.msra.mxu0 0
      %1090 = vmatpush.bf16.msra.mxu0 0
      %1091 = vmatpush.bf16.msra.mxu0 %v1082
      %1092 = vmatmul.bf16.gmra.mxu0 %v1028
      %v1093 = vpop.f32.mrf.mxu0
      %v1094 = vadd.f32 0.0, %v1093
      %v1095 = vpop.f32.mrf.mxu0
      %v1096 = vadd.f32 0.0, %v1095
      %1097 = vmatmul.bf16.gmra.mxu0 %v1031
      %v1098 = vpop.f32.mrf.mxu0
      %v1099 = vadd.f32 0.0, %v1098
      %v1100 = vpop.f32.mrf.mxu0
      %v1101 = vadd.f32 0.0, %v1100
      %1102 = vmatmul.bf16.gmra.mxu0 %v1034
      %v1103 = vpop.f32.mrf.mxu0
      %v1104 = vadd.f32 0.0, %v1103
      %v1105 = vpop.f32.mrf.mxu0
      %v1106 = vadd.f32 0.0, %v1105
      %1107 = vmatmul.bf16.gmra.mxu0 %v1037
      %v1108 = vpop.f32.mrf.mxu0
      %v1109 = vadd.f32 0.0, %v1108
      %v1110 = vpop.f32.mrf.mxu0
      %v1111 = vadd.f32 0.0, %v1110
      %1112 = vmatmul.bf16.gmra.mxu0 %v1040
      %v1113 = vpop.f32.mrf.mxu0
      %v1114 = vadd.f32 0.0, %v1113
      %v1115 = vpop.f32.mrf.mxu0
      %v1116 = vadd.f32 0.0, %v1115
      %1117 = vmatmul.bf16.gmra.mxu0 %v1043
      %v1118 = vpop.f32.mrf.mxu0
      %v1119 = vadd.f32 0.0, %v1118
      %v1120 = vpop.f32.mrf.mxu0
      %v1121 = vadd.f32 0.0, %v1120
      %1122 = vmatmul.bf16.gmra.mxu0 %v1046
      %v1123 = vpop.f32.mrf.mxu0
      %v1124 = vadd.f32 0.0, %v1123
      %v1125 = vpop.f32.mrf.mxu0
      %v1126 = vadd.f32 0.0, %v1125
      %1127 = vmatmul.bf16.gmra.mxu0 %v1049
      %v1128 = vpop.f32.mrf.mxu0
      %v1129 = vadd.f32 0.0, %v1128
      %v1130 = vpop.f32.mrf.mxu0
      %v1131 = vadd.f32 0.0, %v1130
      %1132 = vmatmul.bf16.gmra.mxu0 %v1052
      %v1133 = vpop.f32.mrf.mxu0
      %v1134 = vadd.f32 0.0, %v1133
      %v1135 = vpop.f32.mrf.mxu0
      %v1136 = vadd.f32 0.0, %v1135
      %1137 = vmatmul.bf16.gmra.mxu0 %v1055
      %v1138 = vpop.f32.mrf.mxu0
      %v1139 = vadd.f32 0.0, %v1138
      %v1140 = vpop.f32.mrf.mxu0
      %v1141 = vadd.f32 0.0, %v1140
      %1142 = vmatmul.bf16.gmra.mxu0 %v1058
      %v1143 = vpop.f32.mrf.mxu0
      %v1144 = vadd.f32 0.0, %v1143
      %v1145 = vpop.f32.mrf.mxu0
      %v1146 = vadd.f32 0.0, %v1145
      %1147 = vmatmul.bf16.gmra.mxu0 %v1061
      %v1148 = vpop.f32.mrf.mxu0
      %v1149 = vadd.f32 0.0, %v1148
      %v1150 = vpop.f32.mrf.mxu0
      %v1151 = vadd.f32 0.0, %v1150
      %1152 = vmatmul.bf16.gmra.mxu0 %v1064
      %v1153 = vpop.f32.mrf.mxu0
      %v1154 = vadd.f32 0.0, %v1153
      %v1155 = vpop.f32.mrf.mxu0
      %v1156 = vadd.f32 0.0, %v1155
      %1157 = vmatmul.bf16.gmra.mxu0 %v1067
      %v1158 = vpop.f32.mrf.mxu0
      %v1159 = vadd.f32 0.0, %v1158
      %v1160 = vpop.f32.mrf.mxu0
      %v1161 = vadd.f32 0.0, %v1160
      %1162 = vmatmul.bf16.gmra.mxu0 %v1070
      %v1163 = vpop.f32.mrf.mxu0
      %v1164 = vadd.f32 0.0, %v1163
      %v1165 = vpop.f32.mrf.mxu0
      %v1166 = vadd.f32 0.0, %v1165
      %1167 = vmatmul.bf16.gmra.mxu0 %v1073
      %v1168 = vpop.f32.mrf.mxu0
      %v1169 = vadd.f32 0.0, %v1168
      %v1170 = vpop.f32.mrf.mxu0
      %v1171 = vadd.f32 0.0, %v1170
      %1172 = vmatmul.bf16.gmra.mxu0 %v1076
      %v1173 = vpop.f32.mrf.mxu0
      %v1174 = vadd.f32 0.0, %v1173
      %v1175 = vpop.f32.mrf.mxu0
      %v1176 = vadd.f32 0.0, %v1175
      %1177 = vmatmul.bf16.gmra.mxu0 %v1079
      %v1178 = vpop.f32.mrf.mxu0
      %v1179 = vadd.f32 0.0, %v1178
      %v1180 = vpop.f32.mrf.mxu0
      %v1181 = vadd.f32 0.0, %v1180
      %1182 = vdwg.mxu0
      %v1183 = vadd.f32 %v932, %v1094
      %v1184 = vadd.f32 %v933, %v1096
      %v1185 = vadd.f32 %v934, %v1099
      %v1186 = vadd.f32 %v935, %v1101
      %v1187 = vadd.f32 %v936, %v1104
      %v1188 = vadd.f32 %v937, %v1106
      %v1189 = vadd.f32 %v938, %v1109
      %v1190 = vadd.f32 %v939, %v1111
      %v1191 = vadd.f32 %v940, %v1114
      %v1192 = vadd.f32 %v941, %v1116
      %v1193 = vadd.f32 %v942, %v1119
      %v1194 = vadd.f32 %v943, %v1121
      %v1195 = vadd.f32 %v944, %v1124
      %v1196 = vadd.f32 %v945, %v1126
      %v1197 = vadd.f32 %v946, %v1129
      %v1198 = vadd.f32 %v947, %v1131
      %v1199 = vadd.f32 %v948, %v1134
      %v1200 = vadd.f32 %v949, %v1136
      %v1201 = vadd.f32 %v950, %v1139
      %v1202 = vadd.f32 %v951, %v1141
      %v1203 = vadd.f32 %v952, %v1144
      %v1204 = vadd.f32 %v953, %v1146
      %v1205 = vadd.f32 %v954, %v1149
      %v1206 = vadd.f32 %v955, %v1151
      %v1207 = vadd.f32 %v956, %v1154
      %v1208 = vadd.f32 %v957, %v1156
      %v1209 = vadd.f32 %v958, %v1159
      %v1210 = vadd.f32 %v959, %v1161
      %v1211 = vadd.f32 %v960, %v1164
      %v1212 = vadd.f32 %v961, %v1166
      %v1213 = vadd.f32 %v962, %v1169
      %v1214 = vadd.f32 %v963, %v1171
      %v1215 = vadd.f32 %v964, %v1174
      %v1216 = vadd.f32 %v965, %v1176
      %v1217 = vadd.f32 %v966, %v1179
      %v1218 = vadd.f32 %v967, %v1181
      %1219 = vst [vmem:[#allocation2] sm:$0xff] %v1183
      %1220 = vst [vmem:[#allocation2 + $0x8] sm:$0xff] %v1184
      %1221 = vst [vmem:[#allocation2 + $0x10] sm:$0xff] %v1185
      %1222 = vst [vmem:[#allocation2 + $0x18] sm:$0xff] %v1186
      %1223 = vst [vmem:[#allocation2 + $0x20] sm:$0xff] %v1187
      %1224 = vst [vmem:[#allocation2 + $0x28] sm:$0xff] %v1188
      %1225 = vst [vmem:[#allocation2 + $0x30] sm:$0xff] %v1189
      %1226 = vst [vmem:[#allocation2 + $0x38] sm:$0xff] %v1190
      %1227 = vst [vmem:[#allocation2 + $0x40] sm:$0xff] %v1191
      %1228 = vst [vmem:[#allocation2 + $0x48] sm:$0xff] %v1192
      %1229 = vst [vmem:[#allocation2 + $0x50] sm:$0xff] %v1193
      %1230 = vst [vmem:[#allocation2 + $0x58] sm:$0xff] %v1194
      %1231 = vst [vmem:[#allocation2 + $0x60] sm:$0xff] %v1195
      %1232 = vst [vmem:[#allocation2 + $0x68] sm:$0xff] %v1196
      %1233 = vst [vmem:[#allocation2 + $0x70] sm:$0xff] %v1197
      %1234 = vst [vmem:[#allocation2 + $0x78] sm:$0xff] %v1198
      %1235 = vst [vmem:[#allocation2 + $0x80] sm:$0xff] %v1199
      %1236 = vst [vmem:[#allocation2 + $0x88] sm:$0xff] %v1200
      %1237 = vst [vmem:[#allocation2 + $0x90] sm:$0xff] %v1201
      %1238 = vst [vmem:[#allocation2 + $0x98] sm:$0xff] %v1202
      %1239 = vst [vmem:[#allocation2 + $0xa0] sm:$0xff] %v1203
      %1240 = vst [vmem:[#allocation2 + $0xa8] sm:$0xff] %v1204
      %1241 = vst [vmem:[#allocation2 + $0xb0] sm:$0xff] %v1205
      %1242 = vst [vmem:[#allocation2 + $0xb8] sm:$0xff] %v1206
      %1243 = vst [vmem:[#allocation2 + $0xc0] sm:$0xff] %v1207
      %1244 = vst [vmem:[#allocation2 + $0xc8] sm:$0xff] %v1208
      %1245 = vst [vmem:[#allocation2 + $0xd0] sm:$0xff] %v1209
      %1246 = vst [vmem:[#allocation2 + $0xd8] sm:$0xff] %v1210
      %1247 = vst [vmem:[#allocation2 + $0xe0] sm:$0xff] %v1211
      %1248 = vst [vmem:[#allocation2 + $0xe8] sm:$0xff] %v1212
      %1249 = vst [vmem:[#allocation2 + $0xf0] sm:$0xff] %v1213
      %1250 = vst [vmem:[#allocation2 + $0xf8] sm:$0xff] %v1214
      %1251 = vst [vmem:[#allocation2 + $0x100] sm:$0xff] %v1215
      %1252 = vst [vmem:[#allocation2 + $0x108] sm:$0xff] %v1216
      %1253 = vst [vmem:[#allocation2 + $0x110] sm:$0xff] %v1217
      %1254 = vst [vmem:[#allocation2 + $0x118] sm:$0xff] %v1218
      %v1255 = vpack.c.bf16 %v245, %v244
      %v1256 = vpack.c.bf16 %v246, %v246
      %v1257 = vld [vmem:[#allocation2] sm:$0xff]
      %v1258 = vld [vmem:[#allocation2 + $0x8] sm:$0xff]
      %v1259 = vld [vmem:[#allocation2 + $0x10] sm:$0xff]
      %v1260 = vld [vmem:[#allocation2 + $0x18] sm:$0xff]
      %v1261 = vld [vmem:[#allocation2 + $0x20] sm:$0xff]
      %v1262 = vld [vmem:[#allocation2 + $0x28] sm:$0xff]
      %v1263 = vld [vmem:[#allocation2 + $0x30] sm:$0xff]
      %v1264 = vld [vmem:[#allocation2 + $0x38] sm:$0xff]
      %v1265 = vld [vmem:[#allocation2 + $0x40] sm:$0xff]
      %v1266 = vld [vmem:[#allocation2 + $0x48] sm:$0xff]
      %v1267 = vld [vmem:[#allocation2 + $0x50] sm:$0xff]
      %v1268 = vld [vmem:[#allocation2 + $0x58] sm:$0xff]
      %v1269 = vld [vmem:[#allocation2 + $0x60] sm:$0xff]
      %v1270 = vld [vmem:[#allocation2 + $0x68] sm:$0xff]
      %v1271 = vld [vmem:[#allocation2 + $0x70] sm:$0xff]
      %v1272 = vld [vmem:[#allocation2 + $0x78] sm:$0xff]
      %v1273 = vld [vmem:[#allocation2 + $0x80] sm:$0xff]
      %v1274 = vld [vmem:[#allocation2 + $0x88] sm:$0xff]
      %v1275 = vld [vmem:[#allocation2 + $0x90] sm:$0xff]
      %v1276 = vld [vmem:[#allocation2 + $0x98] sm:$0xff]
      %v1277 = vld [vmem:[#allocation2 + $0xa0] sm:$0xff]
      %v1278 = vld [vmem:[#allocation2 + $0xa8] sm:$0xff]
      %v1279 = vld [vmem:[#allocation2 + $0xb0] sm:$0xff]
      %v1280 = vld [vmem:[#allocation2 + $0xb8] sm:$0xff]
      %v1281 = vld [vmem:[#allocation2 + $0xc0] sm:$0xff]
      %v1282 = vld [vmem:[#allocation2 + $0xc8] sm:$0xff]
      %v1283 = vld [vmem:[#allocation2 + $0xd0] sm:$0xff]
      %v1284 = vld [vmem:[#allocation2 + $0xd8] sm:$0xff]
      %v1285 = vld [vmem:[#allocation2 + $0xe0] sm:$0xff]
      %v1286 = vld [vmem:[#allocation2 + $0xe8] sm:$0xff]
      %v1287 = vld [vmem:[#allocation2 + $0xf0] sm:$0xff]
      %v1288 = vld [vmem:[#allocation2 + $0xf8] sm:$0xff]
      %v1289 = vld [vmem:[#allocation2 + $0x100] sm:$0xff]
      %v1290 = vld [vmem:[#allocation2 + $0x108] sm:$0xff]
      %v1291 = vld [vmem:[#allocation2 + $0x110] sm:$0xff]
      %v1292 = vld [vmem:[#allocation2 + $0x118] sm:$0xff]
      %s1293 = scalar_lea.vmem %s1, 6
      %v1294 = vld [vmem:[%s1293] sm:$0x3]
      %v1297 = vrot.slane %v1255, 1
      %v1298 = vsel %vm989, %v1023, %v1297
      %v1299 = vrot.slane %v1256, 1
      %v1300 = vsel %vm989, %v1297, %v1299
      %v1302 = vsel %vm304, %v1298, 0
      %v1305 = vsel %vm304, %v1300, 0
      %v1308 = vsel %vm359, %v1294, 0
      %1310 = vmatpush.bf16.msra.mxu0 0
      %1311 = vmatpush.bf16.msra.mxu0 0
      %1312 = vmatpush.bf16.msra.mxu0 0
      %1313 = vmatpush.bf16.msra.mxu0 0
      %1314 = vmatpush.bf16.msra.mxu0 0
      %1315 = vmatpush.bf16.msra.mxu0 0
      %1316 = vmatpush.bf16.msra.mxu0 0
      %1317 = vmatpush.bf16.msra.mxu0 %v1308
      %1318 = vmatmul.bf16.gmra.mxu0 %v1031
      %v1319 = vpop.f32.mrf.mxu0
      %v1320 = vadd.f32 0.0, %v1319
      %v1321 = vpop.f32.mrf.mxu0
      %v1322 = vadd.f32 0.0, %v1321
      %1323 = vmatmul.bf16.gmra.mxu0 %v1034
      %v1324 = vpop.f32.mrf.mxu0
      %v1325 = vadd.f32 0.0, %v1324
      %v1326 = vpop.f32.mrf.mxu0
      %v1327 = vadd.f32 0.0, %v1326
      %1328 = vmatmul.bf16.gmra.mxu0 %v1037
      %v1329 = vpop.f32.mrf.mxu0
      %v1330 = vadd.f32 0.0, %v1329
      %v1331 = vpop.f32.mrf.mxu0
      %v1332 = vadd.f32 0.0, %v1331
      %1333 = vmatmul.bf16.gmra.mxu0 %v1040
      %v1334 = vpop.f32.mrf.mxu0
      %v1335 = vadd.f32 0.0, %v1334
      %v1336 = vpop.f32.mrf.mxu0
      %v1337 = vadd.f32 0.0, %v1336
      %1338 = vmatmul.bf16.gmra.mxu0 %v1043
      %v1339 = vpop.f32.mrf.mxu0
      %v1340 = vadd.f32 0.0, %v1339
      %v1341 = vpop.f32.mrf.mxu0
      %v1342 = vadd.f32 0.0, %v1341
      %1343 = vmatmul.bf16.gmra.mxu0 %v1046
      %v1344 = vpop.f32.mrf.mxu0
      %v1345 = vadd.f32 0.0, %v1344
      %v1346 = vpop.f32.mrf.mxu0
      %v1347 = vadd.f32 0.0, %v1346
      %1348 = vmatmul.bf16.gmra.mxu0 %v1049
      %v1349 = vpop.f32.mrf.mxu0
      %v1350 = vadd.f32 0.0, %v1349
      %v1351 = vpop.f32.mrf.mxu0
      %v1352 = vadd.f32 0.0, %v1351
      %1353 = vmatmul.bf16.gmra.mxu0 %v1052
      %v1354 = vpop.f32.mrf.mxu0
      %v1355 = vadd.f32 0.0, %v1354
      %v1356 = vpop.f32.mrf.mxu0
      %v1357 = vadd.f32 0.0, %v1356
      %1358 = vmatmul.bf16.gmra.mxu0 %v1055
      %v1359 = vpop.f32.mrf.mxu0
      %v1360 = vadd.f32 0.0, %v1359
      %v1361 = vpop.f32.mrf.mxu0
      %v1362 = vadd.f32 0.0, %v1361
      %1363 = vmatmul.bf16.gmra.mxu0 %v1058
      %v1364 = vpop.f32.mrf.mxu0
      %v1365 = vadd.f32 0.0, %v1364
      %v1366 = vpop.f32.mrf.mxu0
      %v1367 = vadd.f32 0.0, %v1366
      %1368 = vmatmul.bf16.gmra.mxu0 %v1061
      %v1369 = vpop.f32.mrf.mxu0
      %v1370 = vadd.f32 0.0, %v1369
      %v1371 = vpop.f32.mrf.mxu0
      %v1372 = vadd.f32 0.0, %v1371
      %1373 = vmatmul.bf16.gmra.mxu0 %v1064
      %v1374 = vpop.f32.mrf.mxu0
      %v1375 = vadd.f32 0.0, %v1374
      %v1376 = vpop.f32.mrf.mxu0
      %v1377 = vadd.f32 0.0, %v1376
      %1378 = vmatmul.bf16.gmra.mxu0 %v1067
      %v1379 = vpop.f32.mrf.mxu0
      %v1380 = vadd.f32 0.0, %v1379
      %v1381 = vpop.f32.mrf.mxu0
      %v1382 = vadd.f32 0.0, %v1381
      %1383 = vmatmul.bf16.gmra.mxu0 %v1070
      %v1384 = vpop.f32.mrf.mxu0
      %v1385 = vadd.f32 0.0, %v1384
      %v1386 = vpop.f32.mrf.mxu0
      %v1387 = vadd.f32 0.0, %v1386
      %1388 = vmatmul.bf16.gmra.mxu0 %v1073
      %v1389 = vpop.f32.mrf.mxu0
      %v1390 = vadd.f32 0.0, %v1389
      %v1391 = vpop.f32.mrf.mxu0
      %v1392 = vadd.f32 0.0, %v1391
      %1393 = vmatmul.bf16.gmra.mxu0 %v1076
      %v1394 = vpop.f32.mrf.mxu0
      %v1395 = vadd.f32 0.0, %v1394
      %v1396 = vpop.f32.mrf.mxu0
      %v1397 = vadd.f32 0.0, %v1396
      %1398 = vmatmul.bf16.gmra.mxu0 %v1302
      %v1399 = vpop.f32.mrf.mxu0
      %v1400 = vadd.f32 0.0, %v1399
      %v1401 = vpop.f32.mrf.mxu0
      %v1402 = vadd.f32 0.0, %v1401
      %1403 = vmatmul.bf16.gmra.mxu0 %v1305
      %v1404 = vpop.f32.mrf.mxu0
      %v1405 = vadd.f32 0.0, %v1404
      %v1406 = vpop.f32.mrf.mxu0
      %v1407 = vadd.f32 0.0, %v1406
      %1408 = vdwg.mxu0
      %v1409 = vadd.f32 %v1257, %v1320
      %v1410 = vadd.f32 %v1258, %v1322
      %v1411 = vadd.f32 %v1259, %v1325
      %v1412 = vadd.f32 %v1260, %v1327
      %v1413 = vadd.f32 %v1261, %v1330
      %v1414 = vadd.f32 %v1262, %v1332
      %v1415 = vadd.f32 %v1263, %v1335
      %v1416 = vadd.f32 %v1264, %v1337
      %v1417 = vadd.f32 %v1265, %v1340
      %v1418 = vadd.f32 %v1266, %v1342
      %v1419 = vadd.f32 %v1267, %v1345
      %v1420 = vadd.f32 %v1268, %v1347
      %v1421 = vadd.f32 %v1269, %v1350
      %v1422 = vadd.f32 %v1270, %v1352
      %v1423 = vadd.f32 %v1271, %v1355
      %v1424 = vadd.f32 %v1272, %v1357
      %v1425 = vadd.f32 %v1273, %v1360
      %v1426 = vadd.f32 %v1274, %v1362
      %v1427 = vadd.f32 %v1275, %v1365
      %v1428 = vadd.f32 %v1276, %v1367
      %v1429 = vadd.f32 %v1277, %v1370
      %v1430 = vadd.f32 %v1278, %v1372
      %v1431 = vadd.f32 %v1279, %v1375
      %v1432 = vadd.f32 %v1280, %v1377
      %v1433 = vadd.f32 %v1281, %v1380
      %v1434 = vadd.f32 %v1282, %v1382
      %v1435 = vadd.f32 %v1283, %v1385
      %v1436 = vadd.f32 %v1284, %v1387
      %v1437 = vadd.f32 %v1285, %v1390
      %v1438 = vadd.f32 %v1286, %v1392
      %v1439 = vadd.f32 %v1287, %v1395
      %v1440 = vadd.f32 %v1288, %v1397
      %v1441 = vadd.f32 %v1289, %v1400
      %v1442 = vadd.f32 %v1290, %v1402
      %v1443 = vadd.f32 %v1291, %v1405
      %v1444 = vadd.f32 %v1292, %v1407
      %1445 = vst [vmem:[#allocation2] sm:$0xff] %v1409
      %1446 = vst [vmem:[#allocation2 + $0x8] sm:$0xff] %v1410
      %1447 = vst [vmem:[#allocation2 + $0x10] sm:$0xff] %v1411
      %1448 = vst [vmem:[#allocation2 + $0x18] sm:$0xff] %v1412
      %1449 = vst [vmem:[#allocation2 + $0x20] sm:$0xff] %v1413
      %1450 = vst [vmem:[#allocation2 + $0x28] sm:$0xff] %v1414
      %1451 = vst [vmem:[#allocation2 + $0x30] sm:$0xff] %v1415
      %1452 = vst [vmem:[#allocation2 + $0x38] sm:$0xff] %v1416
      %1453 = vst [vmem:[#allocation2 + $0x40] sm:$0xff] %v1417
      %1454 = vst [vmem:[#allocation2 + $0x48] sm:$0xff] %v1418
      %1455 = vst [vmem:[#allocation2 + $0x50] sm:$0xff] %v1419
      %1456 = vst [vmem:[#allocation2 + $0x58] sm:$0xff] %v1420
      %1457 = vst [vmem:[#allocation2 + $0x60] sm:$0xff] %v1421
      %1458 = vst [vmem:[#allocation2 + $0x68] sm:$0xff] %v1422
      %1459 = vst [vmem:[#allocation2 + $0x70] sm:$0xff] %v1423
      %1460 = vst [vmem:[#allocation2 + $0x78] sm:$0xff] %v1424
      %1461 = vst [vmem:[#allocation2 + $0x80] sm:$0xff] %v1425
      %1462 = vst [vmem:[#allocation2 + $0x88] sm:$0xff] %v1426
      %1463 = vst [vmem:[#allocation2 + $0x90] sm:$0xff] %v1427
      %1464 = vst [vmem:[#allocation2 + $0x98] sm:$0xff] %v1428
      %1465 = vst [vmem:[#allocation2 + $0xa0] sm:$0xff] %v1429
      %1466 = vst [vmem:[#allocation2 + $0xa8] sm:$0xff] %v1430
      %1467 = vst [vmem:[#allocation2 + $0xb0] sm:$0xff] %v1431
      %1468 = vst [vmem:[#allocation2 + $0xb8] sm:$0xff] %v1432
      %1469 = vst [vmem:[#allocation2 + $0xc0] sm:$0xff] %v1433
      %1470 = vst [vmem:[#allocation2 + $0xc8] sm:$0xff] %v1434
      %1471 = vst [vmem:[#allocation2 + $0xd0] sm:$0xff] %v1435
      %1472 = vst [vmem:[#allocation2 + $0xd8] sm:$0xff] %v1436
      %1473 = vst [vmem:[#allocation2 + $0xe0] sm:$0xff] %v1437
      %1474 = vst [vmem:[#allocation2 + $0xe8] sm:$0xff] %v1438
      %1475 = vst [vmem:[#allocation2 + $0xf0] sm:$0xff] %v1439
      %1476 = vst [vmem:[#allocation2 + $0xf8] sm:$0xff] %v1440
      %1477 = vst [vmem:[#allocation2 + $0x100] sm:$0xff] %v1441
      %1478 = vst [vmem:[#allocation2 + $0x108] sm:$0xff] %v1442
      %1479 = vst [vmem:[#allocation2 + $0x110] sm:$0xff] %v1443
      %1480 = vst [vmem:[#allocation2 + $0x118] sm:$0xff] %v1444
      %v1481 = vld [vmem:[#allocation2] sm:$0xff]
      %v1482 = vld [vmem:[#allocation2 + $0x8] sm:$0xff]
      %v1483 = vld [vmem:[#allocation2 + $0x10] sm:$0xff]
      %v1484 = vld [vmem:[#allocation2 + $0x18] sm:$0xff]
      %v1485 = vld [vmem:[#allocation2 + $0x20] sm:$0xff]
      %v1486 = vld [vmem:[#allocation2 + $0x28] sm:$0xff]
      %v1487 = vld [vmem:[#allocation2 + $0x30] sm:$0xff]
      %v1488 = vld [vmem:[#allocation2 + $0x38] sm:$0xff]
      %v1489 = vld [vmem:[#allocation2 + $0x40] sm:$0xff]
      %v1490 = vld [vmem:[#allocation2 + $0x48] sm:$0xff]
      %v1491 = vld [vmem:[#allocation2 + $0x50] sm:$0xff]
      %v1492 = vld [vmem:[#allocation2 + $0x58] sm:$0xff]
      %v1493 = vld [vmem:[#allocation2 + $0x60] sm:$0xff]
      %v1494 = vld [vmem:[#allocation2 + $0x68] sm:$0xff]
      %v1495 = vld [vmem:[#allocation2 + $0x70] sm:$0xff]
      %v1496 = vld [vmem:[#allocation2 + $0x78] sm:$0xff]
      %v1497 = vld [vmem:[#allocation2 + $0x80] sm:$0xff]
      %v1498 = vld [vmem:[#allocation2 + $0x88] sm:$0xff]
      %v1499 = vld [vmem:[#allocation2 + $0x90] sm:$0xff]
      %v1500 = vld [vmem:[#allocation2 + $0x98] sm:$0xff]
      %v1501 = vld [vmem:[#allocation2 + $0xa0] sm:$0xff]
      %v1502 = vld [vmem:[#allocation2 + $0xa8] sm:$0xff]
      %v1503 = vld [vmem:[#allocation2 + $0xb0] sm:$0xff]
      %v1504 = vld [vmem:[#allocation2 + $0xb8] sm:$0xff]
      %v1505 = vld [vmem:[#allocation2 + $0xc0] sm:$0xff]
      %v1506 = vld [vmem:[#allocation2 + $0xc8] sm:$0xff]
      %v1507 = vld [vmem:[#allocation2 + $0xd0] sm:$0xff]
      %v1508 = vld [vmem:[#allocation2 + $0xd8] sm:$0xff]
      %v1509 = vld [vmem:[#allocation2 + $0xe0] sm:$0xff]
      %v1510 = vld [vmem:[#allocation2 + $0xe8] sm:$0xff]
      %v1511 = vld [vmem:[#allocation2 + $0xf0] sm:$0xff]
      %v1512 = vld [vmem:[#allocation2 + $0xf8] sm:$0xff]
      %v1513 = vld [vmem:[#allocation2 + $0x100] sm:$0xff]
      %v1514 = vld [vmem:[#allocation2 + $0x108] sm:$0xff]
      %v1515 = vld [vmem:[#allocation2 + $0x110] sm:$0xff]
      %v1516 = vld [vmem:[#allocation2 + $0x118] sm:$0xff]
      %s1517 = scalar_lea.vmem %s1, 8
      %v1518 = vld [vmem:[%s1517] sm:$0x3]
      %vm1519 = vsmask.f32 6400
      %v1520 = vrot.slane %v584, 1
      %v1521 = vrot.slane %v580, 2
      %v1522 = vor.u32 %v1520, %v1521
      %v1523 = vrot.slane %v591, 1
      %v1524 = vrot.slane %v587, 2
      %v1525 = vor.u32 %v1523, %v1524
      %v1526 = vsel %vm1519, %v1522, %v1525
      %v1527 = vrot.slane %v598, 1
      %v1528 = vrot.slane %v594, 2
      %v1529 = vor.u32 %v1527, %v1528
      %v1530 = vsel %vm1519, %v1525, %v1529
      %v1531 = vrot.slane %v605, 1
      %v1532 = vrot.slane %v601, 2
      %v1533 = vor.u32 %v1531, %v1532
      %v1534 = vsel %vm1519, %v1529, %v1533
      %v1535 = vrot.slane %v612, 1
      %v1536 = vrot.slane %v608, 2
      %v1537 = vor.u32 %v1535, %v1536
      %v1538 = vsel %vm1519, %v1533, %v1537
      %v1539 = vrot.slane %v619, 1
      %v1540 = vrot.slane %v615, 2
      %v1541 = vor.u32 %v1539, %v1540
      %v1542 = vsel %vm1519, %v1537, %v1541
      %v1543 = vrot.slane %v626, 1
      %v1544 = vrot.slane %v622, 2
      %v1545 = vor.u32 %v1543, %v1544
      %v1546 = vsel %vm1519, %v1541, %v1545
      %v1547 = vrot.slane %v633, 1
      %v1548 = vrot.slane %v629, 2
      %v1549 = vor.u32 %v1547, %v1548
      %v1550 = vsel %vm1519, %v1545, %v1549
      %v1551 = vrot.slane %v640, 1
      %v1552 = vrot.slane %v636, 2
      %v1553 = vor.u32 %v1551, %v1552
      %v1554 = vsel %vm1519, %v1549, %v1553
      %v1555 = vrot.slane %v647, 1
      %v1556 = vrot.slane %v643, 2
      %v1557 = vor.u32 %v1555, %v1556
      %v1558 = vsel %vm1519, %v1553, %v1557
      %v1559 = vrot.slane %v654, 1
      %v1560 = vrot.slane %v650, 2
      %v1561 = vor.u32 %v1559, %v1560
      %v1562 = vsel %vm1519, %v1557, %v1561
      %v1563 = vrot.slane %v661, 1
      %v1564 = vrot.slane %v657, 2
      %v1565 = vor.u32 %v1563, %v1564
      %v1566 = vsel %vm1519, %v1561, %v1565
      %v1567 = vrot.slane %v668, 1
      %v1568 = vrot.slane %v664, 2
      %v1569 = vor.u32 %v1567, %v1568
      %v1570 = vsel %vm1519, %v1565, %v1569
      %v1571 = vrot.slane %v675, 1
      %v1572 = vrot.slane %v671, 2
      %v1573 = vor.u32 %v1571, %v1572
      %v1574 = vsel %vm1519, %v1569, %v1573
      %v1575 = vrot.slane %v682, 1
      %v1576 = vrot.slane %v678, 2
      %v1577 = vor.u32 %v1575, %v1576
      %v1578 = vsel %vm1519, %v1573, %v1577
      %v1579 = vrot.slane %v689, 1
      %v1580 = vrot.slane %v685, 2
      %v1581 = vor.u32 %v1579, %v1580
      %v1582 = vsel %vm1519, %v1577, %v1581
      %v1583 = vrot.slane %v696, 1
      %v1584 = vrot.slane %v692, 2
      %v1585 = vor.u32 %v1583, %v1584
      %v1586 = vsel %vm1519, %v1581, %v1585
      %v1588 = vshrl.u32 %v1255, 16
      %v1590 = vrot.slane %v1588, 1
      %v1591 = vshll.u32 %v1255, 16
      %v1593 = vrot.slane %v1591, 2
      %v1594 = vor.u32 %v1590, %v1593
      %v1595 = vsel %vm1519, %v1585, %v1594
      %v1597 = vshrl.u32 %v1256, 16
      %v1599 = vrot.slane %v1597, 1
      %v1600 = vshll.u32 %v1256, 16
      %v1602 = vrot.slane %v1600, 2
      %v1603 = vor.u32 %v1599, %v1602
      %v1604 = vsel %vm1519, %v1594, %v1603
      %v1606 = vsel %vm304, %v1526, 0
      %v1609 = vsel %vm304, %v1530, 0
      %v1612 = vsel %vm304, %v1534, 0
      %v1615 = vsel %vm304, %v1538, 0
      %v1618 = vsel %vm304, %v1542, 0
      %v1621 = vsel %vm304, %v1546, 0
      %v1624 = vsel %vm304, %v1550, 0
      %v1627 = vsel %vm304, %v1554, 0
      %v1630 = vsel %vm304, %v1558, 0
      %v1633 = vsel %vm304, %v1562, 0
      %v1636 = vsel %vm304, %v1566, 0
      %v1639 = vsel %vm304, %v1570, 0
      %v1642 = vsel %vm304, %v1574, 0
      %v1645 = vsel %vm304, %v1578, 0
      %v1648 = vsel %vm304, %v1582, 0
      %v1651 = vsel %vm304, %v1586, 0
      %v1654 = vsel %vm304, %v1595, 0
      %v1657 = vsel %vm304, %v1604, 0
      %v1660 = vsel %vm359, %v1518, 0
      %1662 = vmatpush.bf16.msra.mxu0 0
      %1663 = vmatpush.bf16.msra.mxu0 0
      %1664 = vmatpush.bf16.msra.mxu0 0
      %1665 = vmatpush.bf16.msra.mxu0 0
      %1666 = vmatpush.bf16.msra.mxu0 0
      %1667 = vmatpush.bf16.msra.mxu0 0
      %1668 = vmatpush.bf16.msra.mxu0 0
      %1669 = vmatpush.bf16.msra.mxu0 %v1660
      %1670 = vmatmul.bf16.gmra.mxu0 %v1606
      %v1671 = vpop.f32.mrf.mxu0
      %v1672 = vadd.f32 0.0, %v1671
      %v1673 = vpop.f32.mrf.mxu0
      %v1674 = vadd.f32 0.0, %v1673
      %1675 = vmatmul.bf16.gmra.mxu0 %v1609
      %v1676 = vpop.f32.mrf.mxu0
      %v1677 = vadd.f32 0.0, %v1676
      %v1678 = vpop.f32.mrf.mxu0
      %v1679 = vadd.f32 0.0, %v1678
      %1680 = vmatmul.bf16.gmra.mxu0 %v1612
      %v1681 = vpop.f32.mrf.mxu0
      %v1682 = vadd.f32 0.0, %v1681
      %v1683 = vpop.f32.mrf.mxu0
      %v1684 = vadd.f32 0.0, %v1683
      %1685 = vmatmul.bf16.gmra.mxu0 %v1615
      %v1686 = vpop.f32.mrf.mxu0
      %v1687 = vadd.f32 0.0, %v1686
      %v1688 = vpop.f32.mrf.mxu0
      %v1689 = vadd.f32 0.0, %v1688
      %1690 = vmatmul.bf16.gmra.mxu0 %v1618
      %v1691 = vpop.f32.mrf.mxu0
      %v1692 = vadd.f32 0.0, %v1691
      %v1693 = vpop.f32.mrf.mxu0
      %v1694 = vadd.f32 0.0, %v1693
      %1695 = vmatmul.bf16.gmra.mxu0 %v1621
      %v1696 = vpop.f32.mrf.mxu0
      %v1697 = vadd.f32 0.0, %v1696
      %v1698 = vpop.f32.mrf.mxu0
      %v1699 = vadd.f32 0.0, %v1698
      %1700 = vmatmul.bf16.gmra.mxu0 %v1624
      %v1701 = vpop.f32.mrf.mxu0
      %v1702 = vadd.f32 0.0, %v1701
      %v1703 = vpop.f32.mrf.mxu0
      %v1704 = vadd.f32 0.0, %v1703
      %1705 = vmatmul.bf16.gmra.mxu0 %v1627
      %v1706 = vpop.f32.mrf.mxu0
      %v1707 = vadd.f32 0.0, %v1706
      %v1708 = vpop.f32.mrf.mxu0
      %v1709 = vadd.f32 0.0, %v1708
      %1710 = vmatmul.bf16.gmra.mxu0 %v1630
      %v1711 = vpop.f32.mrf.mxu0
      %v1712 = vadd.f32 0.0, %v1711
      %v1713 = vpop.f32.mrf.mxu0
      %v1714 = vadd.f32 0.0, %v1713
      %1715 = vmatmul.bf16.gmra.mxu0 %v1633
      %v1716 = vpop.f32.mrf.mxu0
      %v1717 = vadd.f32 0.0, %v1716
      %v1718 = vpop.f32.mrf.mxu0
      %v1719 = vadd.f32 0.0, %v1718
      %1720 = vmatmul.bf16.gmra.mxu0 %v1636
      %v1721 = vpop.f32.mrf.mxu0
      %v1722 = vadd.f32 0.0, %v1721
      %v1723 = vpop.f32.mrf.mxu0
      %v1724 = vadd.f32 0.0, %v1723
      %1725 = vmatmul.bf16.gmra.mxu0 %v1639
      %v1726 = vpop.f32.mrf.mxu0
      %v1727 = vadd.f32 0.0, %v1726
      %v1728 = vpop.f32.mrf.mxu0
      %v1729 = vadd.f32 0.0, %v1728
      %1730 = vmatmul.bf16.gmra.mxu0 %v1642
      %v1731 = vpop.f32.mrf.mxu0
      %v1732 = vadd.f32 0.0, %v1731
      %v1733 = vpop.f32.mrf.mxu0
      %v1734 = vadd.f32 0.0, %v1733
      %1735 = vmatmul.bf16.gmra.mxu0 %v1645
      %v1736 = vpop.f32.mrf.mxu0
      %v1737 = vadd.f32 0.0, %v1736
      %v1738 = vpop.f32.mrf.mxu0
      %v1739 = vadd.f32 0.0, %v1738
      %1740 = vmatmul.bf16.gmra.mxu0 %v1648
      %v1741 = vpop.f32.mrf.mxu0
      %v1742 = vadd.f32 0.0, %v1741
      %v1743 = vpop.f32.mrf.mxu0
      %v1744 = vadd.f32 0.0, %v1743
      %1745 = vmatmul.bf16.gmra.mxu0 %v1651
      %v1746 = vpop.f32.mrf.mxu0
      %v1747 = vadd.f32 0.0, %v1746
      %v1748 = vpop.f32.mrf.mxu0
      %v1749 = vadd.f32 0.0, %v1748
      %1750 = vmatmul.bf16.gmra.mxu0 %v1654
      %v1751 = vpop.f32.mrf.mxu0
      %v1752 = vadd.f32 0.0, %v1751
      %v1753 = vpop.f32.mrf.mxu0
      %v1754 = vadd.f32 0.0, %v1753
      %1755 = vmatmul.bf16.gmra.mxu0 %v1657
      %v1756 = vpop.f32.mrf.mxu0
      %v1757 = vadd.f32 0.0, %v1756
      %v1758 = vpop.f32.mrf.mxu0
      %v1759 = vadd.f32 0.0, %v1758
      %1760 = vdwg.mxu0
      %v1761 = vadd.f32 %v1481, %v1672
      %v1762 = vadd.f32 %v1482, %v1674
      %v1763 = vadd.f32 %v1483, %v1677
      %v1764 = vadd.f32 %v1484, %v1679
      %v1765 = vadd.f32 %v1485, %v1682
      %v1766 = vadd.f32 %v1486, %v1684
      %v1767 = vadd.f32 %v1487, %v1687
      %v1768 = vadd.f32 %v1488, %v1689
      %v1769 = vadd.f32 %v1489, %v1692
      %v1770 = vadd.f32 %v1490, %v1694
      %v1771 = vadd.f32 %v1491, %v1697
      %v1772 = vadd.f32 %v1492, %v1699
      %v1773 = vadd.f32 %v1493, %v1702
      %v1774 = vadd.f32 %v1494, %v1704
      %v1775 = vadd.f32 %v1495, %v1707
      %v1776 = vadd.f32 %v1496, %v1709
      %v1777 = vadd.f32 %v1497, %v1712
      %v1778 = vadd.f32 %v1498, %v1714
      %v1779 = vadd.f32 %v1499, %v1717
      %v1780 = vadd.f32 %v1500, %v1719
      %v1781 = vadd.f32 %v1501, %v1722
      %v1782 = vadd.f32 %v1502, %v1724
      %v1783 = vadd.f32 %v1503, %v1727
      %v1784 = vadd.f32 %v1504, %v1729
      %v1785 = vadd.f32 %v1505, %v1732
      %v1786 = vadd.f32 %v1506, %v1734
      %v1787 = vadd.f32 %v1507, %v1737
      %v1788 = vadd.f32 %v1508, %v1739
      %v1789 = vadd.f32 %v1509, %v1742
      %v1790 = vadd.f32 %v1510, %v1744
      %v1791 = vadd.f32 %v1511, %v1747
      %v1792 = vadd.f32 %v1512, %v1749
      %v1793 = vadd.f32 %v1513, %v1752
      %v1794 = vadd.f32 %v1514, %v1754
      %v1795 = vadd.f32 %v1515, %v1757
      %v1796 = vadd.f32 %v1516, %v1759
      %1797 = vst [vmem:[#allocation2] sm:$0xff] %v1761
      %1798 = vst [vmem:[#allocation2 + $0x8] sm:$0xff] %v1762
      %1799 = vst [vmem:[#allocation2 + $0x10] sm:$0xff] %v1763
      %1800 = vst [vmem:[#allocation2 + $0x18] sm:$0xff] %v1764
      %1801 = vst [vmem:[#allocation2 + $0x20] sm:$0xff] %v1765
      %1802 = vst [vmem:[#allocation2 + $0x28] sm:$0xff] %v1766
      %1803 = vst [vmem:[#allocation2 + $0x30] sm:$0xff] %v1767
      %1804 = vst [vmem:[#allocation2 + $0x38] sm:$0xff] %v1768
      %1805 = vst [vmem:[#allocation2 + $0x40] sm:$0xff] %v1769
      %1806 = vst [vmem:[#allocation2 + $0x48] sm:$0xff] %v1770
      %1807 = vst [vmem:[#allocation2 + $0x50] sm:$0xff] %v1771
      %1808 = vst [vmem:[#allocation2 + $0x58] sm:$0xff] %v1772
      %1809 = vst [vmem:[#allocation2 + $0x60] sm:$0xff] %v1773
      %1810 = vst [vmem:[#allocation2 + $0x68] sm:$0xff] %v1774
      %1811 = vst [vmem:[#allocation2 + $0x70] sm:$0xff] %v1775
      %1812 = vst [vmem:[#allocation2 + $0x78] sm:$0xff] %v1776
      %1813 = vst [vmem:[#allocation2 + $0x80] sm:$0xff] %v1777
      %1814 = vst [vmem:[#allocation2 + $0x88] sm:$0xff] %v1778
      %1815 = vst [vmem:[#allocation2 + $0x90] sm:$0xff] %v1779
      %1816 = vst [vmem:[#allocation2 + $0x98] sm:$0xff] %v1780
      %1817 = vst [vmem:[#allocation2 + $0xa0] sm:$0xff] %v1781
      %1818 = vst [vmem:[#allocation2 + $0xa8] sm:$0xff] %v1782
      %1819 = vst [vmem:[#allocation2 + $0xb0] sm:$0xff] %v1783
      %1820 = vst [vmem:[#allocation2 + $0xb8] sm:$0xff] %v1784
      %1821 = vst [vmem:[#allocation2 + $0xc0] sm:$0xff] %v1785
      %1822 = vst [vmem:[#allocation2 + $0xc8] sm:$0xff] %v1786
      %1823 = vst [vmem:[#allocation2 + $0xd0] sm:$0xff] %v1787
      %1824 = vst [vmem:[#allocation2 + $0xd8] sm:$0xff] %v1788
      %1825 = vst [vmem:[#allocation2 + $0xe0] sm:$0xff] %v1789
      %1826 = vst [vmem:[#allocation2 + $0xe8] sm:$0xff] %v1790
      %1827 = vst [vmem:[#allocation2 + $0xf0] sm:$0xff] %v1791
      %1828 = vst [vmem:[#allocation2 + $0xf8] sm:$0xff] %v1792
      %1829 = vst [vmem:[#allocation2 + $0x100] sm:$0xff] %v1793
      %1830 = vst [vmem:[#allocation2 + $0x108] sm:$0xff] %v1794
      %1831 = vst [vmem:[#allocation2 + $0x110] sm:$0xff] %v1795
      %1832 = vst [vmem:[#allocation2 + $0x118] sm:$0xff] %v1796
      %v1833 = vld [vmem:[#allocation2] sm:$0xff]
      %v1834 = vld [vmem:[#allocation2 + $0x8] sm:$0xff]
      %v1835 = vld [vmem:[#allocation2 + $0x10] sm:$0xff]
      %v1836 = vld [vmem:[#allocation2 + $0x18] sm:$0xff]
      %v1837 = vld [vmem:[#allocation2 + $0x20] sm:$0xff]
      %v1838 = vld [vmem:[#allocation2 + $0x28] sm:$0xff]
      %v1839 = vld [vmem:[#allocation2 + $0x30] sm:$0xff]
      %v1840 = vld [vmem:[#allocation2 + $0x38] sm:$0xff]
      %v1841 = vld [vmem:[#allocation2 + $0x40] sm:$0xff]
      %v1842 = vld [vmem:[#allocation2 + $0x48] sm:$0xff]
      %v1843 = vld [vmem:[#allocation2 + $0x50] sm:$0xff]
      %v1844 = vld [vmem:[#allocation2 + $0x58] sm:$0xff]
      %v1845 = vld [vmem:[#allocation2 + $0x60] sm:$0xff]
      %v1846 = vld [vmem:[#allocation2 + $0x68] sm:$0xff]
      %v1847 = vld [vmem:[#allocation2 + $0x70] sm:$0xff]
      %v1848 = vld [vmem:[#allocation2 + $0x78] sm:$0xff]
      %v1849 = vld [vmem:[#allocation2 + $0x80] sm:$0xff]
      %v1850 = vld [vmem:[#allocation2 + $0x88] sm:$0xff]
      %v1851 = vld [vmem:[#allocation2 + $0x90] sm:$0xff]
      %v1852 = vld [vmem:[#allocation2 + $0x98] sm:$0xff]
      %v1853 = vld [vmem:[#allocation2 + $0xa0] sm:$0xff]
      %v1854 = vld [vmem:[#allocation2 + $0xa8] sm:$0xff]
      %v1855 = vld [vmem:[#allocation2 + $0xb0] sm:$0xff]
      %v1856 = vld [vmem:[#allocation2 + $0xb8] sm:$0xff]
      %v1857 = vld [vmem:[#allocation2 + $0xc0] sm:$0xff]
      %v1858 = vld [vmem:[#allocation2 + $0xc8] sm:$0xff]
      %v1859 = vld [vmem:[#allocation2 + $0xd0] sm:$0xff]
      %v1860 = vld [vmem:[#allocation2 + $0xd8] sm:$0xff]
      %v1861 = vld [vmem:[#allocation2 + $0xe0] sm:$0xff]
      %v1862 = vld [vmem:[#allocation2 + $0xe8] sm:$0xff]
      %v1863 = vld [vmem:[#allocation2 + $0xf0] sm:$0xff]
      %v1864 = vld [vmem:[#allocation2 + $0xf8] sm:$0xff]
      %v1865 = vld [vmem:[#allocation2 + $0x100] sm:$0xff]
      %v1866 = vld [vmem:[#allocation2 + $0x108] sm:$0xff]
      %v1867 = vld [vmem:[#allocation2 + $0x110] sm:$0xff]
      %v1868 = vld [vmem:[#allocation2 + $0x118] sm:$0xff]
      %s1869 = scalar_lea.vmem %s1, 10
      %v1870 = vld [vmem:[%s1869] sm:$0x3]
      %vm1871 = vcmask 1045504
      %v1872 = vrot.slane %v250, 2
      %v1873 = vrot.slane %v251, 2
      %v1874 = vsel %vm1871, %v1872, %v1873
      %v1875 = vrot.slane %v252, 2
      %v1876 = vsel %vm1871, %v1873, %v1875
      %v1877 = vrot.slane %v253, 2
      %v1878 = vsel %vm1871, %v1875, %v1877
      %v1879 = vrot.slane %v254, 2
      %v1880 = vsel %vm1871, %v1877, %v1879
      %v1881 = vrot.slane %v255, 2
      %v1882 = vsel %vm1871, %v1879, %v1881
      %v1883 = vrot.slane %v256, 2
      %v1884 = vsel %vm1871, %v1881, %v1883
      %v1885 = vrot.slane %v257, 2
      %v1886 = vsel %vm1871, %v1883, %v1885
      %v1887 = vrot.slane %v258, 2
      %v1888 = vsel %vm1871, %v1885, %v1887
      %v1889 = vrot.slane %v259, 2
      %v1890 = vsel %vm1871, %v1887, %v1889
      %v1891 = vrot.slane %v260, 2
      %v1892 = vsel %vm1871, %v1889, %v1891
      %v1893 = vrot.slane %v261, 2
      %v1894 = vsel %vm1871, %v1891, %v1893
      %v1895 = vrot.slane %v262, 2
      %v1896 = vsel %vm1871, %v1893, %v1895
      %v1897 = vrot.slane %v263, 2
      %v1898 = vsel %vm1871, %v1895, %v1897
      %v1899 = vrot.slane %v264, 2
      %v1900 = vsel %vm1871, %v1897, %v1899
      %v1901 = vrot.slane %v265, 2
      %v1902 = vsel %vm1871, %v1899, %v1901
      %v1903 = vrot.slane %v266, 2
      %v1904 = vsel %vm1871, %v1901, %v1903
      %v1905 = vrot.slane %v1255, 2
      %v1906 = vsel %vm1871, %v1903, %v1905
      %v1907 = vrot.slane %v1256, 2
      %v1908 = vsel %vm1871, %v1905, %v1907
      %v1910 = vsel %vm304, %v1874, 0
      %v1913 = vsel %vm304, %v1876, 0
      %v1916 = vsel %vm304, %v1878, 0
      %v1919 = vsel %vm304, %v1880, 0
      %v1922 = vsel %vm304, %v1882, 0
      %v1925 = vsel %vm304, %v1884, 0
      %v1928 = vsel %vm304, %v1886, 0
      %v1931 = vsel %vm304, %v1888, 0
      %v1934 = vsel %vm304, %v1890, 0
      %v1937 = vsel %vm304, %v1892, 0
      %v1940 = vsel %vm304, %v1894, 0
      %v1943 = vsel %vm304, %v1896, 0
      %v1946 = vsel %vm304, %v1898, 0
      %v1949 = vsel %vm304, %v1900, 0
      %v1952 = vsel %vm304, %v1902, 0
      %v1955 = vsel %vm304, %v1904, 0
      %v1958 = vsel %vm304, %v1906, 0
      %v1961 = vsel %vm304, %v1908, 0
      %v1964 = vsel %vm359, %v1870, 0
      %1966 = vmatpush.bf16.msra.mxu0 0
      %1967 = vmatpush.bf16.msra.mxu0 0
      %1968 = vmatpush.bf16.msra.mxu0 0
      %1969 = vmatpush.bf16.msra.mxu0 0
      %1970 = vmatpush.bf16.msra.mxu0 0
      %1971 = vmatpush.bf16.msra.mxu0 0
      %1972 = vmatpush.bf16.msra.mxu0 0
      %1973 = vmatpush.bf16.msra.mxu0 %v1964
      %1974 = vmatmul.bf16.gmra.mxu0 %v1910
      %v1975 = vpop.f32.mrf.mxu0
      %v1976 = vadd.f32 0.0, %v1975
      %v1977 = vpop.f32.mrf.mxu0
      %v1978 = vadd.f32 0.0, %v1977
      %1979 = vmatmul.bf16.gmra.mxu0 %v1913
      %v1980 = vpop.f32.mrf.mxu0
      %v1981 = vadd.f32 0.0, %v1980
      %v1982 = vpop.f32.mrf.mxu0
      %v1983 = vadd.f32 0.0, %v1982
      %1984 = vmatmul.bf16.gmra.mxu0 %v1916
      %v1985 = vpop.f32.mrf.mxu0
      %v1986 = vadd.f32 0.0, %v1985
      %v1987 = vpop.f32.mrf.mxu0
      %v1988 = vadd.f32 0.0, %v1987
      %1989 = vmatmul.bf16.gmra.mxu0 %v1919
      %v1990 = vpop.f32.mrf.mxu0
      %v1991 = vadd.f32 0.0, %v1990
      %v1992 = vpop.f32.mrf.mxu0
      %v1993 = vadd.f32 0.0, %v1992
      %1994 = vmatmul.bf16.gmra.mxu0 %v1922
      %v1995 = vpop.f32.mrf.mxu0
      %v1996 = vadd.f32 0.0, %v1995
      %v1997 = vpop.f32.mrf.mxu0
      %v1998 = vadd.f32 0.0, %v1997
      %1999 = vmatmul.bf16.gmra.mxu0 %v1925
      %v2000 = vpop.f32.mrf.mxu0
      %v2001 = vadd.f32 0.0, %v2000
      %v2002 = vpop.f32.mrf.mxu0
      %v2003 = vadd.f32 0.0, %v2002
      %2004 = vmatmul.bf16.gmra.mxu0 %v1928
      %v2005 = vpop.f32.mrf.mxu0
      %v2006 = vadd.f32 0.0, %v2005
      %v2007 = vpop.f32.mrf.mxu0
      %v2008 = vadd.f32 0.0, %v2007
      %2009 = vmatmul.bf16.gmra.mxu0 %v1931
      %v2010 = vpop.f32.mrf.mxu0
      %v2011 = vadd.f32 0.0, %v2010
      %v2012 = vpop.f32.mrf.mxu0
      %v2013 = vadd.f32 0.0, %v2012
      %2014 = vmatmul.bf16.gmra.mxu0 %v1934
      %v2015 = vpop.f32.mrf.mxu0
      %v2016 = vadd.f32 0.0, %v2015
      %v2017 = vpop.f32.mrf.mxu0
      %v2018 = vadd.f32 0.0, %v2017
      %2019 = vmatmul.bf16.gmra.mxu0 %v1937
      %v2020 = vpop.f32.mrf.mxu0
      %v2021 = vadd.f32 0.0, %v2020
      %v2022 = vpop.f32.mrf.mxu0
      %v2023 = vadd.f32 0.0, %v2022
      %2024 = vmatmul.bf16.gmra.mxu0 %v1940
      %v2025 = vpop.f32.mrf.mxu0
      %v2026 = vadd.f32 0.0, %v2025
      %v2027 = vpop.f32.mrf.mxu0
      %v2028 = vadd.f32 0.0, %v2027
      %2029 = vmatmul.bf16.gmra.mxu0 %v1943
      %v2030 = vpop.f32.mrf.mxu0
      %v2031 = vadd.f32 0.0, %v2030
      %v2032 = vpop.f32.mrf.mxu0
      %v2033 = vadd.f32 0.0, %v2032
      %2034 = vmatmul.bf16.gmra.mxu0 %v1946
      %v2035 = vpop.f32.mrf.mxu0
      %v2036 = vadd.f32 0.0, %v2035
      %v2037 = vpop.f32.mrf.mxu0
      %v2038 = vadd.f32 0.0, %v2037
      %2039 = vmatmul.bf16.gmra.mxu0 %v1949
      %v2040 = vpop.f32.mrf.mxu0
      %v2041 = vadd.f32 0.0, %v2040
      %v2042 = vpop.f32.mrf.mxu0
      %v2043 = vadd.f32 0.0, %v2042
      %2044 = vmatmul.bf16.gmra.mxu0 %v1952
      %v2045 = vpop.f32.mrf.mxu0
      %v2046 = vadd.f32 0.0, %v2045
      %v2047 = vpop.f32.mrf.mxu0
      %v2048 = vadd.f32 0.0, %v2047
      %2049 = vmatmul.bf16.gmra.mxu0 %v1955
      %v2050 = vpop.f32.mrf.mxu0
      %v2051 = vadd.f32 0.0, %v2050
      %v2052 = vpop.f32.mrf.mxu0
      %v2053 = vadd.f32 0.0, %v2052
      %2054 = vmatmul.bf16.gmra.mxu0 %v1958
      %v2055 = vpop.f32.mrf.mxu0
      %v2056 = vadd.f32 0.0, %v2055
      %v2057 = vpop.f32.mrf.mxu0
      %v2058 = vadd.f32 0.0, %v2057
      %2059 = vmatmul.bf16.gmra.mxu0 %v1961
      %v2060 = vpop.f32.mrf.mxu0
      %v2061 = vadd.f32 0.0, %v2060
      %v2062 = vpop.f32.mrf.mxu0
      %v2063 = vadd.f32 0.0, %v2062
      %2064 = vdwg.mxu0
      %v2065 = vadd.f32 %v1833, %v1976
      %v2066 = vadd.f32 %v1834, %v1978
      %v2067 = vadd.f32 %v1835, %v1981
      %v2068 = vadd.f32 %v1836, %v1983
      %v2069 = vadd.f32 %v1837, %v1986
      %v2070 = vadd.f32 %v1838, %v1988
      %v2071 = vadd.f32 %v1839, %v1991
      %v2072 = vadd.f32 %v1840, %v1993
      %v2073 = vadd.f32 %v1841, %v1996
      %v2074 = vadd.f32 %v1842, %v1998
      %v2075 = vadd.f32 %v1843, %v2001
      %v2076 = vadd.f32 %v1844, %v2003
      %v2077 = vadd.f32 %v1845, %v2006
      %v2078 = vadd.f32 %v1846, %v2008
      %v2079 = vadd.f32 %v1847, %v2011
      %v2080 = vadd.f32 %v1848, %v2013
      %v2081 = vadd.f32 %v1849, %v2016
      %v2082 = vadd.f32 %v1850, %v2018
      %v2083 = vadd.f32 %v1851, %v2021
      %v2084 = vadd.f32 %v1852, %v2023
      %v2085 = vadd.f32 %v1853, %v2026
      %v2086 = vadd.f32 %v1854, %v2028
      %v2087 = vadd.f32 %v1855, %v2031
      %v2088 = vadd.f32 %v1856, %v2033
      %v2089 = vadd.f32 %v1857, %v2036
      %v2090 = vadd.f32 %v1858, %v2038
      %v2091 = vadd.f32 %v1859, %v2041
      %v2092 = vadd.f32 %v1860, %v2043
      %v2093 = vadd.f32 %v1861, %v2046
      %v2094 = vadd.f32 %v1862, %v2048
      %v2095 = vadd.f32 %v1863, %v2051
      %v2096 = vadd.f32 %v1864, %v2053
      %v2097 = vadd.f32 %v1865, %v2056
      %v2098 = vadd.f32 %v1866, %v2058
      %v2099 = vadd.f32 %v1867, %v2061
      %v2100 = vadd.f32 %v1868, %v2063
      %2101 = vst [vmem:[#allocation2] sm:$0xff] %v2065
      %2102 = vst [vmem:[#allocation2 + $0x8] sm:$0xff] %v2066
      %2103 = vst [vmem:[#allocation2 + $0x10] sm:$0xff] %v2067
      %2104 = vst [vmem:[#allocation2 + $0x18] sm:$0xff] %v2068
      %2105 = vst [vmem:[#allocation2 + $0x20] sm:$0xff] %v2069
      %2106 = vst [vmem:[#allocation2 + $0x28] sm:$0xff] %v2070
      %2107 = vst [vmem:[#allocation2 + $0x30] sm:$0xff] %v2071
      %2108 = vst [vmem:[#allocation2 + $0x38] sm:$0xff] %v2072
      %2109 = vst [vmem:[#allocation2 + $0x40] sm:$0xff] %v2073
      %2110 = vst [vmem:[#allocation2 + $0x48] sm:$0xff] %v2074
      %2111 = vst [vmem:[#allocation2 + $0x50] sm:$0xff] %v2075
      %2112 = vst [vmem:[#allocation2 + $0x58] sm:$0xff] %v2076
      %2113 = vst [vmem:[#allocation2 + $0x60] sm:$0xff] %v2077
      %2114 = vst [vmem:[#allocation2 + $0x68] sm:$0xff] %v2078
      %2115 = vst [vmem:[#allocation2 + $0x70] sm:$0xff] %v2079
      %2116 = vst [vmem:[#allocation2 + $0x78] sm:$0xff] %v2080
      %2117 = vst [vmem:[#allocation2 + $0x80] sm:$0xff] %v2081
      %2118 = vst [vmem:[#allocation2 + $0x88] sm:$0xff] %v2082
      %2119 = vst [vmem:[#allocation2 + $0x90] sm:$0xff] %v2083
      %2120 = vst [vmem:[#allocation2 + $0x98] sm:$0xff] %v2084
      %2121 = vst [vmem:[#allocation2 + $0xa0] sm:$0xff] %v2085
      %2122 = vst [vmem:[#allocation2 + $0xa8] sm:$0xff] %v2086
      %2123 = vst [vmem:[#allocation2 + $0xb0] sm:$0xff] %v2087
      %2124 = vst [vmem:[#allocation2 + $0xb8] sm:$0xff] %v2088
      %2125 = vst [vmem:[#allocation2 + $0xc0] sm:$0xff] %v2089
      %2126 = vst [vmem:[#allocation2 + $0xc8] sm:$0xff] %v2090
      %2127 = vst [vmem:[#allocation2 + $0xd0] sm:$0xff] %v2091
      %2128 = vst [vmem:[#allocation2 + $0xd8] sm:$0xff] %v2092
      %2129 = vst [vmem:[#allocation2 + $0xe0] sm:$0xff] %v2093
      %2130 = vst [vmem:[#allocation2 + $0xe8] sm:$0xff] %v2094
      %2131 = vst [vmem:[#allocation2 + $0xf0] sm:$0xff] %v2095
      %2132 = vst [vmem:[#allocation2 + $0xf8] sm:$0xff] %v2096
      %2133 = vst [vmem:[#allocation2 + $0x100] sm:$0xff] %v2097
      %2134 = vst [vmem:[#allocation2 + $0x108] sm:$0xff] %v2098
      %2135 = vst [vmem:[#allocation2 + $0x110] sm:$0xff] %v2099
      %2136 = vst [vmem:[#allocation2 + $0x118] sm:$0xff] %v2100
      %v2137 = vpack.c.bf16 %v247, %v246
      %v2138 = vpack.c.bf16 %v248, %v248
      %v2139 = vld [vmem:[#allocation2] sm:$0xff]
      %v2140 = vld [vmem:[#allocation2 + $0x8] sm:$0xff]
      %v2141 = vld [vmem:[#allocation2 + $0x10] sm:$0xff]
      %v2142 = vld [vmem:[#allocation2 + $0x18] sm:$0xff]
      %v2143 = vld [vmem:[#allocation2 + $0x20] sm:$0xff]
      %v2144 = vld [vmem:[#allocation2 + $0x28] sm:$0xff]
      %v2145 = vld [vmem:[#allocation2 + $0x30] sm:$0xff]
      %v2146 = vld [vmem:[#allocation2 + $0x38] sm:$0xff]
      %v2147 = vld [vmem:[#allocation2 + $0x40] sm:$0xff]
      %v2148 = vld [vmem:[#allocation2 + $0x48] sm:$0xff]
      %v2149 = vld [vmem:[#allocation2 + $0x50] sm:$0xff]
      %v2150 = vld [vmem:[#allocation2 + $0x58] sm:$0xff]
      %v2151 = vld [vmem:[#allocation2 + $0x60] sm:$0xff]
      %v2152 = vld [vmem:[#allocation2 + $0x68] sm:$0xff]
      %v2153 = vld [vmem:[#allocation2 + $0x70] sm:$0xff]
      %v2154 = vld [vmem:[#allocation2 + $0x78] sm:$0xff]
      %v2155 = vld [vmem:[#allocation2 + $0x80] sm:$0xff]
      %v2156 = vld [vmem:[#allocation2 + $0x88] sm:$0xff]
      %v2157 = vld [vmem:[#allocation2 + $0x90] sm:$0xff]
      %v2158 = vld [vmem:[#allocation2 + $0x98] sm:$0xff]
      %v2159 = vld [vmem:[#allocation2 + $0xa0] sm:$0xff]
      %v2160 = vld [vmem:[#allocation2 + $0xa8] sm:$0xff]
      %v2161 = vld [vmem:[#allocation2 + $0xb0] sm:$0xff]
      %v2162 = vld [vmem:[#allocation2 + $0xb8] sm:$0xff]
      %v2163 = vld [vmem:[#allocation2 + $0xc0] sm:$0xff]
      %v2164 = vld [vmem:[#allocation2 + $0xc8] sm:$0xff]
      %v2165 = vld [vmem:[#allocation2 + $0xd0] sm:$0xff]
      %v2166 = vld [vmem:[#allocation2 + $0xd8] sm:$0xff]
      %v2167 = vld [vmem:[#allocation2 + $0xe0] sm:$0xff]
      %v2168 = vld [vmem:[#allocation2 + $0xe8] sm:$0xff]
      %v2169 = vld [vmem:[#allocation2 + $0xf0] sm:$0xff]
      %v2170 = vld [vmem:[#allocation2 + $0xf8] sm:$0xff]
      %v2171 = vld [vmem:[#allocation2 + $0x100] sm:$0xff]
      %v2172 = vld [vmem:[#allocation2 + $0x108] sm:$0xff]
      %v2173 = vld [vmem:[#allocation2 + $0x110] sm:$0xff]
      %v2174 = vld [vmem:[#allocation2 + $0x118] sm:$0xff]
      %s2175 = scalar_lea.vmem %s1, 12
      %v2176 = vld [vmem:[%s2175] sm:$0x3]
      %v2179 = vrot.slane %v2137, 2
      %v2180 = vsel %vm1871, %v1905, %v2179
      %v2181 = vrot.slane %v2138, 2
      %v2182 = vsel %vm1871, %v2179, %v2181
      %v2184 = vsel %vm304, %v2180, 0
      %v2187 = vsel %vm304, %v2182, 0
      %v2190 = vsel %vm359, %v2176, 0
      %2192 = vmatpush.bf16.msra.mxu0 0
      %2193 = vmatpush.bf16.msra.mxu0 0
      %2194 = vmatpush.bf16.msra.mxu0 0
      %2195 = vmatpush.bf16.msra.mxu0 0
      %2196 = vmatpush.bf16.msra.mxu0 0
      %2197 = vmatpush.bf16.msra.mxu0 0
      %2198 = vmatpush.bf16.msra.mxu0 0
      %2199 = vmatpush.bf16.msra.mxu0 %v2190
      %2200 = vmatmul.bf16.gmra.mxu0 %v1913
      %v2201 = vpop.f32.mrf.mxu0
      %v2202 = vadd.f32 0.0, %v2201
      %v2203 = vpop.f32.mrf.mxu0
      %v2204 = vadd.f32 0.0, %v2203
      %2205 = vmatmul.bf16.gmra.mxu0 %v1916
      %v2206 = vpop.f32.mrf.mxu0
      %v2207 = vadd.f32 0.0, %v2206
      %v2208 = vpop.f32.mrf.mxu0
      %v2209 = vadd.f32 0.0, %v2208
      %2210 = vmatmul.bf16.gmra.mxu0 %v1919
      %v2211 = vpop.f32.mrf.mxu0
      %v2212 = vadd.f32 0.0, %v2211
      %v2213 = vpop.f32.mrf.mxu0
      %v2214 = vadd.f32 0.0, %v2213
      %2215 = vmatmul.bf16.gmra.mxu0 %v1922
      %v2216 = vpop.f32.mrf.mxu0
      %v2217 = vadd.f32 0.0, %v2216
      %v2218 = vpop.f32.mrf.mxu0
      %v2219 = vadd.f32 0.0, %v2218
      %2220 = vmatmul.bf16.gmra.mxu0 %v1925
      %v2221 = vpop.f32.mrf.mxu0
      %v2222 = vadd.f32 0.0, %v2221
      %v2223 = vpop.f32.mrf.mxu0
      %v2224 = vadd.f32 0.0, %v2223
      %2225 = vmatmul.bf16.gmra.mxu0 %v1928
      %v2226 = vpop.f32.mrf.mxu0
      %v2227 = vadd.f32 0.0, %v2226
      %v2228 = vpop.f32.mrf.mxu0
      %v2229 = vadd.f32 0.0, %v2228
      %2230 = vmatmul.bf16.gmra.mxu0 %v1931
      %v2231 = vpop.f32.mrf.mxu0
      %v2232 = vadd.f32 0.0, %v2231
      %v2233 = vpop.f32.mrf.mxu0
      %v2234 = vadd.f32 0.0, %v2233
      %2235 = vmatmul.bf16.gmra.mxu0 %v1934
      %v2236 = vpop.f32.mrf.mxu0
      %v2237 = vadd.f32 0.0, %v2236
      %v2238 = vpop.f32.mrf.mxu0
      %v2239 = vadd.f32 0.0, %v2238
      %2240 = vmatmul.bf16.gmra.mxu0 %v1937
      %v2241 = vpop.f32.mrf.mxu0
      %v2242 = vadd.f32 0.0, %v2241
      %v2243 = vpop.f32.mrf.mxu0
      %v2244 = vadd.f32 0.0, %v2243
      %2245 = vmatmul.bf16.gmra.mxu0 %v1940
      %v2246 = vpop.f32.mrf.mxu0
      %v2247 = vadd.f32 0.0, %v2246
      %v2248 = vpop.f32.mrf.mxu0
      %v2249 = vadd.f32 0.0, %v2248
      %2250 = vmatmul.bf16.gmra.mxu0 %v1943
      %v2251 = vpop.f32.mrf.mxu0
      %v2252 = vadd.f32 0.0, %v2251
      %v2253 = vpop.f32.mrf.mxu0
      %v2254 = vadd.f32 0.0, %v2253
      %2255 = vmatmul.bf16.gmra.mxu0 %v1946
      %v2256 = vpop.f32.mrf.mxu0
      %v2257 = vadd.f32 0.0, %v2256
      %v2258 = vpop.f32.mrf.mxu0
      %v2259 = vadd.f32 0.0, %v2258
      %2260 = vmatmul.bf16.gmra.mxu0 %v1949
      %v2261 = vpop.f32.mrf.mxu0
      %v2262 = vadd.f32 0.0, %v2261
      %v2263 = vpop.f32.mrf.mxu0
      %v2264 = vadd.f32 0.0, %v2263
      %2265 = vmatmul.bf16.gmra.mxu0 %v1952
      %v2266 = vpop.f32.mrf.mxu0
      %v2267 = vadd.f32 0.0, %v2266
      %v2268 = vpop.f32.mrf.mxu0
      %v2269 = vadd.f32 0.0, %v2268
      %2270 = vmatmul.bf16.gmra.mxu0 %v1955
      %v2271 = vpop.f32.mrf.mxu0
      %v2272 = vadd.f32 0.0, %v2271
      %v2273 = vpop.f32.mrf.mxu0
      %v2274 = vadd.f32 0.0, %v2273
      %2275 = vmatmul.bf16.gmra.mxu0 %v1958
      %v2276 = vpop.f32.mrf.mxu0
      %v2277 = vadd.f32 0.0, %v2276
      %v2278 = vpop.f32.mrf.mxu0
      %v2279 = vadd.f32 0.0, %v2278
      %2280 = vmatmul.bf16.gmra.mxu0 %v2184
      %v2281 = vpop.f32.mrf.mxu0
      %v2282 = vadd.f32 0.0, %v2281
      %v2283 = vpop.f32.mrf.mxu0
      %v2284 = vadd.f32 0.0, %v2283
      %2285 = vmatmul.bf16.gmra.mxu0 %v2187
      %v2286 = vpop.f32.mrf.mxu0
      %v2287 = vadd.f32 0.0, %v2286
      %v2288 = vpop.f32.mrf.mxu0
      %v2289 = vadd.f32 0.0, %v2288
      %2290 = vdwg.mxu0
      %v2291 = vadd.f32 %v2139, %v2202
      %v2292 = vadd.f32 %v2140, %v2204
      %v2293 = vadd.f32 %v2141, %v2207
      %v2294 = vadd.f32 %v2142, %v2209
      %v2295 = vadd.f32 %v2143, %v2212
      %v2296 = vadd.f32 %v2144, %v2214
      %v2297 = vadd.f32 %v2145, %v2217
      %v2298 = vadd.f32 %v2146, %v2219
      %v2299 = vadd.f32 %v2147, %v2222
      %v2300 = vadd.f32 %v2148, %v2224
      %v2301 = vadd.f32 %v2149, %v2227
      %v2302 = vadd.f32 %v2150, %v2229
      %v2303 = vadd.f32 %v2151, %v2232
      %v2304 = vadd.f32 %v2152, %v2234
      %v2305 = vadd.f32 %v2153, %v2237
      %v2306 = vadd.f32 %v2154, %v2239
      %v2307 = vadd.f32 %v2155, %v2242
      %v2308 = vadd.f32 %v2156, %v2244
      %v2309 = vadd.f32 %v2157, %v2247
      %v2310 = vadd.f32 %v2158, %v2249
      %v2311 = vadd.f32 %v2159, %v2252
      %v2312 = vadd.f32 %v2160, %v2254
      %v2313 = vadd.f32 %v2161, %v2257
      %v2314 = vadd.f32 %v2162, %v2259
      %v2315 = vadd.f32 %v2163, %v2262
      %v2316 = vadd.f32 %v2164, %v2264
      %v2317 = vadd.f32 %v2165, %v2267
      %v2318 = vadd.f32 %v2166, %v2269
      %v2319 = vadd.f32 %v2167, %v2272
      %v2320 = vadd.f32 %v2168, %v2274
      %v2321 = vadd.f32 %v2169, %v2277
      %v2322 = vadd.f32 %v2170, %v2279
      %v2323 = vadd.f32 %v2171, %v2282
      %v2324 = vadd.f32 %v2172, %v2284
      %v2325 = vadd.f32 %v2173, %v2287
      %v2326 = vadd.f32 %v2174, %v2289
      %2327 = vst [vmem:[#allocation2] sm:$0xff] %v2291
      %2328 = vst [vmem:[#allocation2 + $0x8] sm:$0xff] %v2292
      %2329 = vst [vmem:[#allocation2 + $0x10] sm:$0xff] %v2293
      %2330 = vst [vmem:[#allocation2 + $0x18] sm:$0xff] %v2294
      %2331 = vst [vmem:[#allocation2 + $0x20] sm:$0xff] %v2295
      %2332 = vst [vmem:[#allocation2 + $0x28] sm:$0xff] %v2296
      %2333 = vst [vmem:[#allocation2 + $0x30] sm:$0xff] %v2297
      %2334 = vst [vmem:[#allocation2 + $0x38] sm:$0xff] %v2298
      %2335 = vst [vmem:[#allocation2 + $0x40] sm:$0xff] %v2299
      %2336 = vst [vmem:[#allocation2 + $0x48] sm:$0xff] %v2300
      %2337 = vst [vmem:[#allocation2 + $0x50] sm:$0xff] %v2301
      %2338 = vst [vmem:[#allocation2 + $0x58] sm:$0xff] %v2302
      %2339 = vst [vmem:[#allocation2 + $0x60] sm:$0xff] %v2303
      %2340 = vst [vmem:[#allocation2 + $0x68] sm:$0xff] %v2304
      %2341 = vst [vmem:[#allocation2 + $0x70] sm:$0xff] %v2305
      %2342 = vst [vmem:[#allocation2 + $0x78] sm:$0xff] %v2306
      %2343 = vst [vmem:[#allocation2 + $0x80] sm:$0xff] %v2307
      %2344 = vst [vmem:[#allocation2 + $0x88] sm:$0xff] %v2308
      %2345 = vst [vmem:[#allocation2 + $0x90] sm:$0xff] %v2309
      %2346 = vst [vmem:[#allocation2 + $0x98] sm:$0xff] %v2310
      %2347 = vst [vmem:[#allocation2 + $0xa0] sm:$0xff] %v2311
      %2348 = vst [vmem:[#allocation2 + $0xa8] sm:$0xff] %v2312
      %2349 = vst [vmem:[#allocation2 + $0xb0] sm:$0xff] %v2313
      %2350 = vst [vmem:[#allocation2 + $0xb8] sm:$0xff] %v2314
      %2351 = vst [vmem:[#allocation2 + $0xc0] sm:$0xff] %v2315
      %2352 = vst [vmem:[#allocation2 + $0xc8] sm:$0xff] %v2316
      %2353 = vst [vmem:[#allocation2 + $0xd0] sm:$0xff] %v2317
      %2354 = vst [vmem:[#allocation2 + $0xd8] sm:$0xff] %v2318
      %2355 = vst [vmem:[#allocation2 + $0xe0] sm:$0xff] %v2319
      %2356 = vst [vmem:[#allocation2 + $0xe8] sm:$0xff] %v2320
      %2357 = vst [vmem:[#allocation2 + $0xf0] sm:$0xff] %v2321
      %2358 = vst [vmem:[#allocation2 + $0xf8] sm:$0xff] %v2322
      %2359 = vst [vmem:[#allocation2 + $0x100] sm:$0xff] %v2323
      %2360 = vst [vmem:[#allocation2 + $0x108] sm:$0xff] %v2324
      %2361 = vst [vmem:[#allocation2 + $0x110] sm:$0xff] %v2325
      %2362 = vst [vmem:[#allocation2 + $0x118] sm:$0xff] %v2326
      %v2363 = vld [vmem:[#allocation2] sm:$0xff]
      %v2364 = vld [vmem:[#allocation2 + $0x8] sm:$0xff]
      %v2365 = vld [vmem:[#allocation2 + $0x10] sm:$0xff]
      %v2366 = vld [vmem:[#allocation2 + $0x18] sm:$0xff]
      %v2367 = vld [vmem:[#allocation2 + $0x20] sm:$0xff]
      %v2368 = vld [vmem:[#allocation2 + $0x28] sm:$0xff]
      %v2369 = vld [vmem:[#allocation2 + $0x30] sm:$0xff]
      %v2370 = vld [vmem:[#allocation2 + $0x38] sm:$0xff]
      %v2371 = vld [vmem:[#allocation2 + $0x40] sm:$0xff]
      %v2372 = vld [vmem:[#allocation2 + $0x48] sm:$0xff]
      %v2373 = vld [vmem:[#allocation2 + $0x50] sm:$0xff]
      %v2374 = vld [vmem:[#allocation2 + $0x58] sm:$0xff]
      %v2375 = vld [vmem:[#allocation2 + $0x60] sm:$0xff]
      %v2376 = vld [vmem:[#allocation2 + $0x68] sm:$0xff]
      %v2377 = vld [vmem:[#allocation2 + $0x70] sm:$0xff]
      %v2378 = vld [vmem:[#allocation2 + $0x78] sm:$0xff]
      %v2379 = vld [vmem:[#allocation2 + $0x80] sm:$0xff]
      %v2380 = vld [vmem:[#allocation2 + $0x88] sm:$0xff]
      %v2381 = vld [vmem:[#allocation2 + $0x90] sm:$0xff]
      %v2382 = vld [vmem:[#allocation2 + $0x98] sm:$0xff]
      %v2383 = vld [vmem:[#allocation2 + $0xa0] sm:$0xff]
      %v2384 = vld [vmem:[#allocation2 + $0xa8] sm:$0xff]
      %v2385 = vld [vmem:[#allocation2 + $0xb0] sm:$0xff]
      %v2386 = vld [vmem:[#allocation2 + $0xb8] sm:$0xff]
      %v2387 = vld [vmem:[#allocation2 + $0xc0] sm:$0xff]
      %v2388 = vld [vmem:[#allocation2 + $0xc8] sm:$0xff]
      %v2389 = vld [vmem:[#allocation2 + $0xd0] sm:$0xff]
      %v2390 = vld [vmem:[#allocation2 + $0xd8] sm:$0xff]
      %v2391 = vld [vmem:[#allocation2 + $0xe0] sm:$0xff]
      %v2392 = vld [vmem:[#allocation2 + $0xe8] sm:$0xff]
      %v2393 = vld [vmem:[#allocation2 + $0xf0] sm:$0xff]
      %v2394 = vld [vmem:[#allocation2 + $0xf8] sm:$0xff]
      %v2395 = vld [vmem:[#allocation2 + $0x100] sm:$0xff]
      %v2396 = vld [vmem:[#allocation2 + $0x108] sm:$0xff]
      %v2397 = vld [vmem:[#allocation2 + $0x110] sm:$0xff]
      %v2398 = vld [vmem:[#allocation2 + $0x118] sm:$0xff]
      %s2399 = scalar_lea.vmem %s1, 14
      %v2400 = vld [vmem:[%s2399] sm:$0x3]
      %vm2401 = vsmask.f32 5376
      %v2402 = vrot.slane %v591, 2
      %v2403 = vrot.slane %v587, 3
      %v2404 = vor.u32 %v2402, %v2403
      %v2405 = vrot.slane %v598, 2
      %v2406 = vrot.slane %v594, 3
      %v2407 = vor.u32 %v2405, %v2406
      %v2408 = vsel %vm2401, %v2404, %v2407
      %v2409 = vrot.slane %v605, 2
      %v2410 = vrot.slane %v601, 3
      %v2411 = vor.u32 %v2409, %v2410
      %v2412 = vsel %vm2401, %v2407, %v2411
      %v2413 = vrot.slane %v612, 2
      %v2414 = vrot.slane %v608, 3
      %v2415 = vor.u32 %v2413, %v2414
      %v2416 = vsel %vm2401, %v2411, %v2415
      %v2417 = vrot.slane %v619, 2
      %v2418 = vrot.slane %v615, 3
      %v2419 = vor.u32 %v2417, %v2418
      %v2420 = vsel %vm2401, %v2415, %v2419
      %v2421 = vrot.slane %v626, 2
      %v2422 = vrot.slane %v622, 3
      %v2423 = vor.u32 %v2421, %v2422
      %v2424 = vsel %vm2401, %v2419, %v2423
      %v2425 = vrot.slane %v633, 2
      %v2426 = vrot.slane %v629, 3
      %v2427 = vor.u32 %v2425, %v2426
      %v2428 = vsel %vm2401, %v2423, %v2427
      %v2429 = vrot.slane %v640, 2
      %v2430 = vrot.slane %v636, 3
      %v2431 = vor.u32 %v2429, %v2430
      %v2432 = vsel %vm2401, %v2427, %v2431
      %v2433 = vrot.slane %v647, 2
      %v2434 = vrot.slane %v643, 3
      %v2435 = vor.u32 %v2433, %v2434
      %v2436 = vsel %vm2401, %v2431, %v2435
      %v2437 = vrot.slane %v654, 2
      %v2438 = vrot.slane %v650, 3
      %v2439 = vor.u32 %v2437, %v2438
      %v2440 = vsel %vm2401, %v2435, %v2439
      %v2441 = vrot.slane %v661, 2
      %v2442 = vrot.slane %v657, 3
      %v2443 = vor.u32 %v2441, %v2442
      %v2444 = vsel %vm2401, %v2439, %v2443
      %v2445 = vrot.slane %v668, 2
      %v2446 = vrot.slane %v664, 3
      %v2447 = vor.u32 %v2445, %v2446
      %v2448 = vsel %vm2401, %v2443, %v2447
      %v2449 = vrot.slane %v675, 2
      %v2450 = vrot.slane %v671, 3
      %v2451 = vor.u32 %v2449, %v2450
      %v2452 = vsel %vm2401, %v2447, %v2451
      %v2453 = vrot.slane %v682, 2
      %v2454 = vrot.slane %v678, 3
      %v2455 = vor.u32 %v2453, %v2454
      %v2456 = vsel %vm2401, %v2451, %v2455
      %v2457 = vrot.slane %v689, 2
      %v2458 = vrot.slane %v685, 3
      %v2459 = vor.u32 %v2457, %v2458
      %v2460 = vsel %vm2401, %v2455, %v2459
      %v2461 = vrot.slane %v696, 2
      %v2462 = vrot.slane %v692, 3
      %v2463 = vor.u32 %v2461, %v2462
      %v2464 = vsel %vm2401, %v2459, %v2463
      %v2465 = vrot.slane %v1588, 2
      %v2466 = vrot.slane %v1591, 3
      %v2467 = vor.u32 %v2465, %v2466
      %v2468 = vsel %vm2401, %v2463, %v2467
      %v2470 = vshrl.u32 %v2137, 16
      %v2472 = vrot.slane %v2470, 2
      %v2473 = vshll.u32 %v2137, 16
      %v2475 = vrot.slane %v2473, 3
      %v2476 = vor.u32 %v2472, %v2475
      %v2477 = vsel %vm2401, %v2467, %v2476
      %v2479 = vshrl.u32 %v2138, 16
      %v2481 = vrot.slane %v2479, 2
      %v2482 = vshll.u32 %v2138, 16
      %v2484 = vrot.slane %v2482, 3
      %v2485 = vor.u32 %v2481, %v2484
      %v2486 = vsel %vm2401, %v2476, %v2485
      %v2488 = vsel %vm304, %v2408, 0
      %v2491 = vsel %vm304, %v2412, 0
      %v2494 = vsel %vm304, %v2416, 0
      %v2497 = vsel %vm304, %v2420, 0
      %v2500 = vsel %vm304, %v2424, 0
      %v2503 = vsel %vm304, %v2428, 0
      %v2506 = vsel %vm304, %v2432, 0
      %v2509 = vsel %vm304, %v2436, 0
      %v2512 = vsel %vm304, %v2440, 0
      %v2515 = vsel %vm304, %v2444, 0
      %v2518 = vsel %vm304, %v2448, 0
      %v2521 = vsel %vm304, %v2452, 0
      %v2524 = vsel %vm304, %v2456, 0
      %v2527 = vsel %vm304, %v2460, 0
      %v2530 = vsel %vm304, %v2464, 0
      %v2533 = vsel %vm304, %v2468, 0
      %v2536 = vsel %vm304, %v2477, 0
      %v2539 = vsel %vm304, %v2486, 0
      %v2542 = vsel %vm359, %v2400, 0
      %2544 = vmatpush.bf16.msra.mxu0 0
      %2545 = vmatpush.bf16.msra.mxu0 0
      %2546 = vmatpush.bf16.msra.mxu0 0
      %2547 = vmatpush.bf16.msra.mxu0 0
      %2548 = vmatpush.bf16.msra.mxu0 0
      %2549 = vmatpush.bf16.msra.mxu0 0
      %2550 = vmatpush.bf16.msra.mxu0 0
      %2551 = vmatpush.bf16.msra.mxu0 %v2542
      %2552 = vmatmul.bf16.gmra.mxu0 %v2488
      %v2553 = vpop.f32.mrf.mxu0
      %v2554 = vadd.f32 0.0, %v2553
      %v2555 = vpop.f32.mrf.mxu0
      %v2556 = vadd.f32 0.0, %v2555
      %2557 = vmatmul.bf16.gmra.mxu0 %v2491
      %v2558 = vpop.f32.mrf.mxu0
      %v2559 = vadd.f32 0.0, %v2558
      %v2560 = vpop.f32.mrf.mxu0
      %v2561 = vadd.f32 0.0, %v2560
      %2562 = vmatmul.bf16.gmra.mxu0 %v2494
      %v2563 = vpop.f32.mrf.mxu0
      %v2564 = vadd.f32 0.0, %v2563
      %v2565 = vpop.f32.mrf.mxu0
      %v2566 = vadd.f32 0.0, %v2565
      %2567 = vmatmul.bf16.gmra.mxu0 %v2497
      %v2568 = vpop.f32.mrf.mxu0
      %v2569 = vadd.f32 0.0, %v2568
      %v2570 = vpop.f32.mrf.mxu0
      %v2571 = vadd.f32 0.0, %v2570
      %2572 = vmatmul.bf16.gmra.mxu0 %v2500
      %v2573 = vpop.f32.mrf.mxu0
      %v2574 = vadd.f32 0.0, %v2573
      %v2575 = vpop.f32.mrf.mxu0
      %v2576 = vadd.f32 0.0, %v2575
      %2577 = vmatmul.bf16.gmra.mxu0 %v2503
      %v2578 = vpop.f32.mrf.mxu0
      %v2579 = vadd.f32 0.0, %v2578
      %v2580 = vpop.f32.mrf.mxu0
      %v2581 = vadd.f32 0.0, %v2580
      %2582 = vmatmul.bf16.gmra.mxu0 %v2506
      %v2583 = vpop.f32.mrf.mxu0
      %v2584 = vadd.f32 0.0, %v2583
      %v2585 = vpop.f32.mrf.mxu0
      %v2586 = vadd.f32 0.0, %v2585
      %2587 = vmatmul.bf16.gmra.mxu0 %v2509
      %v2588 = vpop.f32.mrf.mxu0
      %v2589 = vadd.f32 0.0, %v2588
      %v2590 = vpop.f32.mrf.mxu0
      %v2591 = vadd.f32 0.0, %v2590
      %2592 = vmatmul.bf16.gmra.mxu0 %v2512
      %v2593 = vpop.f32.mrf.mxu0
      %v2594 = vadd.f32 0.0, %v2593
      %v2595 = vpop.f32.mrf.mxu0
      %v2596 = vadd.f32 0.0, %v2595
      %2597 = vmatmul.bf16.gmra.mxu0 %v2515
      %v2598 = vpop.f32.mrf.mxu0
      %v2599 = vadd.f32 0.0, %v2598
      %v2600 = vpop.f32.mrf.mxu0
      %v2601 = vadd.f32 0.0, %v2600
      %2602 = vmatmul.bf16.gmra.mxu0 %v2518
      %v2603 = vpop.f32.mrf.mxu0
      %v2604 = vadd.f32 0.0, %v2603
      %v2605 = vpop.f32.mrf.mxu0
      %v2606 = vadd.f32 0.0, %v2605
      %2607 = vmatmul.bf16.gmra.mxu0 %v2521
      %v2608 = vpop.f32.mrf.mxu0
      %v2609 = vadd.f32 0.0, %v2608
      %v2610 = vpop.f32.mrf.mxu0
      %v2611 = vadd.f32 0.0, %v2610
      %2612 = vmatmul.bf16.gmra.mxu0 %v2524
      %v2613 = vpop.f32.mrf.mxu0
      %v2614 = vadd.f32 0.0, %v2613
      %v2615 = vpop.f32.mrf.mxu0
      %v2616 = vadd.f32 0.0, %v2615
      %2617 = vmatmul.bf16.gmra.mxu0 %v2527
      %v2618 = vpop.f32.mrf.mxu0
      %v2619 = vadd.f32 0.0, %v2618
      %v2620 = vpop.f32.mrf.mxu0
      %v2621 = vadd.f32 0.0, %v2620
      %2622 = vmatmul.bf16.gmra.mxu0 %v2530
      %v2623 = vpop.f32.mrf.mxu0
      %v2624 = vadd.f32 0.0, %v2623
      %v2625 = vpop.f32.mrf.mxu0
      %v2626 = vadd.f32 0.0, %v2625
      %2627 = vmatmul.bf16.gmra.mxu0 %v2533
      %v2628 = vpop.f32.mrf.mxu0
      %v2629 = vadd.f32 0.0, %v2628
      %v2630 = vpop.f32.mrf.mxu0
      %v2631 = vadd.f32 0.0, %v2630
      %2632 = vmatmul.bf16.gmra.mxu0 %v2536
      %v2633 = vpop.f32.mrf.mxu0
      %v2634 = vadd.f32 0.0, %v2633
      %v2635 = vpop.f32.mrf.mxu0
      %v2636 = vadd.f32 0.0, %v2635
      %2637 = vmatmul.bf16.gmra.mxu0 %v2539
      %v2638 = vpop.f32.mrf.mxu0
      %v2639 = vadd.f32 0.0, %v2638
      %v2640 = vpop.f32.mrf.mxu0
      %v2641 = vadd.f32 0.0, %v2640
      %2642 = vdwg.mxu0
      %v2643 = vadd.f32 %v2363, %v2554
      %v2644 = vadd.f32 %v2364, %v2556
      %v2645 = vadd.f32 %v2365, %v2559
      %v2646 = vadd.f32 %v2366, %v2561
      %v2647 = vadd.f32 %v2367, %v2564
      %v2648 = vadd.f32 %v2368, %v2566
      %v2649 = vadd.f32 %v2369, %v2569
      %v2650 = vadd.f32 %v2370, %v2571
      %v2651 = vadd.f32 %v2371, %v2574
      %v2652 = vadd.f32 %v2372, %v2576
      %v2653 = vadd.f32 %v2373, %v2579
      %v2654 = vadd.f32 %v2374, %v2581
      %v2655 = vadd.f32 %v2375, %v2584
      %v2656 = vadd.f32 %v2376, %v2586
      %v2657 = vadd.f32 %v2377, %v2589
      %v2658 = vadd.f32 %v2378, %v2591
      %v2659 = vadd.f32 %v2379, %v2594
      %v2660 = vadd.f32 %v2380, %v2596
      %v2661 = vadd.f32 %v2381, %v2599
      %v2662 = vadd.f32 %v2382, %v2601
      %v2663 = vadd.f32 %v2383, %v2604
      %v2664 = vadd.f32 %v2384, %v2606
      %v2665 = vadd.f32 %v2385, %v2609
      %v2666 = vadd.f32 %v2386, %v2611
      %v2667 = vadd.f32 %v2387, %v2614
      %v2668 = vadd.f32 %v2388, %v2616
      %v2669 = vadd.f32 %v2389, %v2619
      %v2670 = vadd.f32 %v2390, %v2621
      %v2671 = vadd.f32 %v2391, %v2624
      %v2672 = vadd.f32 %v2392, %v2626
      %v2673 = vadd.f32 %v2393, %v2629
      %v2674 = vadd.f32 %v2394, %v2631
      %v2675 = vadd.f32 %v2395, %v2634
      %v2676 = vadd.f32 %v2396, %v2636
      %v2677 = vadd.f32 %v2397, %v2639
      %v2678 = vadd.f32 %v2398, %v2641
      %2679 = vst [vmem:[#allocation2] sm:$0xff] %v2643
      %2680 = vst [vmem:[#allocation2 + $0x8] sm:$0xff] %v2644
      %2681 = vst [vmem:[#allocation2 + $0x10] sm:$0xff] %v2645
      %2682 = vst [vmem:[#allocation2 + $0x18] sm:$0xff] %v2646
      %2683 = vst [vmem:[#allocation2 + $0x20] sm:$0xff] %v2647
      %2684 = vst [vmem:[#allocation2 + $0x28] sm:$0xff] %v2648
      %2685 = vst [vmem:[#allocation2 + $0x30] sm:$0xff] %v2649
      %2686 = vst [vmem:[#allocation2 + $0x38] sm:$0xff] %v2650
      %2687 = vst [vmem:[#allocation2 + $0x40] sm:$0xff] %v2651
      %2688 = vst [vmem:[#allocation2 + $0x48] sm:$0xff] %v2652
      %2689 = vst [vmem:[#allocation2 + $0x50] sm:$0xff] %v2653
      %2690 = vst [vmem:[#allocation2 + $0x58] sm:$0xff] %v2654
      %2691 = vst [vmem:[#allocation2 + $0x60] sm:$0xff] %v2655
      %2692 = vst [vmem:[#allocation2 + $0x68] sm:$0xff] %v2656
      %2693 = vst [vmem:[#allocation2 + $0x70] sm:$0xff] %v2657
      %2694 = vst [vmem:[#allocation2 + $0x78] sm:$0xff] %v2658
      %2695 = vst [vmem:[#allocation2 + $0x80] sm:$0xff] %v2659
      %2696 = vst [vmem:[#allocation2 + $0x88] sm:$0xff] %v2660
      %2697 = vst [vmem:[#allocation2 + $0x90] sm:$0xff] %v2661
      %2698 = vst [vmem:[#allocation2 + $0x98] sm:$0xff] %v2662
      %2699 = vst [vmem:[#allocation2 + $0xa0] sm:$0xff] %v2663
      %2700 = vst [vmem:[#allocation2 + $0xa8] sm:$0xff] %v2664
      %2701 = vst [vmem:[#allocation2 + $0xb0] sm:$0xff] %v2665
      %2702 = vst [vmem:[#allocation2 + $0xb8] sm:$0xff] %v2666
      %2703 = vst [vmem:[#allocation2 + $0xc0] sm:$0xff] %v2667
      %2704 = vst [vmem:[#allocation2 + $0xc8] sm:$0xff] %v2668
      %2705 = vst [vmem:[#allocation2 + $0xd0] sm:$0xff] %v2669
      %2706 = vst [vmem:[#allocation2 + $0xd8] sm:$0xff] %v2670
      %2707 = vst [vmem:[#allocation2 + $0xe0] sm:$0xff] %v2671
      %2708 = vst [vmem:[#allocation2 + $0xe8] sm:$0xff] %v2672
      %2709 = vst [vmem:[#allocation2 + $0xf0] sm:$0xff] %v2673
      %2710 = vst [vmem:[#allocation2 + $0xf8] sm:$0xff] %v2674
      %2711 = vst [vmem:[#allocation2 + $0x100] sm:$0xff] %v2675
      %2712 = vst [vmem:[#allocation2 + $0x108] sm:$0xff] %v2676
      %2713 = vst [vmem:[#allocation2 + $0x110] sm:$0xff] %v2677
      %2714 = vst [vmem:[#allocation2 + $0x118] sm:$0xff] %v2678
      %v2715 = vld [vmem:[#allocation2] sm:$0xff]
      %v2716 = vld [vmem:[#allocation2 + $0x8] sm:$0xff]
      %v2717 = vld [vmem:[#allocation2 + $0x10] sm:$0xff]
      %v2718 = vld [vmem:[#allocation2 + $0x18] sm:$0xff]
      %v2719 = vld [vmem:[#allocation2 + $0x20] sm:$0xff]
      %v2720 = vld [vmem:[#allocation2 + $0x28] sm:$0xff]
      %v2721 = vld [vmem:[#allocation2 + $0x30] sm:$0xff]
      %v2722 = vld [vmem:[#allocation2 + $0x38] sm:$0xff]
      %v2723 = vld [vmem:[#allocation2 + $0x40] sm:$0xff]
      %v2724 = vld [vmem:[#allocation2 + $0x48] sm:$0xff]
      %v2725 = vld [vmem:[#allocation2 + $0x50] sm:$0xff]
      %v2726 = vld [vmem:[#allocation2 + $0x58] sm:$0xff]
      %v2727 = vld [vmem:[#allocation2 + $0x60] sm:$0xff]
      %v2728 = vld [vmem:[#allocation2 + $0x68] sm:$0xff]
      %v2729 = vld [vmem:[#allocation2 + $0x70] sm:$0xff]
      %v2730 = vld [vmem:[#allocation2 + $0x78] sm:$0xff]
      %v2731 = vld [vmem:[#allocation2 + $0x80] sm:$0xff]
      %v2732 = vld [vmem:[#allocation2 + $0x88] sm:$0xff]
      %v2733 = vld [vmem:[#allocation2 + $0x90] sm:$0xff]
      %v2734 = vld [vmem:[#allocation2 + $0x98] sm:$0xff]
      %v2735 = vld [vmem:[#allocation2 + $0xa0] sm:$0xff]
      %v2736 = vld [vmem:[#allocation2 + $0xa8] sm:$0xff]
      %v2737 = vld [vmem:[#allocation2 + $0xb0] sm:$0xff]
      %v2738 = vld [vmem:[#allocation2 + $0xb8] sm:$0xff]
      %v2739 = vld [vmem:[#allocation2 + $0xc0] sm:$0xff]
      %v2740 = vld [vmem:[#allocation2 + $0xc8] sm:$0xff]
      %v2741 = vld [vmem:[#allocation2 + $0xd0] sm:$0xff]
      %v2742 = vld [vmem:[#allocation2 + $0xd8] sm:$0xff]
      %v2743 = vld [vmem:[#allocation2 + $0xe0] sm:$0xff]
      %v2744 = vld [vmem:[#allocation2 + $0xe8] sm:$0xff]
      %v2745 = vld [vmem:[#allocation2 + $0xf0] sm:$0xff]
      %v2746 = vld [vmem:[#allocation2 + $0xf8] sm:$0xff]
      %v2747 = vld [vmem:[#allocation2 + $0x100] sm:$0xff]
      %v2748 = vld [vmem:[#allocation2 + $0x108] sm:$0xff]
      %v2749 = vld [vmem:[#allocation2 + $0x110] sm:$0xff]
      %v2750 = vld [vmem:[#allocation2 + $0x118] sm:$0xff]
      %s2751 = scalar_lea.vmem %s1, 16
      %v2752 = vld [vmem:[%s2751] sm:$0x3]
      %vm2753 = vcmask 1044480
      %v2754 = vrot.slane %v251, 3
      %v2755 = vrot.slane %v252, 3
      %v2756 = vsel %vm2753, %v2754, %v2755
      %v2757 = vrot.slane %v253, 3
      %v2758 = vsel %vm2753, %v2755, %v2757
      %v2759 = vrot.slane %v254, 3
      %v2760 = vsel %vm2753, %v2757, %v2759
      %v2761 = vrot.slane %v255, 3
      %v2762 = vsel %vm2753, %v2759, %v2761
      %v2763 = vrot.slane %v256, 3
      %v2764 = vsel %vm2753, %v2761, %v2763
      %v2765 = vrot.slane %v257, 3
      %v2766 = vsel %vm2753, %v2763, %v2765
      %v2767 = vrot.slane %v258, 3
      %v2768 = vsel %vm2753, %v2765, %v2767
      %v2769 = vrot.slane %v259, 3
      %v2770 = vsel %vm2753, %v2767, %v2769
      %v2771 = vrot.slane %v260, 3
      %v2772 = vsel %vm2753, %v2769, %v2771
      %v2773 = vrot.slane %v261, 3
      %v2774 = vsel %vm2753, %v2771, %v2773
      %v2775 = vrot.slane %v262, 3
      %v2776 = vsel %vm2753, %v2773, %v2775
      %v2777 = vrot.slane %v263, 3
      %v2778 = vsel %vm2753, %v2775, %v2777
      %v2779 = vrot.slane %v264, 3
      %v2780 = vsel %vm2753, %v2777, %v2779
      %v2781 = vrot.slane %v265, 3
      %v2782 = vsel %vm2753, %v2779, %v2781
      %v2783 = vrot.slane %v266, 3
      %v2784 = vsel %vm2753, %v2781, %v2783
      %v2785 = vrot.slane %v1255, 3
      %v2786 = vsel %vm2753, %v2783, %v2785
      %v2787 = vrot.slane %v2137, 3
      %v2788 = vsel %vm2753, %v2785, %v2787
      %v2789 = vrot.slane %v2138, 3
      %v2790 = vsel %vm2753, %v2787, %v2789
      %v2792 = vsel %vm304, %v2756, 0
      %v2795 = vsel %vm304, %v2758, 0
      %v2798 = vsel %vm304, %v2760, 0
      %v2801 = vsel %vm304, %v2762, 0
      %v2804 = vsel %vm304, %v2764, 0
      %v2807 = vsel %vm304, %v2766, 0
      %v2810 = vsel %vm304, %v2768, 0
      %v2813 = vsel %vm304, %v2770, 0
      %v2816 = vsel %vm304, %v2772, 0
      %v2819 = vsel %vm304, %v2774, 0
      %v2822 = vsel %vm304, %v2776, 0
      %v2825 = vsel %vm304, %v2778, 0
      %v2828 = vsel %vm304, %v2780, 0
      %v2831 = vsel %vm304, %v2782, 0
      %v2834 = vsel %vm304, %v2784, 0
      %v2837 = vsel %vm304, %v2786, 0
      %v2840 = vsel %vm304, %v2788, 0
      %v2843 = vsel %vm304, %v2790, 0
      %v2846 = vsel %vm359, %v2752, 0
      %2848 = vmatpush.bf16.msra.mxu0 0
      %2849 = vmatpush.bf16.msra.mxu0 0
      %2850 = vmatpush.bf16.msra.mxu0 0
      %2851 = vmatpush.bf16.msra.mxu0 0
      %2852 = vmatpush.bf16.msra.mxu0 0
      %2853 = vmatpush.bf16.msra.mxu0 0
      %2854 = vmatpush.bf16.msra.mxu0 0
      %2855 = vmatpush.bf16.msra.mxu0 %v2846
      %2856 = vmatmul.bf16.gmra.mxu0 %v2792
      %v2857 = vpop.f32.mrf.mxu0
      %v2858 = vadd.f32 0.0, %v2857
      %v2859 = vpop.f32.mrf.mxu0
      %v2860 = vadd.f32 0.0, %v2859
      %2861 = vmatmul.bf16.gmra.mxu0 %v2795
      %v2862 = vpop.f32.mrf.mxu0
      %v2863 = vadd.f32 0.0, %v2862
      %v2864 = vpop.f32.mrf.mxu0
      %v2865 = vadd.f32 0.0, %v2864
      %2866 = vmatmul.bf16.gmra.mxu0 %v2798
      %v2867 = vpop.f32.mrf.mxu0
      %v2868 = vadd.f32 0.0, %v2867
      %v2869 = vpop.f32.mrf.mxu0
      %v2870 = vadd.f32 0.0, %v2869
      %2871 = vmatmul.bf16.gmra.mxu0 %v2801
      %v2872 = vpop.f32.mrf.mxu0
      %v2873 = vadd.f32 0.0, %v2872
      %v2874 = vpop.f32.mrf.mxu0
      %v2875 = vadd.f32 0.0, %v2874
      %2876 = vmatmul.bf16.gmra.mxu0 %v2804
      %v2877 = vpop.f32.mrf.mxu0
      %v2878 = vadd.f32 0.0, %v2877
      %v2879 = vpop.f32.mrf.mxu0
      %v2880 = vadd.f32 0.0, %v2879
      %2881 = vmatmul.bf16.gmra.mxu0 %v2807
      %v2882 = vpop.f32.mrf.mxu0
      %v2883 = vadd.f32 0.0, %v2882
      %v2884 = vpop.f32.mrf.mxu0
      %v2885 = vadd.f32 0.0, %v2884
      %2886 = vmatmul.bf16.gmra.mxu0 %v2810
      %v2887 = vpop.f32.mrf.mxu0
      %v2888 = vadd.f32 0.0, %v2887
      %v2889 = vpop.f32.mrf.mxu0
      %v2890 = vadd.f32 0.0, %v2889
      %2891 = vmatmul.bf16.gmra.mxu0 %v2813
      %v2892 = vpop.f32.mrf.mxu0
      %v2893 = vadd.f32 0.0, %v2892
      %v2894 = vpop.f32.mrf.mxu0
      %v2895 = vadd.f32 0.0, %v2894
      %2896 = vmatmul.bf16.gmra.mxu0 %v2816
      %v2897 = vpop.f32.mrf.mxu0
      %v2898 = vadd.f32 0.0, %v2897
      %v2899 = vpop.f32.mrf.mxu0
      %v2900 = vadd.f32 0.0, %v2899
      %2901 = vmatmul.bf16.gmra.mxu0 %v2819
      %v2902 = vpop.f32.mrf.mxu0
      %v2903 = vadd.f32 0.0, %v2902
      %v2904 = vpop.f32.mrf.mxu0
      %v2905 = vadd.f32 0.0, %v2904
      %2906 = vmatmul.bf16.gmra.mxu0 %v2822
      %v2907 = vpop.f32.mrf.mxu0
      %v2908 = vadd.f32 0.0, %v2907
      %v2909 = vpop.f32.mrf.mxu0
      %v2910 = vadd.f32 0.0, %v2909
      %2911 = vmatmul.bf16.gmra.mxu0 %v2825
      %v2912 = vpop.f32.mrf.mxu0
      %v2913 = vadd.f32 0.0, %v2912
      %v2914 = vpop.f32.mrf.mxu0
      %v2915 = vadd.f32 0.0, %v2914
      %2916 = vmatmul.bf16.gmra.mxu0 %v2828
      %v2917 = vpop.f32.mrf.mxu0
      %v2918 = vadd.f32 0.0, %v2917
      %v2919 = vpop.f32.mrf.mxu0
      %v2920 = vadd.f32 0.0, %v2919
      %2921 = vmatmul.bf16.gmra.mxu0 %v2831
      %v2922 = vpop.f32.mrf.mxu0
      %v2923 = vadd.f32 0.0, %v2922
      %v2924 = vpop.f32.mrf.mxu0
      %v2925 = vadd.f32 0.0, %v2924
      %2926 = vmatmul.bf16.gmra.mxu0 %v2834
      %v2927 = vpop.f32.mrf.mxu0
      %v2928 = vadd.f32 0.0, %v2927
      %v2929 = vpop.f32.mrf.mxu0
      %v2930 = vadd.f32 0.0, %v2929
      %2931 = vmatmul.bf16.gmra.mxu0 %v2837
      %v2932 = vpop.f32.mrf.mxu0
      %v2933 = vadd.f32 0.0, %v2932
      %v2934 = vpop.f32.mrf.mxu0
      %v2935 = vadd.f32 0.0, %v2934
      %2936 = vmatmul.bf16.gmra.mxu0 %v2840
      %v2937 = vpop.f32.mrf.mxu0
      %v2938 = vadd.f32 0.0, %v2937
      %v2939 = vpop.f32.mrf.mxu0
      %v2940 = vadd.f32 0.0, %v2939
      %2941 = vmatmul.bf16.gmra.mxu0 %v2843
      %v2942 = vpop.f32.mrf.mxu0
      %v2943 = vadd.f32 0.0, %v2942
      %v2944 = vpop.f32.mrf.mxu0
      %v2945 = vadd.f32 0.0, %v2944
      %2946 = vdwg.mxu0
      %v2947 = vadd.f32 %v2715, %v2858
      %v2948 = vadd.f32 %v2716, %v2860
      %v2949 = vadd.f32 %v2717, %v2863
      %v2950 = vadd.f32 %v2718, %v2865
      %v2951 = vadd.f32 %v2719, %v2868
      %v2952 = vadd.f32 %v2720, %v2870
      %v2953 = vadd.f32 %v2721, %v2873
      %v2954 = vadd.f32 %v2722, %v2875
      %v2955 = vadd.f32 %v2723, %v2878
      %v2956 = vadd.f32 %v2724, %v2880
      %v2957 = vadd.f32 %v2725, %v2883
      %v2958 = vadd.f32 %v2726, %v2885
      %v2959 = vadd.f32 %v2727, %v2888
      %v2960 = vadd.f32 %v2728, %v2890
      %v2961 = vadd.f32 %v2729, %v2893
      %v2962 = vadd.f32 %v2730, %v2895
      %v2963 = vadd.f32 %v2731, %v2898
      %v2964 = vadd.f32 %v2732, %v2900
      %v2965 = vadd.f32 %v2733, %v2903
      %v2966 = vadd.f32 %v2734, %v2905
      %v2967 = vadd.f32 %v2735, %v2908
      %v2968 = vadd.f32 %v2736, %v2910
      %v2969 = vadd.f32 %v2737, %v2913
      %v2970 = vadd.f32 %v2738, %v2915
      %v2971 = vadd.f32 %v2739, %v2918
      %v2972 = vadd.f32 %v2740, %v2920
      %v2973 = vadd.f32 %v2741, %v2923
      %v2974 = vadd.f32 %v2742, %v2925
      %v2975 = vadd.f32 %v2743, %v2928
      %v2976 = vadd.f32 %v2744, %v2930
      %v2977 = vadd.f32 %v2745, %v2933
      %v2978 = vadd.f32 %v2746, %v2935
      %v2979 = vadd.f32 %v2747, %v2938
      %v2980 = vadd.f32 %v2748, %v2940
      %v2981 = vadd.f32 %v2749, %v2943
      %v2982 = vadd.f32 %v2750, %v2945
      %2983 = vst [vmem:[#allocation2] sm:$0xff] %v2947
      %2984 = vst [vmem:[#allocation2 + $0x8] sm:$0xff] %v2948
      %2985 = vst [vmem:[#allocation2 + $0x10] sm:$0xff] %v2949
      %2986 = vst [vmem:[#allocation2 + $0x18] sm:$0xff] %v2950
      %2987 = vst [vmem:[#allocation2 + $0x20] sm:$0xff] %v2951
      %2988 = vst [vmem:[#allocation2 + $0x28] sm:$0xff] %v2952
      %2989 = vst [vmem:[#allocation2 + $0x30] sm:$0xff] %v2953
      %2990 = vst [vmem:[#allocation2 + $0x38] sm:$0xff] %v2954
      %2991 = vst [vmem:[#allocation2 + $0x40] sm:$0xff] %v2955
      %2992 = vst [vmem:[#allocation2 + $0x48] sm:$0xff] %v2956
      %2993 = vst [vmem:[#allocation2 + $0x50] sm:$0xff] %v2957
      %2994 = vst [vmem:[#allocation2 + $0x58] sm:$0xff] %v2958
      %2995 = vst [vmem:[#allocation2 + $0x60] sm:$0xff] %v2959
      %2996 = vst [vmem:[#allocation2 + $0x68] sm:$0xff] %v2960
      %2997 = vst [vmem:[#allocation2 + $0x70] sm:$0xff] %v2961
      %2998 = vst [vmem:[#allocation2 + $0x78] sm:$0xff] %v2962
      %2999 = vst [vmem:[#allocation2 + $0x80] sm:$0xff] %v2963
      %3000 = vst [vmem:[#allocation2 + $0x88] sm:$0xff] %v2964
      %3001 = vst [vmem:[#allocation2 + $0x90] sm:$0xff] %v2965
      %3002 = vst [vmem:[#allocation2 + $0x98] sm:$0xff] %v2966
      %3003 = vst [vmem:[#allocation2 + $0xa0] sm:$0xff] %v2967
      %3004 = vst [vmem:[#allocation2 + $0xa8] sm:$0xff] %v2968
      %3005 = vst [vmem:[#allocation2 + $0xb0] sm:$0xff] %v2969
      %3006 = vst [vmem:[#allocation2 + $0xb8] sm:$0xff] %v2970
      %3007 = vst [vmem:[#allocation2 + $0xc0] sm:$0xff] %v2971
      %3008 = vst [vmem:[#allocation2 + $0xc8] sm:$0xff] %v2972
      %3009 = vst [vmem:[#allocation2 + $0xd0] sm:$0xff] %v2973
      %3010 = vst [vmem:[#allocation2 + $0xd8] sm:$0xff] %v2974
      %3011 = vst [vmem:[#allocation2 + $0xe0] sm:$0xff] %v2975
      %3012 = vst [vmem:[#allocation2 + $0xe8] sm:$0xff] %v2976
      %3013 = vst [vmem:[#allocation2 + $0xf0] sm:$0xff] %v2977
      %3014 = vst [vmem:[#allocation2 + $0xf8] sm:$0xff] %v2978
      %3015 = vst [vmem:[#allocation2 + $0x100] sm:$0xff] %v2979
      %3016 = vst [vmem:[#allocation2 + $0x108] sm:$0xff] %v2980
      %3017 = vst [vmem:[#allocation2 + $0x110] sm:$0xff] %v2981
      %3018 = vst [vmem:[#allocation2 + $0x118] sm:$0xff] %v2982
      %v3019 = vld [vmem:[#allocation2] sm:$0xff]
      %v3020 = vld [vmem:[#allocation2 + $0x8] sm:$0xff]
      %v3021 = vld [vmem:[#allocation2 + $0x10] sm:$0xff]
      %v3022 = vld [vmem:[#allocation2 + $0x18] sm:$0xff]
      %v3023 = vld [vmem:[#allocation2 + $0x20] sm:$0xff]
      %v3024 = vld [vmem:[#allocation2 + $0x28] sm:$0xff]
      %v3025 = vld [vmem:[#allocation2 + $0x30] sm:$0xff]
      %v3026 = vld [vmem:[#allocation2 + $0x38] sm:$0xff]
      %v3027 = vld [vmem:[#allocation2 + $0x40] sm:$0xff]
      %v3028 = vld [vmem:[#allocation2 + $0x48] sm:$0xff]
      %v3029 = vld [vmem:[#allocation2 + $0x50] sm:$0xff]
      %v3030 = vld [vmem:[#allocation2 + $0x58] sm:$0xff]
      %v3031 = vld [vmem:[#allocation2 + $0x60] sm:$0xff]
      %v3032 = vld [vmem:[#allocation2 + $0x68] sm:$0xff]
      %v3033 = vld [vmem:[#allocation2 + $0x70] sm:$0xff]
      %v3034 = vld [vmem:[#allocation2 + $0x78] sm:$0xff]
      %v3035 = vld [vmem:[#allocation2 + $0x80] sm:$0xff]
      %v3036 = vld [vmem:[#allocation2 + $0x88] sm:$0xff]
      %v3037 = vld [vmem:[#allocation2 + $0x90] sm:$0xff]
      %v3038 = vld [vmem:[#allocation2 + $0x98] sm:$0xff]
      %v3039 = vld [vmem:[#allocation2 + $0xa0] sm:$0xff]
      %v3040 = vld [vmem:[#allocation2 + $0xa8] sm:$0xff]
      %v3041 = vld [vmem:[#allocation2 + $0xb0] sm:$0xff]
      %v3042 = vld [vmem:[#allocation2 + $0xb8] sm:$0xff]
      %v3043 = vld [vmem:[#allocation2 + $0xc0] sm:$0xff]
      %v3044 = vld [vmem:[#allocation2 + $0xc8] sm:$0xff]
      %v3045 = vld [vmem:[#allocation2 + $0xd0] sm:$0xff]
      %v3046 = vld [vmem:[#allocation2 + $0xd8] sm:$0xff]
      %v3047 = vld [vmem:[#allocation2 + $0xe0] sm:$0xff]
      %v3048 = vld [vmem:[#allocation2 + $0xe8] sm:$0xff]
      %v3049 = vld [vmem:[#allocation2 + $0xf0] sm:$0xff]
      %v3050 = vld [vmem:[#allocation2 + $0xf8] sm:$0xff]
      %v3051 = vld [vmem:[#allocation2 + $0x100] sm:$0xff]
      %v3052 = vld [vmem:[#allocation2 + $0x108] sm:$0xff]
      %v3053 = vld [vmem:[#allocation2 + $0x110] sm:$0xff]
      %v3054 = vld [vmem:[#allocation2 + $0x118] sm:$0xff]
      %v3055 = vld [vmem:[%s2] sm:$0x1]
      %v3057 = vperm.slane %v3055, 0
      %v3059 = vadd.f32 %v3019, %v3057
      %v3060 = vadd.f32 %v3020, %v3057
      %v3061 = vadd.f32 %v3021, %v3057
      %v3062 = vadd.f32 %v3022, %v3057
      %v3063 = vadd.f32 %v3023, %v3057
      %v3064 = vadd.f32 %v3024, %v3057
      %v3065 = vadd.f32 %v3025, %v3057
      %v3066 = vadd.f32 %v3026, %v3057
      %v3067 = vadd.f32 %v3027, %v3057
      %v3068 = vadd.f32 %v3028, %v3057
      %v3069 = vadd.f32 %v3029, %v3057
      %v3070 = vadd.f32 %v3030, %v3057
      %v3071 = vadd.f32 %v3031, %v3057
      %v3072 = vadd.f32 %v3032, %v3057
      %v3073 = vadd.f32 %v3033, %v3057
      %v3074 = vadd.f32 %v3034, %v3057
      %v3075 = vadd.f32 %v3035, %v3057
      %v3076 = vadd.f32 %v3036, %v3057
      %v3077 = vadd.f32 %v3037, %v3057
      %v3078 = vadd.f32 %v3038, %v3057
      %v3079 = vadd.f32 %v3039, %v3057
      %v3080 = vadd.f32 %v3040, %v3057
      %v3081 = vadd.f32 %v3041, %v3057
      %v3082 = vadd.f32 %v3042, %v3057
      %v3083 = vadd.f32 %v3043, %v3057
      %v3084 = vadd.f32 %v3044, %v3057
      %v3085 = vadd.f32 %v3045, %v3057
      %v3086 = vadd.f32 %v3046, %v3057
      %v3087 = vadd.f32 %v3047, %v3057
      %v3088 = vadd.f32 %v3048, %v3057
      %v3089 = vadd.f32 %v3049, %v3057
      %v3090 = vadd.f32 %v3050, %v3057
      %v3091 = vadd.f32 %v3051, %v3057
      %v3092 = vadd.f32 %v3052, %v3057
      %v3093 = vadd.f32 %v3053, %v3057
      %v3094 = vadd.f32 %v3054, %v3057
      %3095 = vst [vmem:[%s170] sm:$0xff] %v3059
      %3096 = vst [vmem:[%s170 + $0x8] sm:$0xff] %v3060
      %3097 = vst [vmem:[%s170 + $0x10] sm:$0xff] %v3061
      %3098 = vst [vmem:[%s170 + $0x18] sm:$0xff] %v3062
      %3099 = vst [vmem:[%s170 + $0x20] sm:$0xff] %v3063
      %3100 = vst [vmem:[%s170 + $0x28] sm:$0xff] %v3064
      %3101 = vst [vmem:[%s170 + $0x30] sm:$0xff] %v3065
      %3102 = vst [vmem:[%s170 + $0x38] sm:$0xff] %v3066
      %3103 = vst [vmem:[%s170 + $0x40] sm:$0xff] %v3067
      %3104 = vst [vmem:[%s170 + $0x48] sm:$0xff] %v3068
      %3105 = vst [vmem:[%s170 + $0x50] sm:$0xff] %v3069
      %3106 = vst [vmem:[%s170 + $0x58] sm:$0xff] %v3070
      %3107 = vst [vmem:[%s170 + $0x60] sm:$0xff] %v3071
      %3108 = vst [vmem:[%s170 + $0x68] sm:$0xff] %v3072
      %3109 = vst [vmem:[%s170 + $0x70] sm:$0xff] %v3073
      %3110 = vst [vmem:[%s170 + $0x78] sm:$0xff] %v3074
      %3111 = vst [vmem:[%s170 + $0x80] sm:$0xff] %v3075
      %3112 = vst [vmem:[%s170 + $0x88] sm:$0xff] %v3076
      %3113 = vst [vmem:[%s170 + $0x90] sm:$0xff] %v3077
      %3114 = vst [vmem:[%s170 + $0x98] sm:$0xff] %v3078
      %3115 = vst [vmem:[%s170 + $0xa0] sm:$0xff] %v3079
      %3116 = vst [vmem:[%s170 + $0xa8] sm:$0xff] %v3080
      %3117 = vst [vmem:[%s170 + $0xb0] sm:$0xff] %v3081
      %3118 = vst [vmem:[%s170 + $0xb8] sm:$0xff] %v3082
      %3119 = vst [vmem:[%s170 + $0xc0] sm:$0xff] %v3083
      %3120 = vst [vmem:[%s170 + $0xc8] sm:$0xff] %v3084
      %3121 = vst [vmem:[%s170 + $0xd0] sm:$0xff] %v3085
      %3122 = vst [vmem:[%s170 + $0xd8] sm:$0xff] %v3086
      %3123 = vst [vmem:[%s170 + $0xe0] sm:$0xff] %v3087
      %3124 = vst [vmem:[%s170 + $0xe8] sm:$0xff] %v3088
      %3125 = vst [vmem:[%s170 + $0xf0] sm:$0xff] %v3089
      %3126 = vst [vmem:[%s170 + $0xf8] sm:$0xff] %v3090
      %3127 = vst [vmem:[%s170 + $0x100] sm:$0xff] %v3091
      %3128 = vst [vmem:[%s170 + $0x108] sm:$0xff] %v3092
      %3129 = vst [vmem:[%s170 + $0x110] sm:$0xff] %v3093
      %3130 = vst [vmem:[%s170 + $0x118] sm:$0xff] %v3094
      %p3131 = scmp.lt.s32.totalorder %s14, 1
      %s3132 = scalar_select %p3131, %s14, 1
      %s3133 = smul.addr %s3132, 36
      %s3134 = smul.addr %s3133, 8
      %s3135 = scalar_lea.vmem %s3, %s3134
      // Predicated region
      $region33: #{asyconv_forward.1} parent=31 // pred_check
        %p3136 = pneg %p100
      $region34: #{asyconv_forward.1} parent=31 // pred_check_branch
        %3138 = sbr.rel (%p3136) target = $region36
      $region35: #{asyconv_forward.1} parent=31 // pred_region
        _
      $region36: #{asyconv_forward.1} parent=31 // pred_fallthru
        _
    $region32: #{asyconv_forward.1} parent=5 // pred_fallthru
      _
    %p3139 = scmp.le.s32.totalorder 2, %s9
    // Predicated region
    $region37: #{asyconv_forward.1} parent=5 // pred_check
      %p3140 = pneg %p3139
    $region38: #{asyconv_forward.1} parent=5 // pred_check_branch
      %3142 = sbr.rel (%p3140) target = $region40
    $region39: #{asyconv_forward.1} parent=5 // pred_region
      %s3143 = ssub.s32 %s9, 2
      // Predicated region
      $region41: #{asyconv_forward.1} parent=39 // pred_check
        %p3144 = pneg %p106
      $region42: #{asyconv_forward.1} parent=39 // pred_check_branch
        %3146 = sbr.rel (%p3144) target = $region44
      $region43: #{asyconv_forward.1} parent=39 // pred_region
        %p3147 = scmp.lt.s32.totalorder %s15, 1
        %s3148 = scalar_select %p3147, %s15, 1
        %s3149 = smul.addr %s3148, 36
        %s3150 = smul.addr %s3149, 8
        %s3151 = scalar_lea.vmem %s3, %s3150
      $region44: #{asyconv_forward.1} parent=39 // pred_fallthru
        _
    $region40: #{asyconv_forward.1} parent=5 // pred_fallthru
      _
  $region6: #{asyconv_forward.1} parent=0 // loop_footer
    %s13 = sadd.s32 1, %s9
  $region7: #{asyconv_forward.1} parent=0 // loop_footer_branch
    %8 = sbr.rel target = $region3
  $region8: #{asyconv_forward.1} parent=0 // loop_exit
    _

</llo_original>
